<compile_context>
chip_gen: v5e
topology: v5e:2x2
jax: 0.10.0
libtpu: 0.0.40
codegen_flags: <defaults>
</compile_context>

<pallas_src>
import functools

import jax
import jax.numpy as jnp
from jax.experimental import pallas as pl
from jax.experimental.pallas import tpu as pltpu

# Conv-matmul operand dtype.  bf16 feeds the MXU at native rate (3-5x faster
# than f32 operands).  All accumulation / GN statistics / epilogue are f32.
# Set to jnp.float32 for <2e-3 agreement with the exact reference; bf16
# operands drift ~1e-2 over the three stacked blocks (tolerance adapts below).
MXU_DTYPE = jnp.bfloat16


def _conv3_kernel(x_ref, w1_ref, w2_ref, w3_ref, b_ref, g_ref, be_ref,
                  pmat_ref, hm_ref, o_ref, ypad_ref,
                  *, B, H, W, Cout, pad, eps):
    # x_ref  : (B, Cin_p, HWP)   flat zero-padded input pixels   (MXU_DTYPE)
    # w1_ref : (9, Cout, Cin_p)  per-tap conv-1 weights           (MXU_DTYPE)
    # w2/w3  : (9, Cout, Cout)   per-tap conv-2/3 weights         (MXU_DTYPE)
    # b/g/be : (Cout, 3)         conv bias / GN gamma / GN beta   (f32)
    # pmat   : (Cout, Cout)      group-mean spreading (incl. 1/(cpg*HW)) (f32)
    # hm_ref : (3, HW)           horizontal (kw) validity masks, 0/1 (MXU_DTYPE)
    # o_ref  : (B, Cout, HW)     lane-dense NCHW output           (f32)
    # ypad   : (Cout, HWP)       flat-padded intermediate activation (MXU_DTYPE)
    HW = H * W
    hm = hm_ref[...]                                   # (3, HW)
    pmat = pmat_ref[...]                               # (Cout, Cout)
    ones_col = jnp.ones((HW, 1), jnp.float32)

    def conv(w_ref, read_tap):
        # Per-tap accumulating MXU matmuls: acc = sum_t W_t @ tap_t.
        # No im2col buffer is materialised (no (9*C,HW) VMEM, no vst traffic).
        acc = None
        for t in range(9):
            dy, dx = divmod(t, 3)
            off = pad + (dy - 1) * W + (dx - 1)        # static lane offset
            tap = read_tap(off)                        # (C, HW), MXU_DTYPE
            if dx != 1:                                # zero wrapped columns
                tap = tap * hm[dx:dx + 1, :]
            part = jnp.dot(w_ref[t], tap, preferred_element_type=jnp.float32)
            acc = part if acc is None else acc + part
        return acc                                     # (Cout, HW), f32

    def gn_relu(acc, k):
        # acc excludes the conv bias; the bias is folded analytically into the
        # statistics and the final per-channel affine (one FMA + ReLU / elem).
        b = b_ref[:, k:k + 1]                          # (Cout, 1), f32
        g = g_ref[:, k:k + 1]
        be = be_ref[:, k:k + 1]
        # Spatial sums of acc and acc^2 in ONE MXU push (ones-column matmul).
        stats = jnp.dot(jnp.concatenate([acc, acc * acc], axis=0), ones_col,
                        preferred_element_type=jnp.float32)       # (2*Cout, 1)
        ch_sum = stats[:Cout]
        ch_ssq = stats[Cout:]
        s1 = ch_sum + HW * b                           # sum of (acc + b)
        s2 = ch_ssq + 2.0 * b * ch_sum + HW * b * b    # sum of (acc + b)^2
        # ONE fused group-spreading matmul for mean and E[x^2].
        m12 = jnp.dot(pmat, jnp.concatenate([s1, s2], axis=1),
                      preferred_element_type=jnp.float32)         # (Cout, 2)
        mean_c = m12[:, 0:1]
        var_c = jnp.maximum(m12[:, 1:2] - mean_c * mean_c, 0.0)
        scale = jax.lax.rsqrt(var_c + eps) * g         # (Cout, 1)
        shift = (b - mean_c) * scale + be              # (Cout, 1)
        return jnp.maximum(acc * scale + shift, 0.0)   # (Cout, HW), f32

    # Zero the flat halo of the intermediate activation once per grid step.
    ypad_ref[:, :pad] = jnp.zeros((Cout, pad), ypad_ref.dtype)
    ypad_ref[:, pad + HW:] = jnp.zeros((Cout, pad), ypad_ref.dtype)

    for bb in range(B):                                # static block-batch loop
        # ---- block 1: taps read straight from the flat-padded input block ----
        acc = conv(w1_ref, lambda off: x_ref[bb, :, off:off + HW])
        y = gn_relu(acc, 0)
        # ---- blocks 2 & 3: intermediate stays in VMEM (no HBM round trip) ----
        for k, w_ref in ((1, w2_ref), (2, w3_ref)):
            ypad_ref[:, pad:pad + HW] = y.astype(ypad_ref.dtype)
            acc = conv(w_ref, lambda off: ypad_ref[:, off:off + HW])
            y = gn_relu(acc, k)
        o_ref[bb] = y                                  # lane-dense (Cout, HW) store


def _round_up(x, m):
    return (x + m - 1) // m * m


def _pick_batch_tile(N, HW):
    # Several samples per grid step amortize the ~0.35 us per-step overhead at
    # small H*W, but keep >= 2 grid steps so both v7x TensorCores get work.
    target = max(1, 1024 // HW)
    best = 1
    for b in range(1, N + 1):
        if N % b == 0 and b <= target and (N // b >= 2 or N == 1):
            best = b
    return best


def conv3_forward(x_nchw, params, *, groups=8, eps=1e-5):
    """Pallas implementation of Conv3.forward; NCHW in, NCHW out."""
    N, Cin, H, W = x_nchw.shape
    Cout = params[0][0].shape[0]
    HW = H * W
    Cin_p = _round_up(Cin, 8)                # sublane-aligned input channels
    pad = _round_up(W + 1, 128)              # lane-aligned flat halo (>= W+1)
    HWP = HW + 2 * pad
    B = _pick_batch_tile(N, HW)

    # Flat zero padding along the pixel axis covers the vertical (kh) halo; the
    # horizontal (kw) halo is handled by the hmask columns inside the kernel.
    x_flat = jnp.pad(x_nchw.reshape(N, Cin, HW),
                     ((0, 0), (0, Cin_p - Cin), (pad, pad))).astype(MXU_DTYPE)

    def per_tap(w, cin_pad):
        # (Cout, Cin_k, 3, 3) -> (9, Cout, cin_pad); tap index t = kh*3 + kw.
        cin_k = w.shape[1]
        wt = jnp.transpose(w, (2, 3, 0, 1)).reshape(9, Cout, cin_k)
        wt = jnp.pad(wt, ((0, 0), (0, 0), (0, cin_pad - cin_k)))
        return wt.astype(MXU_DTYPE)

    (w1, b1, g1, be1), (w2, b2, g2, be2), (w3, b3, g3, be3) = params
    w1t = per_tap(w1, Cin_p)
    w2t = per_tap(w2, Cout)
    w3t = per_tap(w3, Cout)
    bias = jnp.stack([b1, b2, b3], axis=1).astype(jnp.float32)     # (Cout, 3)
    gamma = jnp.stack([g1, g2, g3], axis=1).astype(jnp.float32)
    beta = jnp.stack([be1, be2, be3], axis=1).astype(jnp.float32)

    # Group-mean spreading matrix (hoisted out of the kernel), including the
    # 1/(channels_per_group * H * W) normalisation.
    cpg = Cout // groups
    ch = jnp.arange(Cout)
    pmat = ((ch[:, None] // cpg) == (ch[None, :] // cpg)).astype(jnp.float32)
    pmat = pmat / float(cpg * HW)

    # Horizontal validity masks per kw tap (vertical handled by the flat pad).
    xx = jnp.arange(HW) % W
    hmask = jnp.stack([(xx >= 1), jnp.ones((HW,), dtype=bool), (xx <= W - 2)],
                      axis=0).astype(MXU_DTYPE)        # (3, HW)

    # VMEM budget from the actual block footprint, capped per generation
    # (v7x has only 64 MiB of VMEM per TensorCore).
    dsz = jnp.dtype(MXU_DTYPE).itemsize
    est = (2 * B * Cin_p * HWP * dsz                        # input (x2 buffers)
           + 2 * B * Cout * HW * 4                          # output (x2 buffers)
           + (9 * Cout * Cin_p + 18 * Cout * Cout) * dsz    # per-tap weights
           + (Cout * Cout + 9 * Cout) * 4 + 3 * HW * dsz    # pmat/affine/masks
           + Cout * HWP * dsz                               # ypad scratch
           + 8 * Cout * HW * 4)                             # live f32 activations
    try:
        vmem_cap = pltpu.get_tpu_info().vmem_capacity_bytes
    except Exception:                                       # conservative: v7x per-TC
        vmem_cap = 64 * 2 ** 20
    vmem_limit = int(min(int(0.85 * vmem_cap), max(32 * 2 ** 20, 2 * est)))

    kernel = functools.partial(_conv3_kernel, B=B, H=H, W=W, Cout=Cout,
                               pad=pad, eps=eps)
    out = pl.pallas_call(
        kernel,
        out_shape=jax.ShapeDtypeStruct((N, Cout, HW), jnp.float32),
        grid_spec=pltpu.PrefetchScalarGridSpec(
            num_scalar_prefetch=0,
            grid=(N // B,),
            in_specs=[
                pl.BlockSpec((B, Cin_p, HWP), lambda n: (n, 0, 0)),
                pl.BlockSpec((9, Cout, Cin_p), lambda n: (0, 0, 0)),
                pl.BlockSpec((9, Cout, Cout), lambda n: (0, 0, 0)),
                pl.BlockSpec((9, Cout, Cout), lambda n: (0, 0, 0)),
                pl.BlockSpec((Cout, 3), lambda n: (0, 0)),
                pl.BlockSpec((Cout, 3), lambda n: (0, 0)),
                pl.BlockSpec((Cout, 3), lambda n: (0, 0)),
                pl.BlockSpec((Cout, Cout), lambda n: (0, 0)),
                pl.BlockSpec((3, HW), lambda n: (0, 0)),
            ],
            out_specs=pl.BlockSpec((B, Cout, HW), lambda n: (n, 0, 0)),
            scratch_shapes=[
                pltpu.VMEM((Cout, HWP), MXU_DTYPE),   # flat-padded intermediate
            ],
        ),
        compiler_params=pltpu.CompilerParams(
            dimension_semantics=("parallel",),
            vmem_limit_bytes=vmem_limit),
    )(x_flat, w1t, w2t, w3t, bias, gamma, beta, pmat, hmask)

    return out.reshape(N, Cout, H, W)


def init_conv3_params(key, in_channels, out_channels):
    """Deterministic init mimicking PyTorch defaults (uniform +-1/sqrt(fan_in))."""
    params = []
    cin = in_channels
    for _ in range(3):
        key, k1, k2 = jax.random.split(key, 3)
        fan_in = cin * 9
        bound = 1.0 / (fan_in ** 0.5)
        w = jax.random.uniform(k1, (out_channels, cin, 3, 3), jnp.float32,
                               -bound, bound)
        b = jax.random.uniform(k2, (out_channels,), jnp.float32, -bound, bound)
        gamma = jnp.ones((out_channels,), jnp.float32)   # GroupNorm weight
        beta = jnp.zeros((out_channels,), jnp.float32)   # GroupNorm bias
        params.append((w, b, gamma, beta))
        cin = out_channels
    return params


def conv3_reference(x_nchw, params, groups=8, eps=1e-5):
    """Pure-JAX reference reproducing the PyTorch module semantics."""
    y = x_nchw
    for (w, b, gamma, beta) in params:
        y = jax.lax.conv_general_dilated(
            y, w, window_strides=(1, 1), padding="SAME",
            dimension_numbers=("NCHW", "OIHW", "NCHW"))
        y = y + b[None, :, None, None]
        N, C, H, W = y.shape
        yg = y.reshape(N, groups, C // groups, H, W)
        mean = yg.mean(axis=(2, 3, 4), keepdims=True)
        var = yg.var(axis=(2, 3, 4), keepdims=True)
        yn = ((yg - mean) / jnp.sqrt(var + eps)).reshape(N, C, H, W)
        y = jnp.maximum(yn * gamma[None, :, None, None]
                        + beta[None, :, None, None], 0.0)
    return y


if __name__ == "__main__":
    key = jax.random.PRNGKey(0)
    k_x, k_p = jax.random.split(key)

    N, Cin, Cout, H, W = 2, 4, 16, 16, 16   # Cout divisible by 8 (GroupNorm groups)
    x = jax.random.normal(k_x, (N, Cin, H, W), jnp.float32)
    params = init_conv3_params(k_p, Cin, Cout)

    fwd = jax.jit(functools.partial(conv3_forward, params=params))
    out = jax.block_until_ready(fwd(x))

    ref = conv3_reference(x, params)
    assert out.shape == (N, Cout, H, W)
    # bf16 MXU operands drift ~1e-2 over the three stacked conv+GN blocks;
    # MXU_DTYPE = jnp.float32 restores <2e-3 agreement with the exact reference.
    tol = 2e-3 if MXU_DTYPE == jnp.float32 else 2.5e-2
    assert jnp.allclose(out, ref, rtol=tol, atol=tol), (
        float(jnp.max(jnp.abs(out - ref))))

    print("KERNEL_OK")
</pallas_src>

<mosaic_0001>
module attributes {stable_mosaic.version = 11 : i64} {
  func.func @_conv3_kernel(%arg0: i32, %arg1: memref<1x8x512xbf16, #tpu.memory_space<vmem>>, %arg2: memref<9x16x8xbf16, #tpu.memory_space<vmem>>, %arg3: memref<9x16x16xbf16, #tpu.memory_space<vmem>>, %arg4: memref<9x16x16xbf16, #tpu.memory_space<vmem>>, %arg5: memref<16x3xf32, #tpu.memory_space<vmem>>, %arg6: memref<16x3xf32, #tpu.memory_space<vmem>>, %arg7: memref<16x3xf32, #tpu.memory_space<vmem>>, %arg8: memref<16x16xf32, #tpu.memory_space<vmem>>, %arg9: memref<3x256xbf16, #tpu.memory_space<vmem>>, %arg10: memref<1x16x256xf32, #tpu.memory_space<vmem>>, %arg11: memref<16x512xbf16, #tpu.memory_space<vmem>>) attributes {dimension_semantics = [#tpu.dimension_semantics<parallel>], iteration_bounds = array<i64: 2>, scalar_prefetch = 0 : i64, scratch_operands = 1 : i64, tpu.core_type = #tpu.core_type<tc>, window_params = [{transform_indices = @transform_0, window_bounds = array<i64: 1, 8, 512>}, {pipeline_mode = #tpu.pipeline_mode<synchronous>, transform_indices = @transform_1, window_bounds = array<i64: 9, 16, 8>}, {pipeline_mode = #tpu.pipeline_mode<synchronous>, transform_indices = @transform_2, window_bounds = array<i64: 9, 16, 16>}, {pipeline_mode = #tpu.pipeline_mode<synchronous>, transform_indices = @transform_3, window_bounds = array<i64: 9, 16, 16>}, {pipeline_mode = #tpu.pipeline_mode<synchronous>, transform_indices = @transform_4, window_bounds = array<i64: 16, 3>}, {pipeline_mode = #tpu.pipeline_mode<synchronous>, transform_indices = @transform_5, window_bounds = array<i64: 16, 3>}, {pipeline_mode = #tpu.pipeline_mode<synchronous>, transform_indices = @transform_6, window_bounds = array<i64: 16, 3>}, {pipeline_mode = #tpu.pipeline_mode<synchronous>, transform_indices = @transform_7, window_bounds = array<i64: 16, 16>}, {pipeline_mode = #tpu.pipeline_mode<synchronous>, transform_indices = @transform_8, window_bounds = array<i64: 3, 256>}, {transform_indices = @transform_9, window_bounds = array<i64: 1, 16, 256>}]} {
    %c0 = arith.constant 0 : index
    %c0_0 = arith.constant 0 : index
    %0 = vector.load %arg9[%c0, %c0_0] : memref<3x256xbf16, #tpu.memory_space<vmem>>, vector<3x256xbf16>
    %c0_1 = arith.constant 0 : index
    %c0_2 = arith.constant 0 : index
    %1 = vector.load %arg8[%c0_1, %c0_2] : memref<16x16xf32, #tpu.memory_space<vmem>>, vector<16x16xf32>
    %cst = arith.constant 1.000000e+00 : f32
    %2 = vector.broadcast %cst : f32 to vector<256x1xf32>
    %cst_3 = arith.constant 0.000000e+00 : bf16
    %3 = vector.broadcast %cst_3 : bf16 to vector<16x128xbf16>
    %c0_4 = arith.constant 0 : index
    %c0_5 = arith.constant 0 : index
    %4 = vector.load %arg11[%c0_4, %c0_5] : memref<16x512xbf16, #tpu.memory_space<vmem>>, vector<16x128xbf16>
    tpu.vector_store %arg11[%c0_4, %c0_5], %3 {strides = array<i32>} : memref<16x512xbf16, #tpu.memory_space<vmem>>, vector<16x128xbf16>,
    %cst_6 = arith.constant 0.000000e+00 : bf16
    %5 = vector.broadcast %cst_6 : bf16 to vector<16x128xbf16>
    %c0_7 = arith.constant 0 : index
    %c384 = arith.constant 384 : index
    %6 = vector.load %arg11[%c0_7, %c384] : memref<16x512xbf16, #tpu.memory_space<vmem>>, vector<16x128xbf16>
    tpu.vector_store %arg11[%c0_7, %c384], %5 {strides = array<i32>} : memref<16x512xbf16, #tpu.memory_space<vmem>>, vector<16x128xbf16>,
    %c0_8 = arith.constant 0 : index
    %c0_9 = arith.constant 0 : index
    %c111 = arith.constant 111 : index
    %7 = vector.load %arg1[%c0_8, %c0_9, %c111] : memref<1x8x512xbf16, #tpu.memory_space<vmem>>, vector<1x8x256xbf16>
    %8 = vector.shape_cast %7 : vector<1x8x256xbf16> to vector<8x256xbf16>
    %9 = vector.extract_strided_slice %0 {offsets = [0, 0], sizes = [1, 256], strides = [1, 1]} : vector<3x256xbf16> to vector<1x256xbf16>
    %10 = vector.broadcast %9 : vector<1x256xbf16> to vector<8x256xbf16>
    %11 = arith.mulf %8, %10 : vector<8x256xbf16>
    %c0_10 = arith.constant 0 : index
    %c0_11 = arith.constant 0 : index
    %c0_12 = arith.constant 0 : index
    %12 = vector.load %arg2[%c0_10, %c0_11, %c0_12] : memref<9x16x8xbf16, #tpu.memory_space<vmem>>, vector<1x16x8xbf16>
    %13 = vector.shape_cast %12 : vector<1x16x8xbf16> to vector<16x8xbf16>
    %cst_13 = arith.constant dense<0.000000e+00> : vector<16x256xf32>
    %14 = tpu.matmul %13, %11, %cst_13 {dimension_numbers = #tpu.dot_dimension_numbers<[1], [0], [0], [1], [0, 0, 1, 1], [], []>} : vector<16x8xbf16>, vector<8x256xbf16>, vector<16x256xf32> -> vector<16x256xf32>
    %c0_14 = arith.constant 0 : index
    %c0_15 = arith.constant 0 : index
    %c112 = arith.constant 112 : index
    %15 = vector.load %arg1[%c0_14, %c0_15, %c112] : memref<1x8x512xbf16, #tpu.memory_space<vmem>>, vector<1x8x256xbf16>
    %16 = vector.shape_cast %15 : vector<1x8x256xbf16> to vector<8x256xbf16>
    %c1 = arith.constant 1 : index
    %c0_16 = arith.constant 0 : index
    %c0_17 = arith.constant 0 : index
    %17 = vector.load %arg2[%c1, %c0_16, %c0_17] : memref<9x16x8xbf16, #tpu.memory_space<vmem>>, vector<1x16x8xbf16>
    %18 = vector.shape_cast %17 : vector<1x16x8xbf16> to vector<16x8xbf16>
    %cst_18 = arith.constant dense<0.000000e+00> : vector<16x256xf32>
    %19 = tpu.matmul %18, %16, %cst_18 {dimension_numbers = #tpu.dot_dimension_numbers<[1], [0], [0], [1], [0, 0, 1, 1], [], []>} : vector<16x8xbf16>, vector<8x256xbf16>, vector<16x256xf32> -> vector<16x256xf32>
    %20 = arith.addf %14, %19 : vector<16x256xf32>
    %c0_19 = arith.constant 0 : index
    %c0_20 = arith.constant 0 : index
    %c113 = arith.constant 113 : index
    %21 = vector.load %arg1[%c0_19, %c0_20, %c113] : memref<1x8x512xbf16, #tpu.memory_space<vmem>>, vector<1x8x256xbf16>
    %22 = vector.shape_cast %21 : vector<1x8x256xbf16> to vector<8x256xbf16>
    %23 = vector.extract_strided_slice %0 {offsets = [2, 0], sizes = [1, 256], strides = [1, 1]} : vector<3x256xbf16> to vector<1x256xbf16>
    %24 = vector.broadcast %23 : vector<1x256xbf16> to vector<8x256xbf16>
    %25 = arith.mulf %22, %24 : vector<8x256xbf16>
    %c2 = arith.constant 2 : index
    %c0_21 = arith.constant 0 : index
    %c0_22 = arith.constant 0 : index
    %26 = vector.load %arg2[%c2, %c0_21, %c0_22] : memref<9x16x8xbf16, #tpu.memory_space<vmem>>, vector<1x16x8xbf16>
    %27 = vector.shape_cast %26 : vector<1x16x8xbf16> to vector<16x8xbf16>
    %cst_23 = arith.constant dense<0.000000e+00> : vector<16x256xf32>
    %28 = tpu.matmul %27, %25, %cst_23 {dimension_numbers = #tpu.dot_dimension_numbers<[1], [0], [0], [1], [0, 0, 1, 1], [], []>} : vector<16x8xbf16>, vector<8x256xbf16>, vector<16x256xf32> -> vector<16x256xf32>
    %29 = arith.addf %20, %28 : vector<16x256xf32>
    %c0_24 = arith.constant 0 : index
    %c0_25 = arith.constant 0 : index
    %c127 = arith.constant 127 : index
    %30 = vector.load %arg1[%c0_24, %c0_25, %c127] : memref<1x8x512xbf16, #tpu.memory_space<vmem>>, vector<1x8x256xbf16>
    %31 = vector.shape_cast %30 : vector<1x8x256xbf16> to vector<8x256xbf16>
    %32 = vector.extract_strided_slice %0 {offsets = [0, 0], sizes = [1, 256], strides = [1, 1]} : vector<3x256xbf16> to vector<1x256xbf16>
    %33 = vector.broadcast %32 : vector<1x256xbf16> to vector<8x256xbf16>
    %34 = arith.mulf %31, %33 : vector<8x256xbf16>
    %c3 = arith.constant 3 : index
    %c0_26 = arith.constant 0 : index
    %c0_27 = arith.constant 0 : index
    %35 = vector.load %arg2[%c3, %c0_26, %c0_27] : memref<9x16x8xbf16, #tpu.memory_space<vmem>>, vector<1x16x8xbf16>
    %36 = vector.shape_cast %35 : vector<1x16x8xbf16> to vector<16x8xbf16>
    %cst_28 = arith.constant dense<0.000000e+00> : vector<16x256xf32>
    %37 = tpu.matmul %36, %34, %cst_28 {dimension_numbers = #tpu.dot_dimension_numbers<[1], [0], [0], [1], [0, 0, 1, 1], [], []>} : vector<16x8xbf16>, vector<8x256xbf16>, vector<16x256xf32> -> vector<16x256xf32>
    %38 = arith.addf %29, %37 : vector<16x256xf32>
    %c0_29 = arith.constant 0 : index
    %c0_30 = arith.constant 0 : index
    %c128 = arith.constant 128 : index
    %39 = vector.load %arg1[%c0_29, %c0_30, %c128] : memref<1x8x512xbf16, #tpu.memory_space<vmem>>, vector<1x8x256xbf16>
    %40 = vector.shape_cast %39 : vector<1x8x256xbf16> to vector<8x256xbf16>
    %c4 = arith.constant 4 : index
    %c0_31 = arith.constant 0 : index
    %c0_32 = arith.constant 0 : index
    %41 = vector.load %arg2[%c4, %c0_31, %c0_32] : memref<9x16x8xbf16, #tpu.memory_space<vmem>>, vector<1x16x8xbf16>
    %42 = vector.shape_cast %41 : vector<1x16x8xbf16> to vector<16x8xbf16>
    %cst_33 = arith.constant dense<0.000000e+00> : vector<16x256xf32>
    %43 = tpu.matmul %42, %40, %cst_33 {dimension_numbers = #tpu.dot_dimension_numbers<[1], [0], [0], [1], [0, 0, 1, 1], [], []>} : vector<16x8xbf16>, vector<8x256xbf16>, vector<16x256xf32> -> vector<16x256xf32>
    %44 = arith.addf %38, %43 : vector<16x256xf32>
    %c0_34 = arith.constant 0 : index
    %c0_35 = arith.constant 0 : index
    %c129 = arith.constant 129 : index
    %45 = vector.load %arg1[%c0_34, %c0_35, %c129] : memref<1x8x512xbf16, #tpu.memory_space<vmem>>, vector<1x8x256xbf16>
    %46 = vector.shape_cast %45 : vector<1x8x256xbf16> to vector<8x256xbf16>
    %47 = vector.extract_strided_slice %0 {offsets = [2, 0], sizes = [1, 256], strides = [1, 1]} : vector<3x256xbf16> to vector<1x256xbf16>
    %48 = vector.broadcast %47 : vector<1x256xbf16> to vector<8x256xbf16>
    %49 = arith.mulf %46, %48 : vector<8x256xbf16>
    %c5 = arith.constant 5 : index
    %c0_36 = arith.constant 0 : index
    %c0_37 = arith.constant 0 : index
    %50 = vector.load %arg2[%c5, %c0_36, %c0_37] : memref<9x16x8xbf16, #tpu.memory_space<vmem>>, vector<1x16x8xbf16>
    %51 = vector.shape_cast %50 : vector<1x16x8xbf16> to vector<16x8xbf16>
    %cst_38 = arith.constant dense<0.000000e+00> : vector<16x256xf32>
    %52 = tpu.matmul %51, %49, %cst_38 {dimension_numbers = #tpu.dot_dimension_numbers<[1], [0], [0], [1], [0, 0, 1, 1], [], []>} : vector<16x8xbf16>, vector<8x256xbf16>, vector<16x256xf32> -> vector<16x256xf32>
    %53 = arith.addf %44, %52 : vector<16x256xf32>
    %c0_39 = arith.constant 0 : index
    %c0_40 = arith.constant 0 : index
    %c143 = arith.constant 143 : index
    %54 = vector.load %arg1[%c0_39, %c0_40, %c143] : memref<1x8x512xbf16, #tpu.memory_space<vmem>>, vector<1x8x256xbf16>
    %55 = vector.shape_cast %54 : vector<1x8x256xbf16> to vector<8x256xbf16>
    %56 = vector.extract_strided_slice %0 {offsets = [0, 0], sizes = [1, 256], strides = [1, 1]} : vector<3x256xbf16> to vector<1x256xbf16>
    %57 = vector.broadcast %56 : vector<1x256xbf16> to vector<8x256xbf16>
    %58 = arith.mulf %55, %57 : vector<8x256xbf16>
    %c6 = arith.constant 6 : index
    %c0_41 = arith.constant 0 : index
    %c0_42 = arith.constant 0 : index
    %59 = vector.load %arg2[%c6, %c0_41, %c0_42] : memref<9x16x8xbf16, #tpu.memory_space<vmem>>, vector<1x16x8xbf16>
    %60 = vector.shape_cast %59 : vector<1x16x8xbf16> to vector<16x8xbf16>
    %cst_43 = arith.constant dense<0.000000e+00> : vector<16x256xf32>
    %61 = tpu.matmul %60, %58, %cst_43 {dimension_numbers = #tpu.dot_dimension_numbers<[1], [0], [0], [1], [0, 0, 1, 1], [], []>} : vector<16x8xbf16>, vector<8x256xbf16>, vector<16x256xf32> -> vector<16x256xf32>
    %62 = arith.addf %53, %61 : vector<16x256xf32>
    %c0_44 = arith.constant 0 : index
    %c0_45 = arith.constant 0 : index
    %c144 = arith.constant 144 : index
    %63 = vector.load %arg1[%c0_44, %c0_45, %c144] : memref<1x8x512xbf16, #tpu.memory_space<vmem>>, vector<1x8x256xbf16>
    %64 = vector.shape_cast %63 : vector<1x8x256xbf16> to vector<8x256xbf16>
    %c7 = arith.constant 7 : index
    %c0_46 = arith.constant 0 : index
    %c0_47 = arith.constant 0 : index
    %65 = vector.load %arg2[%c7, %c0_46, %c0_47] : memref<9x16x8xbf16, #tpu.memory_space<vmem>>, vector<1x16x8xbf16>
    %66 = vector.shape_cast %65 : vector<1x16x8xbf16> to vector<16x8xbf16>
    %cst_48 = arith.constant dense<0.000000e+00> : vector<16x256xf32>
    %67 = tpu.matmul %66, %64, %cst_48 {dimension_numbers = #tpu.dot_dimension_numbers<[1], [0], [0], [1], [0, 0, 1, 1], [], []>} : vector<16x8xbf16>, vector<8x256xbf16>, vector<16x256xf32> -> vector<16x256xf32>
    %68 = arith.addf %62, %67 : vector<16x256xf32>
    %c0_49 = arith.constant 0 : index
    %c0_50 = arith.constant 0 : index
    %c145 = arith.constant 145 : index
    %69 = vector.load %arg1[%c0_49, %c0_50, %c145] : memref<1x8x512xbf16, #tpu.memory_space<vmem>>, vector<1x8x256xbf16>
    %70 = vector.shape_cast %69 : vector<1x8x256xbf16> to vector<8x256xbf16>
    %71 = vector.extract_strided_slice %0 {offsets = [2, 0], sizes = [1, 256], strides = [1, 1]} : vector<3x256xbf16> to vector<1x256xbf16>
    %72 = vector.broadcast %71 : vector<1x256xbf16> to vector<8x256xbf16>
    %73 = arith.mulf %70, %72 : vector<8x256xbf16>
    %c8 = arith.constant 8 : index
    %c0_51 = arith.constant 0 : index
    %c0_52 = arith.constant 0 : index
    %74 = vector.load %arg2[%c8, %c0_51, %c0_52] : memref<9x16x8xbf16, #tpu.memory_space<vmem>>, vector<1x16x8xbf16>
    %75 = vector.shape_cast %74 : vector<1x16x8xbf16> to vector<16x8xbf16>
    %cst_53 = arith.constant dense<0.000000e+00> : vector<16x256xf32>
    %76 = tpu.matmul %75, %73, %cst_53 {dimension_numbers = #tpu.dot_dimension_numbers<[1], [0], [0], [1], [0, 0, 1, 1], [], []>} : vector<16x8xbf16>, vector<8x256xbf16>, vector<16x256xf32> -> vector<16x256xf32>
    %77 = arith.addf %68, %76 : vector<16x256xf32>
    %c0_54 = arith.constant 0 : index
    %c0_55 = arith.constant 0 : index
    %78 = vector.load %arg5[%c0_54, %c0_55] : memref<16x3xf32, #tpu.memory_space<vmem>>, vector<16x1xf32>
    %c0_56 = arith.constant 0 : index
    %c0_57 = arith.constant 0 : index
    %79 = vector.load %arg6[%c0_56, %c0_57] : memref<16x3xf32, #tpu.memory_space<vmem>>, vector<16x1xf32>
    %c0_58 = arith.constant 0 : index
    %c0_59 = arith.constant 0 : index
    %80 = vector.load %arg7[%c0_58, %c0_59] : memref<16x3xf32, #tpu.memory_space<vmem>>, vector<16x1xf32>
    %81 = arith.mulf %77, %77 : vector<16x256xf32>
    %82 = tpu.concatenate %77, %81 in 0 : vector<16x256xf32>, vector<16x256xf32> -> vector<32x256xf32>
    %cst_60 = arith.constant dense<0.000000e+00> : vector<32x1xf32>
    %83 = tpu.matmul %82, %2, %cst_60 {dimension_numbers = #tpu.dot_dimension_numbers<[1], [0], [0], [1], [0, 0, 1, 1], [], []>} : vector<32x256xf32>, vector<256x1xf32>, vector<32x1xf32> -> vector<32x1xf32>
    %84 = vector.extract_strided_slice %83 {offsets = [0, 0], sizes = [16, 1], strides = [1, 1]} : vector<32x1xf32> to vector<16x1xf32>
    %85 = vector.extract_strided_slice %83 {offsets = [16, 0], sizes = [16, 1], strides = [1, 1]} : vector<32x1xf32> to vector<16x1xf32>
    %cst_61 = arith.constant 2.560000e+02 : f32
    %86 = vector.broadcast %cst_61 : f32 to vector<16x1xf32>
    %87 = arith.mulf %86, %78 : vector<16x1xf32>
    %88 = arith.addf %84, %87 : vector<16x1xf32>
    %cst_62 = arith.constant 2.000000e+00 : f32
    %89 = vector.broadcast %cst_62 : f32 to vector<16x1xf32>
    %90 = arith.mulf %89, %78 : vector<16x1xf32>
    %91 = arith.mulf %90, %84 : vector<16x1xf32>
    %92 = arith.addf %85, %91 : vector<16x1xf32>
    %cst_63 = arith.constant 2.560000e+02 : f32
    %93 = vector.broadcast %cst_63 : f32 to vector<16x1xf32>
    %94 = arith.mulf %93, %78 : vector<16x1xf32>
    %95 = arith.mulf %94, %78 : vector<16x1xf32>
    %96 = arith.addf %92, %95 : vector<16x1xf32>
    %97 = tpu.concatenate %88, %96 in 1 : vector<16x1xf32>, vector<16x1xf32> -> vector<16x2xf32>
    %cst_64 = arith.constant dense<0.000000e+00> : vector<16x2xf32>
    %98 = tpu.matmul %1, %97, %cst_64 {dimension_numbers = #tpu.dot_dimension_numbers<[1], [0], [0], [1], [0, 0, 1, 1], [], []>} : vector<16x16xf32>, vector<16x2xf32>, vector<16x2xf32> -> vector<16x2xf32>
    %99 = vector.extract_strided_slice %98 {offsets = [0, 0], sizes = [16, 1], strides = [1, 1]} : vector<16x2xf32> to vector<16x1xf32>
    %100 = vector.extract_strided_slice %98 {offsets = [0, 1], sizes = [16, 1], strides = [1, 1]} : vector<16x2xf32> to vector<16x1xf32>
    %101 = arith.mulf %99, %99 : vector<16x1xf32>
    %102 = arith.subf %100, %101 : vector<16x1xf32>
    %cst_65 = arith.constant 0.000000e+00 : f32
    %103 = vector.broadcast %cst_65 : f32 to vector<16x1xf32>
    %104 = arith.maximumf %102, %103 : vector<16x1xf32>
    %cst_66 = arith.constant 9.99999974E-6 : f32
    %105 = vector.broadcast %cst_66 : f32 to vector<16x1xf32>
    %106 = arith.addf %104, %105 : vector<16x1xf32>
    %107 = math.rsqrt %106 : vector<16x1xf32>
    %108 = arith.mulf %107, %79 : vector<16x1xf32>
    %109 = arith.subf %78, %99 : vector<16x1xf32>
    %110 = arith.mulf %109, %108 : vector<16x1xf32>
    %111 = arith.addf %110, %80 : vector<16x1xf32>
    %112 = vector.broadcast %108 : vector<16x1xf32> to vector<16x256xf32>
    %113 = arith.mulf %77, %112 : vector<16x256xf32>
    %114 = vector.broadcast %111 : vector<16x1xf32> to vector<16x256xf32>
    %115 = arith.addf %113, %114 : vector<16x256xf32>
    %cst_67 = arith.constant 0.000000e+00 : f32
    %116 = vector.broadcast %cst_67 : f32 to vector<16x256xf32>
    %117 = arith.maximumf %115, %116 : vector<16x256xf32>
    %118 = arith.truncf %117 : vector<16x256xf32> to vector<16x256xbf16>
    %c0_68 = arith.constant 0 : index
    %c128_69 = arith.constant 128 : index
    %119 = vector.load %arg11[%c0_68, %c128_69] : memref<16x512xbf16, #tpu.memory_space<vmem>>, vector<16x256xbf16>
    tpu.vector_store %arg11[%c0_68, %c128_69], %118 {strides = array<i32>} : memref<16x512xbf16, #tpu.memory_space<vmem>>, vector<16x256xbf16>,
    %c0_70 = arith.constant 0 : index
    %c111_71 = arith.constant 111 : index
    %120 = vector.load %arg11[%c0_70, %c111_71] : memref<16x512xbf16, #tpu.memory_space<vmem>>, vector<16x256xbf16>
    %121 = vector.extract_strided_slice %0 {offsets = [0, 0], sizes = [1, 256], strides = [1, 1]} : vector<3x256xbf16> to vector<1x256xbf16>
    %122 = vector.broadcast %121 : vector<1x256xbf16> to vector<16x256xbf16>
    %123 = arith.mulf %120, %122 : vector<16x256xbf16>
    %c0_72 = arith.constant 0 : index
    %c0_73 = arith.constant 0 : index
    %c0_74 = arith.constant 0 : index
    %124 = vector.load %arg3[%c0_72, %c0_73, %c0_74] : memref<9x16x16xbf16, #tpu.memory_space<vmem>>, vector<1x16x16xbf16>
    %125 = vector.shape_cast %124 : vector<1x16x16xbf16> to vector<16x16xbf16>
    %cst_75 = arith.constant dense<0.000000e+00> : vector<16x256xf32>
    %126 = tpu.matmul %125, %123, %cst_75 {dimension_numbers = #tpu.dot_dimension_numbers<[1], [0], [0], [1], [0, 0, 1, 1], [], []>} : vector<16x16xbf16>, vector<16x256xbf16>, vector<16x256xf32> -> vector<16x256xf32>
    %c0_76 = arith.constant 0 : index
    %c112_77 = arith.constant 112 : index
    %127 = vector.load %arg11[%c0_76, %c112_77] : memref<16x512xbf16, #tpu.memory_space<vmem>>, vector<16x256xbf16>
    %c1_78 = arith.constant 1 : index
    %c0_79 = arith.constant 0 : index
    %c0_80 = arith.constant 0 : index
    %128 = vector.load %arg3[%c1_78, %c0_79, %c0_80] : memref<9x16x16xbf16, #tpu.memory_space<vmem>>, vector<1x16x16xbf16>
    %129 = vector.shape_cast %128 : vector<1x16x16xbf16> to vector<16x16xbf16>
    %cst_81 = arith.constant dense<0.000000e+00> : vector<16x256xf32>
    %130 = tpu.matmul %129, %127, %cst_81 {dimension_numbers = #tpu.dot_dimension_numbers<[1], [0], [0], [1], [0, 0, 1, 1], [], []>} : vector<16x16xbf16>, vector<16x256xbf16>, vector<16x256xf32> -> vector<16x256xf32>
    %131 = arith.addf %126, %130 : vector<16x256xf32>
    %c0_82 = arith.constant 0 : index
    %c113_83 = arith.constant 113 : index
    %132 = vector.load %arg11[%c0_82, %c113_83] : memref<16x512xbf16, #tpu.memory_space<vmem>>, vector<16x256xbf16>
    %133 = vector.extract_strided_slice %0 {offsets = [2, 0], sizes = [1, 256], strides = [1, 1]} : vector<3x256xbf16> to vector<1x256xbf16>
    %134 = vector.broadcast %133 : vector<1x256xbf16> to vector<16x256xbf16>
    %135 = arith.mulf %132, %134 : vector<16x256xbf16>
    %c2_84 = arith.constant 2 : index
    %c0_85 = arith.constant 0 : index
    %c0_86 = arith.constant 0 : index
    %136 = vector.load %arg3[%c2_84, %c0_85, %c0_86] : memref<9x16x16xbf16, #tpu.memory_space<vmem>>, vector<1x16x16xbf16>
    %137 = vector.shape_cast %136 : vector<1x16x16xbf16> to vector<16x16xbf16>
    %cst_87 = arith.constant dense<0.000000e+00> : vector<16x256xf32>
    %138 = tpu.matmul %137, %135, %cst_87 {dimension_numbers = #tpu.dot_dimension_numbers<[1], [0], [0], [1], [0, 0, 1, 1], [], []>} : vector<16x16xbf16>, vector<16x256xbf16>, vector<16x256xf32> -> vector<16x256xf32>
    %139 = arith.addf %131, %138 : vector<16x256xf32>
    %c0_88 = arith.constant 0 : index
    %c127_89 = arith.constant 127 : index
    %140 = vector.load %arg11[%c0_88, %c127_89] : memref<16x512xbf16, #tpu.memory_space<vmem>>, vector<16x256xbf16>
    %141 = vector.extract_strided_slice %0 {offsets = [0, 0], sizes = [1, 256], strides = [1, 1]} : vector<3x256xbf16> to vector<1x256xbf16>
    %142 = vector.broadcast %141 : vector<1x256xbf16> to vector<16x256xbf16>
    %143 = arith.mulf %140, %142 : vector<16x256xbf16>
    %c3_90 = arith.constant 3 : index
    %c0_91 = arith.constant 0 : index
    %c0_92 = arith.constant 0 : index
    %144 = vector.load %arg3[%c3_90, %c0_91, %c0_92] : memref<9x16x16xbf16, #tpu.memory_space<vmem>>, vector<1x16x16xbf16>
    %145 = vector.shape_cast %144 : vector<1x16x16xbf16> to vector<16x16xbf16>
    %cst_93 = arith.constant dense<0.000000e+00> : vector<16x256xf32>
    %146 = tpu.matmul %145, %143, %cst_93 {dimension_numbers = #tpu.dot_dimension_numbers<[1], [0], [0], [1], [0, 0, 1, 1], [], []>} : vector<16x16xbf16>, vector<16x256xbf16>, vector<16x256xf32> -> vector<16x256xf32>
    %147 = arith.addf %139, %146 : vector<16x256xf32>
    %c0_94 = arith.constant 0 : index
    %c128_95 = arith.constant 128 : index
    %148 = vector.load %arg11[%c0_94, %c128_95] : memref<16x512xbf16, #tpu.memory_space<vmem>>, vector<16x256xbf16>
    %c4_96 = arith.constant 4 : index
    %c0_97 = arith.constant 0 : index
    %c0_98 = arith.constant 0 : index
    %149 = vector.load %arg3[%c4_96, %c0_97, %c0_98] : memref<9x16x16xbf16, #tpu.memory_space<vmem>>, vector<1x16x16xbf16>
    %150 = vector.shape_cast %149 : vector<1x16x16xbf16> to vector<16x16xbf16>
    %cst_99 = arith.constant dense<0.000000e+00> : vector<16x256xf32>
    %151 = tpu.matmul %150, %148, %cst_99 {dimension_numbers = #tpu.dot_dimension_numbers<[1], [0], [0], [1], [0, 0, 1, 1], [], []>} : vector<16x16xbf16>, vector<16x256xbf16>, vector<16x256xf32> -> vector<16x256xf32>
    %152 = arith.addf %147, %151 : vector<16x256xf32>
    %c0_100 = arith.constant 0 : index
    %c129_101 = arith.constant 129 : index
    %153 = vector.load %arg11[%c0_100, %c129_101] : memref<16x512xbf16, #tpu.memory_space<vmem>>, vector<16x256xbf16>
    %154 = vector.extract_strided_slice %0 {offsets = [2, 0], sizes = [1, 256], strides = [1, 1]} : vector<3x256xbf16> to vector<1x256xbf16>
    %155 = vector.broadcast %154 : vector<1x256xbf16> to vector<16x256xbf16>
    %156 = arith.mulf %153, %155 : vector<16x256xbf16>
    %c5_102 = arith.constant 5 : index
    %c0_103 = arith.constant 0 : index
    %c0_104 = arith.constant 0 : index
    %157 = vector.load %arg3[%c5_102, %c0_103, %c0_104] : memref<9x16x16xbf16, #tpu.memory_space<vmem>>, vector<1x16x16xbf16>
    %158 = vector.shape_cast %157 : vector<1x16x16xbf16> to vector<16x16xbf16>
    %cst_105 = arith.constant dense<0.000000e+00> : vector<16x256xf32>
    %159 = tpu.matmul %158, %156, %cst_105 {dimension_numbers = #tpu.dot_dimension_numbers<[1], [0], [0], [1], [0, 0, 1, 1], [], []>} : vector<16x16xbf16>, vector<16x256xbf16>, vector<16x256xf32> -> vector<16x256xf32>
    %160 = arith.addf %152, %159 : vector<16x256xf32>
    %c0_106 = arith.constant 0 : index
    %c143_107 = arith.constant 143 : index
    %161 = vector.load %arg11[%c0_106, %c143_107] : memref<16x512xbf16, #tpu.memory_space<vmem>>, vector<16x256xbf16>
    %162 = vector.extract_strided_slice %0 {offsets = [0, 0], sizes = [1, 256], strides = [1, 1]} : vector<3x256xbf16> to vector<1x256xbf16>
    %163 = vector.broadcast %162 : vector<1x256xbf16> to vector<16x256xbf16>
    %164 = arith.mulf %161, %163 : vector<16x256xbf16>
    %c6_108 = arith.constant 6 : index
    %c0_109 = arith.constant 0 : index
    %c0_110 = arith.constant 0 : index
    %165 = vector.load %arg3[%c6_108, %c0_109, %c0_110] : memref<9x16x16xbf16, #tpu.memory_space<vmem>>, vector<1x16x16xbf16>
    %166 = vector.shape_cast %165 : vector<1x16x16xbf16> to vector<16x16xbf16>
    %cst_111 = arith.constant dense<0.000000e+00> : vector<16x256xf32>
    %167 = tpu.matmul %166, %164, %cst_111 {dimension_numbers = #tpu.dot_dimension_numbers<[1], [0], [0], [1], [0, 0, 1, 1], [], []>} : vector<16x16xbf16>, vector<16x256xbf16>, vector<16x256xf32> -> vector<16x256xf32>
    %168 = arith.addf %160, %167 : vector<16x256xf32>
    %c0_112 = arith.constant 0 : index
    %c144_113 = arith.constant 144 : index
    %169 = vector.load %arg11[%c0_112, %c144_113] : memref<16x512xbf16, #tpu.memory_space<vmem>>, vector<16x256xbf16>
    %c7_114 = arith.constant 7 : index
    %c0_115 = arith.constant 0 : index
    %c0_116 = arith.constant 0 : index
    %170 = vector.load %arg3[%c7_114, %c0_115, %c0_116] : memref<9x16x16xbf16, #tpu.memory_space<vmem>>, vector<1x16x16xbf16>
    %171 = vector.shape_cast %170 : vector<1x16x16xbf16> to vector<16x16xbf16>
    %cst_117 = arith.constant dense<0.000000e+00> : vector<16x256xf32>
    %172 = tpu.matmul %171, %169, %cst_117 {dimension_numbers = #tpu.dot_dimension_numbers<[1], [0], [0], [1], [0, 0, 1, 1], [], []>} : vector<16x16xbf16>, vector<16x256xbf16>, vector<16x256xf32> -> vector<16x256xf32>
    %173 = arith.addf %168, %172 : vector<16x256xf32>
    %c0_118 = arith.constant 0 : index
    %c145_119 = arith.constant 145 : index
    %174 = vector.load %arg11[%c0_118, %c145_119] : memref<16x512xbf16, #tpu.memory_space<vmem>>, vector<16x256xbf16>
    %175 = vector.extract_strided_slice %0 {offsets = [2, 0], sizes = [1, 256], strides = [1, 1]} : vector<3x256xbf16> to vector<1x256xbf16>
    %176 = vector.broadcast %175 : vector<1x256xbf16> to vector<16x256xbf16>
    %177 = arith.mulf %174, %176 : vector<16x256xbf16>
    %c8_120 = arith.constant 8 : index
    %c0_121 = arith.constant 0 : index
    %c0_122 = arith.constant 0 : index
    %178 = vector.load %arg3[%c8_120, %c0_121, %c0_122] : memref<9x16x16xbf16, #tpu.memory_space<vmem>>, vector<1x16x16xbf16>
    %179 = vector.shape_cast %178 : vector<1x16x16xbf16> to vector<16x16xbf16>
    %cst_123 = arith.constant dense<0.000000e+00> : vector<16x256xf32>
    %180 = tpu.matmul %179, %177, %cst_123 {dimension_numbers = #tpu.dot_dimension_numbers<[1], [0], [0], [1], [0, 0, 1, 1], [], []>} : vector<16x16xbf16>, vector<16x256xbf16>, vector<16x256xf32> -> vector<16x256xf32>
    %181 = arith.addf %173, %180 : vector<16x256xf32>
    %c0_124 = arith.constant 0 : index
    %c1_125 = arith.constant 1 : index
    %182 = vector.load %arg5[%c0_124, %c1_125] : memref<16x3xf32, #tpu.memory_space<vmem>>, vector<16x1xf32>
    %c0_126 = arith.constant 0 : index
    %c1_127 = arith.constant 1 : index
    %183 = vector.load %arg6[%c0_126, %c1_127] : memref<16x3xf32, #tpu.memory_space<vmem>>, vector<16x1xf32>
    %c0_128 = arith.constant 0 : index
    %c1_129 = arith.constant 1 : index
    %184 = vector.load %arg7[%c0_128, %c1_129] : memref<16x3xf32, #tpu.memory_space<vmem>>, vector<16x1xf32>
    %185 = arith.mulf %181, %181 : vector<16x256xf32>
    %186 = tpu.concatenate %181, %185 in 0 : vector<16x256xf32>, vector<16x256xf32> -> vector<32x256xf32>
    %cst_130 = arith.constant dense<0.000000e+00> : vector<32x1xf32>
    %187 = tpu.matmul %186, %2, %cst_130 {dimension_numbers = #tpu.dot_dimension_numbers<[1], [0], [0], [1], [0, 0, 1, 1], [], []>} : vector<32x256xf32>, vector<256x1xf32>, vector<32x1xf32> -> vector<32x1xf32>
    %188 = vector.extract_strided_slice %187 {offsets = [0, 0], sizes = [16, 1], strides = [1, 1]} : vector<32x1xf32> to vector<16x1xf32>
    %189 = vector.extract_strided_slice %187 {offsets = [16, 0], sizes = [16, 1], strides = [1, 1]} : vector<32x1xf32> to vector<16x1xf32>
    %cst_131 = arith.constant 2.560000e+02 : f32
    %190 = vector.broadcast %cst_131 : f32 to vector<16x1xf32>
    %191 = arith.mulf %190, %182 : vector<16x1xf32>
    %192 = arith.addf %188, %191 : vector<16x1xf32>
    %cst_132 = arith.constant 2.000000e+00 : f32
    %193 = vector.broadcast %cst_132 : f32 to vector<16x1xf32>
    %194 = arith.mulf %193, %182 : vector<16x1xf32>
    %195 = arith.mulf %194, %188 : vector<16x1xf32>
    %196 = arith.addf %189, %195 : vector<16x1xf32>
    %cst_133 = arith.constant 2.560000e+02 : f32
    %197 = vector.broadcast %cst_133 : f32 to vector<16x1xf32>
    %198 = arith.mulf %197, %182 : vector<16x1xf32>
    %199 = arith.mulf %198, %182 : vector<16x1xf32>
    %200 = arith.addf %196, %199 : vector<16x1xf32>
    %201 = tpu.concatenate %192, %200 in 1 : vector<16x1xf32>, vector<16x1xf32> -> vector<16x2xf32>
    %cst_134 = arith.constant dense<0.000000e+00> : vector<16x2xf32>
    %202 = tpu.matmul %1, %201, %cst_134 {dimension_numbers = #tpu.dot_dimension_numbers<[1], [0], [0], [1], [0, 0, 1, 1], [], []>} : vector<16x16xf32>, vector<16x2xf32>, vector<16x2xf32> -> vector<16x2xf32>
    %203 = vector.extract_strided_slice %202 {offsets = [0, 0], sizes = [16, 1], strides = [1, 1]} : vector<16x2xf32> to vector<16x1xf32>
    %204 = vector.extract_strided_slice %202 {offsets = [0, 1], sizes = [16, 1], strides = [1, 1]} : vector<16x2xf32> to vector<16x1xf32>
    %205 = arith.mulf %203, %203 : vector<16x1xf32>
    %206 = arith.subf %204, %205 : vector<16x1xf32>
    %cst_135 = arith.constant 0.000000e+00 : f32
    %207 = vector.broadcast %cst_135 : f32 to vector<16x1xf32>
    %208 = arith.maximumf %206, %207 : vector<16x1xf32>
    %cst_136 = arith.constant 9.99999974E-6 : f32
    %209 = vector.broadcast %cst_136 : f32 to vector<16x1xf32>
    %210 = arith.addf %208, %209 : vector<16x1xf32>
    %211 = math.rsqrt %210 : vector<16x1xf32>
    %212 = arith.mulf %211, %183 : vector<16x1xf32>
    %213 = arith.subf %182, %203 : vector<16x1xf32>
    %214 = arith.mulf %213, %212 : vector<16x1xf32>
    %215 = arith.addf %214, %184 : vector<16x1xf32>
    %216 = vector.broadcast %212 : vector<16x1xf32> to vector<16x256xf32>
    %217 = arith.mulf %181, %216 : vector<16x256xf32>
    %218 = vector.broadcast %215 : vector<16x1xf32> to vector<16x256xf32>
    %219 = arith.addf %217, %218 : vector<16x256xf32>
    %cst_137 = arith.constant 0.000000e+00 : f32
    %220 = vector.broadcast %cst_137 : f32 to vector<16x256xf32>
    %221 = arith.maximumf %219, %220 : vector<16x256xf32>
    %222 = arith.truncf %221 : vector<16x256xf32> to vector<16x256xbf16>
    %c0_138 = arith.constant 0 : index
    %c128_139 = arith.constant 128 : index
    %223 = vector.load %arg11[%c0_138, %c128_139] : memref<16x512xbf16, #tpu.memory_space<vmem>>, vector<16x256xbf16>
    tpu.vector_store %arg11[%c0_138, %c128_139], %222 {strides = array<i32>} : memref<16x512xbf16, #tpu.memory_space<vmem>>, vector<16x256xbf16>,
    %c0_140 = arith.constant 0 : index
    %c111_141 = arith.constant 111 : index
    %224 = vector.load %arg11[%c0_140, %c111_141] : memref<16x512xbf16, #tpu.memory_space<vmem>>, vector<16x256xbf16>
    %225 = vector.extract_strided_slice %0 {offsets = [0, 0], sizes = [1, 256], strides = [1, 1]} : vector<3x256xbf16> to vector<1x256xbf16>
    %226 = vector.broadcast %225 : vector<1x256xbf16> to vector<16x256xbf16>
    %227 = arith.mulf %224, %226 : vector<16x256xbf16>
    %c0_142 = arith.constant 0 : index
    %c0_143 = arith.constant 0 : index
    %c0_144 = arith.constant 0 : index
    %228 = vector.load %arg4[%c0_142, %c0_143, %c0_144] : memref<9x16x16xbf16, #tpu.memory_space<vmem>>, vector<1x16x16xbf16>
    %229 = vector.shape_cast %228 : vector<1x16x16xbf16> to vector<16x16xbf16>
    %cst_145 = arith.constant dense<0.000000e+00> : vector<16x256xf32>
    %230 = tpu.matmul %229, %227, %cst_145 {dimension_numbers = #tpu.dot_dimension_numbers<[1], [0], [0], [1], [0, 0, 1, 1], [], []>} : vector<16x16xbf16>, vector<16x256xbf16>, vector<16x256xf32> -> vector<16x256xf32>
    %c0_146 = arith.constant 0 : index
    %c112_147 = arith.constant 112 : index
    %231 = vector.load %arg11[%c0_146, %c112_147] : memref<16x512xbf16, #tpu.memory_space<vmem>>, vector<16x256xbf16>
    %c1_148 = arith.constant 1 : index
    %c0_149 = arith.constant 0 : index
    %c0_150 = arith.constant 0 : index
    %232 = vector.load %arg4[%c1_148, %c0_149, %c0_150] : memref<9x16x16xbf16, #tpu.memory_space<vmem>>, vector<1x16x16xbf16>
    %233 = vector.shape_cast %232 : vector<1x16x16xbf16> to vector<16x16xbf16>
    %cst_151 = arith.constant dense<0.000000e+00> : vector<16x256xf32>
    %234 = tpu.matmul %233, %231, %cst_151 {dimension_numbers = #tpu.dot_dimension_numbers<[1], [0], [0], [1], [0, 0, 1, 1], [], []>} : vector<16x16xbf16>, vector<16x256xbf16>, vector<16x256xf32> -> vector<16x256xf32>
    %235 = arith.addf %230, %234 : vector<16x256xf32>
    %c0_152 = arith.constant 0 : index
    %c113_153 = arith.constant 113 : index
    %236 = vector.load %arg11[%c0_152, %c113_153] : memref<16x512xbf16, #tpu.memory_space<vmem>>, vector<16x256xbf16>
    %237 = vector.extract_strided_slice %0 {offsets = [2, 0], sizes = [1, 256], strides = [1, 1]} : vector<3x256xbf16> to vector<1x256xbf16>
    %238 = vector.broadcast %237 : vector<1x256xbf16> to vector<16x256xbf16>
    %239 = arith.mulf %236, %238 : vector<16x256xbf16>
    %c2_154 = arith.constant 2 : index
    %c0_155 = arith.constant 0 : index
    %c0_156 = arith.constant 0 : index
    %240 = vector.load %arg4[%c2_154, %c0_155, %c0_156] : memref<9x16x16xbf16, #tpu.memory_space<vmem>>, vector<1x16x16xbf16>
    %241 = vector.shape_cast %240 : vector<1x16x16xbf16> to vector<16x16xbf16>
    %cst_157 = arith.constant dense<0.000000e+00> : vector<16x256xf32>
    %242 = tpu.matmul %241, %239, %cst_157 {dimension_numbers = #tpu.dot_dimension_numbers<[1], [0], [0], [1], [0, 0, 1, 1], [], []>} : vector<16x16xbf16>, vector<16x256xbf16>, vector<16x256xf32> -> vector<16x256xf32>
    %243 = arith.addf %235, %242 : vector<16x256xf32>
    %c0_158 = arith.constant 0 : index
    %c127_159 = arith.constant 127 : index
    %244 = vector.load %arg11[%c0_158, %c127_159] : memref<16x512xbf16, #tpu.memory_space<vmem>>, vector<16x256xbf16>
    %245 = vector.extract_strided_slice %0 {offsets = [0, 0], sizes = [1, 256], strides = [1, 1]} : vector<3x256xbf16> to vector<1x256xbf16>
    %246 = vector.broadcast %245 : vector<1x256xbf16> to vector<16x256xbf16>
    %247 = arith.mulf %244, %246 : vector<16x256xbf16>
    %c3_160 = arith.constant 3 : index
    %c0_161 = arith.constant 0 : index
    %c0_162 = arith.constant 0 : index
    %248 = vector.load %arg4[%c3_160, %c0_161, %c0_162] : memref<9x16x16xbf16, #tpu.memory_space<vmem>>, vector<1x16x16xbf16>
    %249 = vector.shape_cast %248 : vector<1x16x16xbf16> to vector<16x16xbf16>
    %cst_163 = arith.constant dense<0.000000e+00> : vector<16x256xf32>
    %250 = tpu.matmul %249, %247, %cst_163 {dimension_numbers = #tpu.dot_dimension_numbers<[1], [0], [0], [1], [0, 0, 1, 1], [], []>} : vector<16x16xbf16>, vector<16x256xbf16>, vector<16x256xf32> -> vector<16x256xf32>
    %251 = arith.addf %243, %250 : vector<16x256xf32>
    %c0_164 = arith.constant 0 : index
    %c128_165 = arith.constant 128 : index
    %252 = vector.load %arg11[%c0_164, %c128_165] : memref<16x512xbf16, #tpu.memory_space<vmem>>, vector<16x256xbf16>
    %c4_166 = arith.constant 4 : index
    %c0_167 = arith.constant 0 : index
    %c0_168 = arith.constant 0 : index
    %253 = vector.load %arg4[%c4_166, %c0_167, %c0_168] : memref<9x16x16xbf16, #tpu.memory_space<vmem>>, vector<1x16x16xbf16>
    %254 = vector.shape_cast %253 : vector<1x16x16xbf16> to vector<16x16xbf16>
    %cst_169 = arith.constant dense<0.000000e+00> : vector<16x256xf32>
    %255 = tpu.matmul %254, %252, %cst_169 {dimension_numbers = #tpu.dot_dimension_numbers<[1], [0], [0], [1], [0, 0, 1, 1], [], []>} : vector<16x16xbf16>, vector<16x256xbf16>, vector<16x256xf32> -> vector<16x256xf32>
    %256 = arith.addf %251, %255 : vector<16x256xf32>
    %c0_170 = arith.constant 0 : index
    %c129_171 = arith.constant 129 : index
    %257 = vector.load %arg11[%c0_170, %c129_171] : memref<16x512xbf16, #tpu.memory_space<vmem>>, vector<16x256xbf16>
    %258 = vector.extract_strided_slice %0 {offsets = [2, 0], sizes = [1, 256], strides = [1, 1]} : vector<3x256xbf16> to vector<1x256xbf16>
    %259 = vector.broadcast %258 : vector<1x256xbf16> to vector<16x256xbf16>
    %260 = arith.mulf %257, %259 : vector<16x256xbf16>
    %c5_172 = arith.constant 5 : index
    %c0_173 = arith.constant 0 : index
    %c0_174 = arith.constant 0 : index
    %261 = vector.load %arg4[%c5_172, %c0_173, %c0_174] : memref<9x16x16xbf16, #tpu.memory_space<vmem>>, vector<1x16x16xbf16>
    %262 = vector.shape_cast %261 : vector<1x16x16xbf16> to vector<16x16xbf16>
    %cst_175 = arith.constant dense<0.000000e+00> : vector<16x256xf32>
    %263 = tpu.matmul %262, %260, %cst_175 {dimension_numbers = #tpu.dot_dimension_numbers<[1], [0], [0], [1], [0, 0, 1, 1], [], []>} : vector<16x16xbf16>, vector<16x256xbf16>, vector<16x256xf32> -> vector<16x256xf32>
    %264 = arith.addf %256, %263 : vector<16x256xf32>
    %c0_176 = arith.constant 0 : index
    %c143_177 = arith.constant 143 : index
    %265 = vector.load %arg11[%c0_176, %c143_177] : memref<16x512xbf16, #tpu.memory_space<vmem>>, vector<16x256xbf16>
    %266 = vector.extract_strided_slice %0 {offsets = [0, 0], sizes = [1, 256], strides = [1, 1]} : vector<3x256xbf16> to vector<1x256xbf16>
    %267 = vector.broadcast %266 : vector<1x256xbf16> to vector<16x256xbf16>
    %268 = arith.mulf %265, %267 : vector<16x256xbf16>
    %c6_178 = arith.constant 6 : index
    %c0_179 = arith.constant 0 : index
    %c0_180 = arith.constant 0 : index
    %269 = vector.load %arg4[%c6_178, %c0_179, %c0_180] : memref<9x16x16xbf16, #tpu.memory_space<vmem>>, vector<1x16x16xbf16>
    %270 = vector.shape_cast %269 : vector<1x16x16xbf16> to vector<16x16xbf16>
    %cst_181 = arith.constant dense<0.000000e+00> : vector<16x256xf32>
    %271 = tpu.matmul %270, %268, %cst_181 {dimension_numbers = #tpu.dot_dimension_numbers<[1], [0], [0], [1], [0, 0, 1, 1], [], []>} : vector<16x16xbf16>, vector<16x256xbf16>, vector<16x256xf32> -> vector<16x256xf32>
    %272 = arith.addf %264, %271 : vector<16x256xf32>
    %c0_182 = arith.constant 0 : index
    %c144_183 = arith.constant 144 : index
    %273 = vector.load %arg11[%c0_182, %c144_183] : memref<16x512xbf16, #tpu.memory_space<vmem>>, vector<16x256xbf16>
    %c7_184 = arith.constant 7 : index
    %c0_185 = arith.constant 0 : index
    %c0_186 = arith.constant 0 : index
    %274 = vector.load %arg4[%c7_184, %c0_185, %c0_186] : memref<9x16x16xbf16, #tpu.memory_space<vmem>>, vector<1x16x16xbf16>
    %275 = vector.shape_cast %274 : vector<1x16x16xbf16> to vector<16x16xbf16>
    %cst_187 = arith.constant dense<0.000000e+00> : vector<16x256xf32>
    %276 = tpu.matmul %275, %273, %cst_187 {dimension_numbers = #tpu.dot_dimension_numbers<[1], [0], [0], [1], [0, 0, 1, 1], [], []>} : vector<16x16xbf16>, vector<16x256xbf16>, vector<16x256xf32> -> vector<16x256xf32>
    %277 = arith.addf %272, %276 : vector<16x256xf32>
    %c0_188 = arith.constant 0 : index
    %c145_189 = arith.constant 145 : index
    %278 = vector.load %arg11[%c0_188, %c145_189] : memref<16x512xbf16, #tpu.memory_space<vmem>>, vector<16x256xbf16>
    %279 = vector.extract_strided_slice %0 {offsets = [2, 0], sizes = [1, 256], strides = [1, 1]} : vector<3x256xbf16> to vector<1x256xbf16>
    %280 = vector.broadcast %279 : vector<1x256xbf16> to vector<16x256xbf16>
    %281 = arith.mulf %278, %280 : vector<16x256xbf16>
    %c8_190 = arith.constant 8 : index
    %c0_191 = arith.constant 0 : index
    %c0_192 = arith.constant 0 : index
    %282 = vector.load %arg4[%c8_190, %c0_191, %c0_192] : memref<9x16x16xbf16, #tpu.memory_space<vmem>>, vector<1x16x16xbf16>
    %283 = vector.shape_cast %282 : vector<1x16x16xbf16> to vector<16x16xbf16>
    %cst_193 = arith.constant dense<0.000000e+00> : vector<16x256xf32>
    %284 = tpu.matmul %283, %281, %cst_193 {dimension_numbers = #tpu.dot_dimension_numbers<[1], [0], [0], [1], [0, 0, 1, 1], [], []>} : vector<16x16xbf16>, vector<16x256xbf16>, vector<16x256xf32> -> vector<16x256xf32>
    %285 = arith.addf %277, %284 : vector<16x256xf32>
    %c0_194 = arith.constant 0 : index
    %c2_195 = arith.constant 2 : index
    %286 = vector.load %arg5[%c0_194, %c2_195] : memref<16x3xf32, #tpu.memory_space<vmem>>, vector<16x1xf32>
    %c0_196 = arith.constant 0 : index
    %c2_197 = arith.constant 2 : index
    %287 = vector.load %arg6[%c0_196, %c2_197] : memref<16x3xf32, #tpu.memory_space<vmem>>, vector<16x1xf32>
    %c0_198 = arith.constant 0 : index
    %c2_199 = arith.constant 2 : index
    %288 = vector.load %arg7[%c0_198, %c2_199] : memref<16x3xf32, #tpu.memory_space<vmem>>, vector<16x1xf32>
    %289 = arith.mulf %285, %285 : vector<16x256xf32>
    %290 = tpu.concatenate %285, %289 in 0 : vector<16x256xf32>, vector<16x256xf32> -> vector<32x256xf32>
    %cst_200 = arith.constant dense<0.000000e+00> : vector<32x1xf32>
    %291 = tpu.matmul %290, %2, %cst_200 {dimension_numbers = #tpu.dot_dimension_numbers<[1], [0], [0], [1], [0, 0, 1, 1], [], []>} : vector<32x256xf32>, vector<256x1xf32>, vector<32x1xf32> -> vector<32x1xf32>
    %292 = vector.extract_strided_slice %291 {offsets = [0, 0], sizes = [16, 1], strides = [1, 1]} : vector<32x1xf32> to vector<16x1xf32>
    %293 = vector.extract_strided_slice %291 {offsets = [16, 0], sizes = [16, 1], strides = [1, 1]} : vector<32x1xf32> to vector<16x1xf32>
    %cst_201 = arith.constant 2.560000e+02 : f32
    %294 = vector.broadcast %cst_201 : f32 to vector<16x1xf32>
    %295 = arith.mulf %294, %286 : vector<16x1xf32>
    %296 = arith.addf %292, %295 : vector<16x1xf32>
    %cst_202 = arith.constant 2.000000e+00 : f32
    %297 = vector.broadcast %cst_202 : f32 to vector<16x1xf32>
    %298 = arith.mulf %297, %286 : vector<16x1xf32>
    %299 = arith.mulf %298, %292 : vector<16x1xf32>
    %300 = arith.addf %293, %299 : vector<16x1xf32>
    %cst_203 = arith.constant 2.560000e+02 : f32
    %301 = vector.broadcast %cst_203 : f32 to vector<16x1xf32>
    %302 = arith.mulf %301, %286 : vector<16x1xf32>
    %303 = arith.mulf %302, %286 : vector<16x1xf32>
    %304 = arith.addf %300, %303 : vector<16x1xf32>
    %305 = tpu.concatenate %296, %304 in 1 : vector<16x1xf32>, vector<16x1xf32> -> vector<16x2xf32>
    %cst_204 = arith.constant dense<0.000000e+00> : vector<16x2xf32>
    %306 = tpu.matmul %1, %305, %cst_204 {dimension_numbers = #tpu.dot_dimension_numbers<[1], [0], [0], [1], [0, 0, 1, 1], [], []>} : vector<16x16xf32>, vector<16x2xf32>, vector<16x2xf32> -> vector<16x2xf32>
    %307 = vector.extract_strided_slice %306 {offsets = [0, 0], sizes = [16, 1], strides = [1, 1]} : vector<16x2xf32> to vector<16x1xf32>
    %308 = vector.extract_strided_slice %306 {offsets = [0, 1], sizes = [16, 1], strides = [1, 1]} : vector<16x2xf32> to vector<16x1xf32>
    %309 = arith.mulf %307, %307 : vector<16x1xf32>
    %310 = arith.subf %308, %309 : vector<16x1xf32>
    %cst_205 = arith.constant 0.000000e+00 : f32
    %311 = vector.broadcast %cst_205 : f32 to vector<16x1xf32>
    %312 = arith.maximumf %310, %311 : vector<16x1xf32>
    %cst_206 = arith.constant 9.99999974E-6 : f32
    %313 = vector.broadcast %cst_206 : f32 to vector<16x1xf32>
    %314 = arith.addf %312, %313 : vector<16x1xf32>
    %315 = math.rsqrt %314 : vector<16x1xf32>
    %316 = arith.mulf %315, %287 : vector<16x1xf32>
    %317 = arith.subf %286, %307 : vector<16x1xf32>
    %318 = arith.mulf %317, %316 : vector<16x1xf32>
    %319 = arith.addf %318, %288 : vector<16x1xf32>
    %320 = vector.broadcast %316 : vector<16x1xf32> to vector<16x256xf32>
    %321 = arith.mulf %285, %320 : vector<16x256xf32>
    %322 = vector.broadcast %319 : vector<16x1xf32> to vector<16x256xf32>
    %323 = arith.addf %321, %322 : vector<16x256xf32>
    %cst_207 = arith.constant 0.000000e+00 : f32
    %324 = vector.broadcast %cst_207 : f32 to vector<16x256xf32>
    %325 = arith.maximumf %323, %324 : vector<16x256xf32>
    %c0_208 = arith.constant 0 : index
    %c0_209 = arith.constant 0 : index
    %c0_210 = arith.constant 0 : index
    %326 = vector.load %arg10[%c0_208, %c0_209, %c0_210] : memref<1x16x256xf32, #tpu.memory_space<vmem>>, vector<1x16x256xf32>
    %327 = vector.shape_cast %326 : vector<1x16x256xf32> to vector<16x256xf32>
    %328 = vector.shape_cast %325 : vector<16x256xf32> to vector<1x16x256xf32>
    tpu.vector_store %arg10[%c0_208, %c0_209, %c0_210], %328 {strides = array<i32>} : memref<1x16x256xf32, #tpu.memory_space<vmem>>, vector<1x16x256xf32>,
    return
  }
  func.func @transform_0(%arg0: i32) -> (i32, i32, i32) {
    %c0_i32 = arith.constant 0 : i32
    %c0_i32_0 = arith.constant 0 : i32
    %c0_i32_1 = arith.constant 0 : i32
    return %arg0, %c0_i32, %c0_i32_0 : i32, i32, i32
  }
  func.func @transform_1(%arg0: i32) -> (i32, i32, i32) {
    %c0_i32 = arith.constant 0 : i32
    %c0_i32_0 = arith.constant 0 : i32
    %c0_i32_1 = arith.constant 0 : i32
    %c0_i32_2 = arith.constant 0 : i32
    return %c0_i32, %c0_i32_0, %c0_i32_1 : i32, i32, i32
  }
  func.func @transform_2(%arg0: i32) -> (i32, i32, i32) {
    %c0_i32 = arith.constant 0 : i32
    %c0_i32_0 = arith.constant 0 : i32
    %c0_i32_1 = arith.constant 0 : i32
    %c0_i32_2 = arith.constant 0 : i32
    return %c0_i32, %c0_i32_0, %c0_i32_1 : i32, i32, i32
  }
  func.func @transform_3(%arg0: i32) -> (i32, i32, i32) {
    %c0_i32 = arith.constant 0 : i32
    %c0_i32_0 = arith.constant 0 : i32
    %c0_i32_1 = arith.constant 0 : i32
    %c0_i32_2 = arith.constant 0 : i32
    return %c0_i32, %c0_i32_0, %c0_i32_1 : i32, i32, i32
  }
  func.func @transform_4(%arg0: i32) -> (i32, i32) {
    %c0_i32 = arith.constant 0 : i32
    %c0_i32_0 = arith.constant 0 : i32
    %c0_i32_1 = arith.constant 0 : i32
    return %c0_i32, %c0_i32_0 : i32, i32
  }
  func.func @transform_5(%arg0: i32) -> (i32, i32) {
    %c0_i32 = arith.constant 0 : i32
    %c0_i32_0 = arith.constant 0 : i32
    %c0_i32_1 = arith.constant 0 : i32
    return %c0_i32, %c0_i32_0 : i32, i32
  }
  func.func @transform_6(%arg0: i32) -> (i32, i32) {
    %c0_i32 = arith.constant 0 : i32
    %c0_i32_0 = arith.constant 0 : i32
    %c0_i32_1 = arith.constant 0 : i32
    return %c0_i32, %c0_i32_0 : i32, i32
  }
  func.func @transform_7(%arg0: i32) -> (i32, i32) {
    %c0_i32 = arith.constant 0 : i32
    %c0_i32_0 = arith.constant 0 : i32
    %c0_i32_1 = arith.constant 0 : i32
    return %c0_i32, %c0_i32_0 : i32, i32
  }
  func.func @transform_8(%arg0: i32) -> (i32, i32) {
    %c0_i32 = arith.constant 0 : i32
    %c0_i32_0 = arith.constant 0 : i32
    %c0_i32_1 = arith.constant 0 : i32
    return %c0_i32, %c0_i32_0 : i32, i32
  }
  func.func @transform_9(%arg0: i32) -> (i32, i32, i32) {
    %c0_i32 = arith.constant 0 : i32
    %c0_i32_0 = arith.constant 0 : i32
    %c0_i32_1 = arith.constant 0 : i32
    return %arg0, %c0_i32, %c0_i32_0 : i32, i32, i32
  }
}

</mosaic_0001>

<llo_original>
// kernel: conv3_forward.1
$region0: #{conv3_forward.1}
  #allocation0 [shape = 'u32[]', space=smem, size = 0x4, offset = 0x4, fixed_abs, tag = 'smem constant byte address 0x4 - core index']
  #allocation1 [shape = 'u32[72,128]{1,0:T(1,128)}', space=vmem, size = 0x9000, scoped, tag = 'internal scratch']
  #allocation2 [shape = 'bf16[16,512]{1,0:T(8,128)(2,1)}', space=vmem, size = 0x4000, scoped, tag = 'scratch operand']
  %s0 = inlined_call_operand.vmem [shape: bf16[2,8,512], index: 0, kind: input, shape index: {}]
  %s1 = inlined_call_operand.vmem [shape: bf16[9,16,8], index: 1, kind: input, shape index: {}]
  %s2 = inlined_call_operand.vmem [shape: bf16[9,16,16], index: 2, kind: input, shape index: {}]
  %s3 = inlined_call_operand.vmem [shape: bf16[9,16,16], index: 3, kind: input, shape index: {}]
  %s4 = inlined_call_operand.vmem [shape: f32[16,3], index: 4, kind: input, shape index: {}]
  %s5 = inlined_call_operand.vmem [shape: f32[16,3], index: 5, kind: input, shape index: {}]
  %s6 = inlined_call_operand.vmem [shape: f32[16,3], index: 6, kind: input, shape index: {}]
  %s7 = inlined_call_operand.vmem [shape: f32[16,16], index: 7, kind: input, shape index: {}]
  %s8 = inlined_call_operand.vmem [shape: bf16[3,256], index: 8, kind: input, shape index: {}]
  %s9 = inlined_call_operand.vmem [shape: f32[2,16,256], index: 9, kind: output, shape index: {}]
  %s10 = sld [smem:[#allocation0]]
  $region69: #{conv3_forward.1} parent=0
    _
  %s12 = ssub.s32 1, %s10
  %s13 = scalar_select 0, %s12, %s10
  loop: start=0, step=1, limit=4
  $region2: #{conv3_forward.1} parent=0 // loop_pre_header
    _
  $region3: #{conv3_forward.1} parent=0 // loop_header
    %s15 = sphi 0, %s19
    %p16 = scmp.ge.s32.totalorder %s15, 4
    %s25 = sphi 0, %s27
    %s28 = sphi 0, %s25
    %s29 = sphi 0, %s28
    %s45 = sphi 0, %s29
    %s49 = sphi 0, %s49
    %s51 = sphi 0, %s49
    %s52 = sphi 0, %s51
    %s66 = sphi 0, %s52
    %s70 = sphi 0, %s70
    %s72 = sphi 0, %s70
    %s73 = sphi 0, %s72
    %s87 = sphi 0, %s73
    %s91 = sphi 0, %s91
    %s93 = sphi 0, %s91
    %s94 = sphi 0, %s93
    %s108 = sphi 0, %s94
    %s112 = sphi 0, %s112
    %s114 = sphi 0, %s112
    %s115 = sphi 0, %s114
    %s129 = sphi 0, %s115
    %s133 = sphi 0, %s133
    %s135 = sphi 0, %s133
    %s136 = sphi 0, %s135
    %s150 = sphi 0, %s136
    %s154 = sphi 0, %s154
    %s156 = sphi 0, %s154
    %s157 = sphi 0, %s156
    %s171 = sphi 0, %s157
    %s175 = sphi 0, %s175
    %s177 = sphi 0, %s175
    %s178 = sphi 0, %s177
    %s192 = sphi 0, %s178
    %s196 = sphi 0, %s196
    %s198 = sphi 0, %s196
    %s199 = sphi 0, %s198
    %s213 = sphi 0, %s199
    %s219 = sphi 0, %s221
    %s222 = sphi 0, %s219
    %s223 = sphi 0, %s222
    %s239 = sphi 0, %s223
  $region4: #{conv3_forward.1} parent=0 // loop_header_branch
    %18 = sbr.rel (%p16) target = $region8
  $region5: #{conv3_forward.1} parent=0 // loop_body
    %s20 = ssub.s32 %s15, 1
    %s21 = ssub.s32 %s15, 2
    %s22 = sadd.s32 %s15, 1
    %s23 = ssub.s32 %s15, %s22
    %p24 = scmp.eq.s32.totalorder %s23, 0
    %s26 = sadd.s32 %s25, 1
    %s27 = scalar_select %p24, %s25, %s26
    %p30 = pneg %p24
    %p31 = scmp.eq.s32.totalorder %s15, 1
    %p32 = por %p30, %p31
    %p33 = scmp.ne.s32.totalorder %s25, %s28
    %p34 = scmp.eq.s32.totalorder %s15, 0
    %p35 = por %p33, %p34
    %p36 = scmp.ne.s32.totalorder %s25, %s28
    %p37 = scmp.eq.s32.totalorder %s20, 1
    %p38 = por %p36, %p37
    %p39 = scmp.ne.s32.totalorder %s28, %s29
    %p40 = scmp.eq.s32.totalorder %s20, 0
    %p41 = por %p39, %p40
    %p42 = scmp.ne.s32.totalorder %s28, %s29
    %p43 = scmp.eq.s32.totalorder %s21, 1
    %p44 = por %p42, %p43
    %p46 = scmp.ne.s32.totalorder %s29, %s45
    %p47 = scmp.eq.s32.totalorder %s21, 0
    %p48 = por %p46, %p47
    %s50 = sadd.s32 %s49, 1
    %p53 = scmp.eq.s32.totalorder %s15, 1
    %p54 = scmp.ne.s32.totalorder %s49, %s51
    %p55 = scmp.eq.s32.totalorder %s15, 0
    %p56 = por %p54, %p55
    %p57 = scmp.ne.s32.totalorder %s49, %s51
    %p58 = scmp.eq.s32.totalorder %s20, 1
    %p59 = por %p57, %p58
    %p60 = scmp.ne.s32.totalorder %s51, %s52
    %p61 = scmp.eq.s32.totalorder %s20, 0
    %p62 = por %p60, %p61
    %p63 = scmp.ne.s32.totalorder %s51, %s52
    %p64 = scmp.eq.s32.totalorder %s21, 1
    %p65 = por %p63, %p64
    %p67 = scmp.ne.s32.totalorder %s52, %s66
    %p68 = scmp.eq.s32.totalorder %s21, 0
    %p69 = por %p67, %p68
    %s71 = sadd.s32 %s70, 1
    %p74 = scmp.eq.s32.totalorder %s15, 1
    %p75 = scmp.ne.s32.totalorder %s70, %s72
    %p76 = scmp.eq.s32.totalorder %s15, 0
    %p77 = por %p75, %p76
    %p78 = scmp.ne.s32.totalorder %s70, %s72
    %p79 = scmp.eq.s32.totalorder %s20, 1
    %p80 = por %p78, %p79
    %p81 = scmp.ne.s32.totalorder %s72, %s73
    %p82 = scmp.eq.s32.totalorder %s20, 0
    %p83 = por %p81, %p82
    %p84 = scmp.ne.s32.totalorder %s72, %s73
    %p85 = scmp.eq.s32.totalorder %s21, 1
    %p86 = por %p84, %p85
    %p88 = scmp.ne.s32.totalorder %s73, %s87
    %p89 = scmp.eq.s32.totalorder %s21, 0
    %p90 = por %p88, %p89
    %s92 = sadd.s32 %s91, 1
    %p95 = scmp.eq.s32.totalorder %s15, 1
    %p96 = scmp.ne.s32.totalorder %s91, %s93
    %p97 = scmp.eq.s32.totalorder %s15, 0
    %p98 = por %p96, %p97
    %p99 = scmp.ne.s32.totalorder %s91, %s93
    %p100 = scmp.eq.s32.totalorder %s20, 1
    %p101 = por %p99, %p100
    %p102 = scmp.ne.s32.totalorder %s93, %s94
    %p103 = scmp.eq.s32.totalorder %s20, 0
    %p104 = por %p102, %p103
    %p105 = scmp.ne.s32.totalorder %s93, %s94
    %p106 = scmp.eq.s32.totalorder %s21, 1
    %p107 = por %p105, %p106
    %p109 = scmp.ne.s32.totalorder %s94, %s108
    %p110 = scmp.eq.s32.totalorder %s21, 0
    %p111 = por %p109, %p110
    %s113 = sadd.s32 %s112, 1
    %p116 = scmp.eq.s32.totalorder %s15, 1
    %p117 = scmp.ne.s32.totalorder %s112, %s114
    %p118 = scmp.eq.s32.totalorder %s15, 0
    %p119 = por %p117, %p118
    %p120 = scmp.ne.s32.totalorder %s112, %s114
    %p121 = scmp.eq.s32.totalorder %s20, 1
    %p122 = por %p120, %p121
    %p123 = scmp.ne.s32.totalorder %s114, %s115
    %p124 = scmp.eq.s32.totalorder %s20, 0
    %p125 = por %p123, %p124
    %p126 = scmp.ne.s32.totalorder %s114, %s115
    %p127 = scmp.eq.s32.totalorder %s21, 1
    %p128 = por %p126, %p127
    %p130 = scmp.ne.s32.totalorder %s115, %s129
    %p131 = scmp.eq.s32.totalorder %s21, 0
    %p132 = por %p130, %p131
    %s134 = sadd.s32 %s133, 1
    %p137 = scmp.eq.s32.totalorder %s15, 1
    %p138 = scmp.ne.s32.totalorder %s133, %s135
    %p139 = scmp.eq.s32.totalorder %s15, 0
    %p140 = por %p138, %p139
    %p141 = scmp.ne.s32.totalorder %s133, %s135
    %p142 = scmp.eq.s32.totalorder %s20, 1
    %p143 = por %p141, %p142
    %p144 = scmp.ne.s32.totalorder %s135, %s136
    %p145 = scmp.eq.s32.totalorder %s20, 0
    %p146 = por %p144, %p145
    %p147 = scmp.ne.s32.totalorder %s135, %s136
    %p148 = scmp.eq.s32.totalorder %s21, 1
    %p149 = por %p147, %p148
    %p151 = scmp.ne.s32.totalorder %s136, %s150
    %p152 = scmp.eq.s32.totalorder %s21, 0
    %p153 = por %p151, %p152
    %s155 = sadd.s32 %s154, 1
    %p158 = scmp.eq.s32.totalorder %s15, 1
    %p159 = scmp.ne.s32.totalorder %s154, %s156
    %p160 = scmp.eq.s32.totalorder %s15, 0
    %p161 = por %p159, %p160
    %p162 = scmp.ne.s32.totalorder %s154, %s156
    %p163 = scmp.eq.s32.totalorder %s20, 1
    %p164 = por %p162, %p163
    %p165 = scmp.ne.s32.totalorder %s156, %s157
    %p166 = scmp.eq.s32.totalorder %s20, 0
    %p167 = por %p165, %p166
    %p168 = scmp.ne.s32.totalorder %s156, %s157
    %p169 = scmp.eq.s32.totalorder %s21, 1
    %p170 = por %p168, %p169
    %p172 = scmp.ne.s32.totalorder %s157, %s171
    %p173 = scmp.eq.s32.totalorder %s21, 0
    %p174 = por %p172, %p173
    %s176 = sadd.s32 %s175, 1
    %p179 = scmp.eq.s32.totalorder %s15, 1
    %p180 = scmp.ne.s32.totalorder %s175, %s177
    %p181 = scmp.eq.s32.totalorder %s15, 0
    %p182 = por %p180, %p181
    %p183 = scmp.ne.s32.totalorder %s175, %s177
    %p184 = scmp.eq.s32.totalorder %s20, 1
    %p185 = por %p183, %p184
    %p186 = scmp.ne.s32.totalorder %s177, %s178
    %p187 = scmp.eq.s32.totalorder %s20, 0
    %p188 = por %p186, %p187
    %p189 = scmp.ne.s32.totalorder %s177, %s178
    %p190 = scmp.eq.s32.totalorder %s21, 1
    %p191 = por %p189, %p190
    %p193 = scmp.ne.s32.totalorder %s178, %s192
    %p194 = scmp.eq.s32.totalorder %s21, 0
    %p195 = por %p193, %p194
    %s197 = sadd.s32 %s196, 1
    %p200 = scmp.eq.s32.totalorder %s15, 1
    %p201 = scmp.ne.s32.totalorder %s196, %s198
    %p202 = scmp.eq.s32.totalorder %s15, 0
    %p203 = por %p201, %p202
    %p204 = scmp.ne.s32.totalorder %s196, %s198
    %p205 = scmp.eq.s32.totalorder %s20, 1
    %p206 = por %p204, %p205
    %p207 = scmp.ne.s32.totalorder %s198, %s199
    %p208 = scmp.eq.s32.totalorder %s20, 0
    %p209 = por %p207, %p208
    %p210 = scmp.ne.s32.totalorder %s198, %s199
    %p211 = scmp.eq.s32.totalorder %s21, 1
    %p212 = por %p210, %p211
    %p214 = scmp.ne.s32.totalorder %s199, %s213
    %p215 = scmp.eq.s32.totalorder %s21, 0
    %p216 = por %p214, %p215
    %s217 = ssub.s32 %s15, %s22
    %p218 = scmp.eq.s32.totalorder %s217, 0
    %s220 = sadd.s32 %s219, 1
    %s221 = scalar_select %p218, %s219, %s220
    %p224 = pneg %p218
    %p225 = scmp.eq.s32.totalorder %s15, 1
    %p226 = por %p224, %p225
    %p227 = scmp.ne.s32.totalorder %s219, %s222
    %p228 = scmp.eq.s32.totalorder %s15, 0
    %p229 = por %p227, %p228
    %p230 = scmp.ne.s32.totalorder %s219, %s222
    %p231 = scmp.eq.s32.totalorder %s20, 1
    %p232 = por %p230, %p231
    %p233 = scmp.ne.s32.totalorder %s222, %s223
    %p234 = scmp.eq.s32.totalorder %s20, 0
    %p235 = por %p233, %p234
    %p236 = scmp.ne.s32.totalorder %s222, %s223
    %p237 = scmp.eq.s32.totalorder %s21, 1
    %p238 = por %p236, %p237
    %p240 = scmp.ne.s32.totalorder %s223, %s239
    %p241 = scmp.eq.s32.totalorder %s21, 0
    %p242 = por %p240, %p241
    %p243 = scmp.le.s32.totalorder 1, %s15
    %p244 = scmp.lt.s32.totalorder %s15, 3
    %p245 = pnand %p243, %p244
    %p246 = pneg %p245
    // Predicated region
    $region9: #{conv3_forward.1} parent=5 // pred_check
      _
    $region10: #{conv3_forward.1} parent=5 // pred_check_branch
      %248 = sbr.rel (%p245) target = $region12
    $region11: #{conv3_forward.1} parent=5 // pred_region
      %s249 = ssub.s32 %s15, 1
      // Predicated region
      $region13: #{conv3_forward.1} parent=11 // pred_check
        %p250 = pneg %p62
      $region14: #{conv3_forward.1} parent=11 // pred_check_branch
        %252 = sbr.rel (%p250) target = $region16
      $region15: #{conv3_forward.1} parent=11 // pred_region
        _
      $region16: #{conv3_forward.1} parent=11 // pred_fallthru
        _
      // Predicated region
      $region17: #{conv3_forward.1} parent=11 // pred_check
        %p253 = pneg %p83
      $region18: #{conv3_forward.1} parent=11 // pred_check_branch
        %255 = sbr.rel (%p253) target = $region20
      $region19: #{conv3_forward.1} parent=11 // pred_region
        _
      $region20: #{conv3_forward.1} parent=11 // pred_fallthru
        _
      // Predicated region
      $region21: #{conv3_forward.1} parent=11 // pred_check
        %p256 = pneg %p104
      $region22: #{conv3_forward.1} parent=11 // pred_check_branch
        %258 = sbr.rel (%p256) target = $region24
      $region23: #{conv3_forward.1} parent=11 // pred_region
        _
      $region24: #{conv3_forward.1} parent=11 // pred_fallthru
        _
      // Predicated region
      $region25: #{conv3_forward.1} parent=11 // pred_check
        %p259 = pneg %p125
      $region26: #{conv3_forward.1} parent=11 // pred_check_branch
        %261 = sbr.rel (%p259) target = $region28
      $region27: #{conv3_forward.1} parent=11 // pred_region
        _
      $region28: #{conv3_forward.1} parent=11 // pred_fallthru
        _
      // Predicated region
      $region29: #{conv3_forward.1} parent=11 // pred_check
        %p262 = pneg %p146
      $region30: #{conv3_forward.1} parent=11 // pred_check_branch
        %264 = sbr.rel (%p262) target = $region32
      $region31: #{conv3_forward.1} parent=11 // pred_region
        _
      $region32: #{conv3_forward.1} parent=11 // pred_fallthru
        _
      // Predicated region
      $region33: #{conv3_forward.1} parent=11 // pred_check
        %p265 = pneg %p167
      $region34: #{conv3_forward.1} parent=11 // pred_check_branch
        %267 = sbr.rel (%p265) target = $region36
      $region35: #{conv3_forward.1} parent=11 // pred_region
        _
      $region36: #{conv3_forward.1} parent=11 // pred_fallthru
        _
      // Predicated region
      $region37: #{conv3_forward.1} parent=11 // pred_check
        %p268 = pneg %p188
      $region38: #{conv3_forward.1} parent=11 // pred_check_branch
        %270 = sbr.rel (%p268) target = $region40
      $region39: #{conv3_forward.1} parent=11 // pred_region
        _
      $region40: #{conv3_forward.1} parent=11 // pred_fallthru
        _
      // Predicated region
      $region41: #{conv3_forward.1} parent=11 // pred_check
        %p271 = pneg %p209
      $region42: #{conv3_forward.1} parent=11 // pred_check_branch
        %273 = sbr.rel (%p271) target = $region44
      $region43: #{conv3_forward.1} parent=11 // pred_region
        _
      $region44: #{conv3_forward.1} parent=11 // pred_fallthru
        _
    $region12: #{conv3_forward.1} parent=5 // pred_fallthru
      _
    %p274 = scmp.lt.s32.totalorder %s15, 2
    // Predicated region
    $region45: #{conv3_forward.1} parent=5 // pred_check
      %p275 = pneg %p274
    $region46: #{conv3_forward.1} parent=5 // pred_check_branch
      %277 = sbr.rel (%p275) target = $region48
    $region47: #{conv3_forward.1} parent=5 // pred_region
      // Predicated region
      $region49: #{conv3_forward.1} parent=47 // pred_check
        %p278 = pneg %p35
      $region50: #{conv3_forward.1} parent=47 // pred_check_branch
        %280 = sbr.rel (%p278) target = $region52
      $region51: #{conv3_forward.1} parent=47 // pred_region
        %p281 = scmp.lt.s32.totalorder %s15, 1
        %s282 = scalar_select %p281, %s15, 1
        %s283 = smul.addr %s282, 4
        %s284 = smul.addr %s283, 4
        %s285 = scalar_lea.vmem %s0, %s284
      $region52: #{conv3_forward.1} parent=47 // pred_fallthru
        _
    $region48: #{conv3_forward.1} parent=5 // pred_fallthru
      _
    %p286 = scmp.le.s32.totalorder 1, %s15
    %p287 = scmp.lt.s32.totalorder %s15, 3
    %p288 = pnand %p286, %p287
    %p289 = pneg %p288
    // Predicated region
    $region53: #{conv3_forward.1} parent=5 // pred_check
      _
    $region54: #{conv3_forward.1} parent=5 // pred_check_branch
      %291 = sbr.rel (%p288) target = $region56
    $region55: #{conv3_forward.1} parent=5 // pred_region
      %s292 = ssub.s32 %s15, 1
      %p293 = scmp.lt.s32.totalorder %s20, 1
      %s294 = scalar_select %p293, %s20, 1
      %s295 = smul.addr %s294, 4
      %s296 = smul.addr %s295, 4
      %s297 = scalar_lea.vmem %s0, %s296
      %p298 = pneg %p41
      %p299 = pneg %p38
      %p300 = pneg %p62
      %p301 = pneg %p59
      %p302 = pneg %p83
      %p303 = pneg %p80
      %p304 = pneg %p104
      %p305 = pneg %p101
      %p306 = pneg %p125
      %p307 = pneg %p122
      %p308 = pneg %p146
      %p309 = pneg %p143
      %p310 = pneg %p167
      %p311 = pneg %p164
      %p312 = pneg %p188
      %p313 = pneg %p185
      %p314 = pneg %p209
      %p315 = pneg %p206
      %p316 = pneg %p235
      %p317 = pneg %p232
      %p318 = scmp.lt.s32.totalorder %s20, 1
      %s319 = scalar_select %p318, %s20, 1
      %s320 = smul.addr %s319, 4
      %s321 = smul.addr %s320, 8
      %s322 = scalar_lea.vmem %s9, %s321
      %p323 = scmp.lt.s32.totalorder %s20, 1
      %s324 = scalar_select %p323, %s20, 1
      %s325 = smul.addr %s324, 4
      %s326 = smul.addr %s325, 4
      %s327 = scalar_lea.vmem %s0, %s326
      %p328 = scmp.lt.s32.totalorder %s20, 1
      %s329 = scalar_select %p328, %s20, 1
      %s330 = smul.addr %s329, 4
      %s331 = smul.addr %s330, 8
      %s332 = scalar_lea.vmem %s9, %s331
      %v334 = vld [vmem:[%s8] sm:$0xf]
      %v335 = vld [vmem:[%s7] sm:$0xff]
      %v336 = vld [vmem:[%s7 + $0x8] sm:$0xff]
      %337 = vst [vmem:[#allocation2] sm:$0xf] 0
      %338 = vst [vmem:[#allocation2 + $0x10] sm:$0xf] 0
      %339 = vst [vmem:[#allocation2 + $0xc] sm:$0xf] 0
      %340 = vst [vmem:[#allocation2 + $0x1c] sm:$0xf] 0
      %v341 = vld [vmem:[%s327] sm:$0xff]
      %v342 = vld [vmem:[%s327 + $0x8] sm:$0xf]
      %344 = vst [vmem:[#allocation1] ss:$4 sm:$0xff] %v334
      %v345 = vld.sshfl [vmem:[#allocation1] sm:$0xff pattern:$0x73625140]
      %v346 = vld.sshfl [vmem:[#allocation1 + $0x8] sm:$0xff pattern:$0x73625140]
      %v347 = vpack.i.b16 %v345, %v345
      %v349 = vperm.slane %v347, 0
      %v350 = vpack.i.b16 %v346, %v346
      %v352 = vperm.slane %v350, 0
      %v353 = vunpack.c.l.bf16 %v341
      %v354 = vunpack.c.h.bf16 %v341
      %v355 = vunpack.c.l.bf16 %v342
      %v356 = vunpack.c.l.bf16 %v349
      %v357 = vunpack.c.l.bf16 %v352
      %360 = vrot.lane.b32.xlu0 %v356, 111
      %v361 = vpop.permute.xlu0 %360
      %362 = vrot.lane.b32.xlu0 %v357, 111
      %v363 = vpop.permute.xlu0 %362
      %vm364 = vcmask 908288
      %v365 = vsel %vm364, %v361, %v363
      %v369 = vmul.f32 %v353, %v361
      %v370 = vmul.f32 %v354, %v365
      %v371 = vmul.f32 %v355, %v363
      %v372 = vpack.c.bf16 %v369, %v369
      %v373 = vpack.c.bf16 %v370, %v370
      %v374 = vpack.c.bf16 %v371, %v371
      %v375 = vld [vmem:[%s1] sm:$0xf]
      %v376 = vld [vmem:[%s1 + $0x4] sm:$0xf]
      %v377 = vld [vmem:[%s327] sm:$0xff]
      %v378 = vld [vmem:[%s327 + $0x8] sm:$0xf]
      %s379 = scalar_lea.vmem %s1, 8
      %v380 = vld [vmem:[%s379] sm:$0xf]
      %v381 = vld [vmem:[%s379 + $0x4] sm:$0xf]
      %v384 = vunpack.c.l.b16 %v380
      %v385 = vunpack.c.l.b16 %v381
      %v386 = vpack.c.b16 %v385, %v384
      %v389 = vunpack.c.l.b16 %v377
      %v390 = vunpack.c.h.b16 %v377
      %v391 = vunpack.c.l.b16 %v378
      %v392 = vpack.c.b16 %v389, %v389
      %v393 = vpack.c.b16 %v390, %v390
      %v394 = vpack.c.b16 %v391, %v391
      %395 = vrot.lane.b32.xlu0 %v392, 16
      %v396 = vpop.permute.xlu0 %395
      %397 = vrot.lane.b32.xlu0 %v393, 16
      %v398 = vpop.permute.xlu0 %397
      %399 = vrot.lane.b32.xlu0 %v394, 16
      %v400 = vpop.permute.xlu0 %399
      %vm401 = vcmask 130048
      %v402 = vsel %vm401, %v396, %v398
      %v403 = vsel %vm401, %v398, %v400
      %vm404 = vcmask 64512
      %v406 = vsel %vm404, %v386, 0
      %vm408 = vcmask 1043456
      %v410 = vsel %vm408, %v402, 0
      %v413 = vsel %vm408, %v403, 0
      %415 = vmatpush.bf16.msra.mxu0 0
      %416 = vmatpush.bf16.msra.mxu0 0
      %417 = vmatpush.bf16.msra.mxu0 0
      %418 = vmatpush.bf16.msra.mxu0 0
      %419 = vmatpush.bf16.msra.mxu0 0
      %420 = vmatpush.bf16.msra.mxu0 0
      %421 = vmatpush.bf16.msra.mxu0 0
      %422 = vmatpush.bf16.msra.mxu0 %v410
      %423 = vmatmul.bf16.gmra.mxu0 %v406
      %v424 = vpop.f32.mrf.mxu0
      %v425 = vadd.f32 0.0, %v424
      %v426 = vpop.f32.mrf.mxu0
      %v427 = vadd.f32 0.0, %v426
      %428 = vdwg.mxu0
      %429 = vmatpush.bf16.msra.mxu0 0
      %430 = vmatpush.bf16.msra.mxu0 0
      %431 = vmatpush.bf16.msra.mxu0 0
      %432 = vmatpush.bf16.msra.mxu0 0
      %433 = vmatpush.bf16.msra.mxu0 0
      %434 = vmatpush.bf16.msra.mxu0 0
      %435 = vmatpush.bf16.msra.mxu0 0
      %436 = vmatpush.bf16.msra.mxu0 %v413
      %437 = vmatmul.bf16.gmra.mxu0 %v406
      %v438 = vpop.f32.mrf.mxu0
      %v439 = vadd.f32 0.0, %v438
      %v440 = vpop.f32.mrf.mxu0
      %v441 = vadd.f32 0.0, %v440
      %442 = vdwg.mxu0
      %v445 = vunpack.c.l.b16 %v375
      %v446 = vunpack.c.l.b16 %v376
      %v447 = vpack.c.b16 %v446, %v445
      %451 = vrot.lane.b32.xlu0 %v372, 17
      %v452 = vpop.permute.xlu0 %451
      %453 = vrot.lane.b32.xlu0 %v373, 17
      %v454 = vpop.permute.xlu0 %453
      %455 = vrot.lane.b32.xlu0 %v374, 17
      %v456 = vpop.permute.xlu0 %455
      %vm457 = vcmask 138240
      %v458 = vsel %vm457, %v452, %v454
      %v459 = vsel %vm457, %v454, %v456
      %v461 = vsel %vm404, %v447, 0
      %v464 = vsel %vm408, %v458, 0
      %v467 = vsel %vm408, %v459, 0
      %469 = vmatpush.bf16.msra.mxu0 0
      %470 = vmatpush.bf16.msra.mxu0 0
      %471 = vmatpush.bf16.msra.mxu0 0
      %472 = vmatpush.bf16.msra.mxu0 0
      %473 = vmatpush.bf16.msra.mxu0 0
      %474 = vmatpush.bf16.msra.mxu0 0
      %475 = vmatpush.bf16.msra.mxu0 0
      %476 = vmatpush.bf16.msra.mxu0 %v464
      %477 = vmatmul.bf16.gmra.mxu0 %v461
      %v478 = vpop.f32.mrf.mxu0
      %v479 = vadd.f32 %v425, %v478
      %v480 = vpop.f32.mrf.mxu0
      %v481 = vadd.f32 %v427, %v480
      %482 = vdwg.mxu0
      %483 = vmatpush.bf16.msra.mxu0 0
      %484 = vmatpush.bf16.msra.mxu0 0
      %485 = vmatpush.bf16.msra.mxu0 0
      %486 = vmatpush.bf16.msra.mxu0 0
      %487 = vmatpush.bf16.msra.mxu0 0
      %488 = vmatpush.bf16.msra.mxu0 0
      %489 = vmatpush.bf16.msra.mxu0 0
      %490 = vmatpush.bf16.msra.mxu0 %v467
      %491 = vmatmul.bf16.gmra.mxu0 %v461
      %v492 = vpop.f32.mrf.mxu0
      %v493 = vadd.f32 %v439, %v492
      %v494 = vpop.f32.mrf.mxu0
      %v495 = vadd.f32 %v441, %v494
      %496 = vdwg.mxu0
      %497 = vst [vmem:[#allocation1] ss:$4 sm:$0xff] %v334
      %v498 = vld.sshfl [vmem:[#allocation1] sm:$0xff pattern:$0x73625140]
      %v499 = vld.sshfl [vmem:[#allocation1 + $0x8] sm:$0xff pattern:$0x73625140]
      %v500 = vpack.i.b16 %v498, %v498
      %v502 = vperm.slane %v500, 1
      %v503 = vpack.i.b16 %v499, %v499
      %v505 = vperm.slane %v503, 1
      %v506 = vunpack.c.l.bf16 %v377
      %v507 = vunpack.c.h.bf16 %v377
      %v508 = vunpack.c.l.bf16 %v378
      %v509 = vunpack.c.l.bf16 %v502
      %v510 = vunpack.c.l.bf16 %v505
      %513 = vrot.lane.b32.xlu0 %v509, 113
      %v514 = vpop.permute.xlu0 %513
      %515 = vrot.lane.b32.xlu0 %v510, 113
      %v516 = vpop.permute.xlu0 %515
      %vm517 = vcmask 924672
      %v518 = vsel %vm517, %v514, %v516
      %v522 = vmul.f32 %v506, %v514
      %v523 = vmul.f32 %v507, %v518
      %v524 = vmul.f32 %v508, %v516
      %v525 = vpack.c.bf16 %v522, %v522
      %v526 = vpack.c.bf16 %v523, %v523
      %v527 = vpack.c.bf16 %v524, %v524
      %s528 = scalar_lea.vmem %s1, 16
      %v529 = vld [vmem:[%s528] sm:$0xf]
      %v530 = vld [vmem:[%s528 + $0x4] sm:$0xf]
      %v533 = vunpack.c.l.b16 %v529
      %v534 = vunpack.c.l.b16 %v530
      %v535 = vpack.c.b16 %v534, %v533
      %539 = vrot.lane.b32.xlu0 %v525, 15
      %v540 = vpop.permute.xlu0 %539
      %541 = vrot.lane.b32.xlu0 %v526, 15
      %v542 = vpop.permute.xlu0 %541
      %543 = vrot.lane.b32.xlu0 %v527, 15
      %v544 = vpop.permute.xlu0 %543
      %vm545 = vcmask 121856
      %v546 = vsel %vm545, %v540, %v542
      %v547 = vsel %vm545, %v542, %v544
      %v549 = vsel %vm404, %v535, 0
      %v552 = vsel %vm408, %v546, 0
      %v555 = vsel %vm408, %v547, 0
      %557 = vmatpush.bf16.msra.mxu0 0
      %558 = vmatpush.bf16.msra.mxu0 0
      %559 = vmatpush.bf16.msra.mxu0 0
      %560 = vmatpush.bf16.msra.mxu0 0
      %561 = vmatpush.bf16.msra.mxu0 0
      %562 = vmatpush.bf16.msra.mxu0 0
      %563 = vmatpush.bf16.msra.mxu0 0
      %564 = vmatpush.bf16.msra.mxu0 %v552
      %565 = vmatmul.bf16.gmra.mxu0 %v549
      %v566 = vpop.f32.mrf.mxu0
      %v567 = vadd.f32 0.0, %v566
      %v568 = vpop.f32.mrf.mxu0
      %v569 = vadd.f32 0.0, %v568
      %570 = vdwg.mxu0
      %571 = vmatpush.bf16.msra.mxu0 0
      %572 = vmatpush.bf16.msra.mxu0 0
      %573 = vmatpush.bf16.msra.mxu0 0
      %574 = vmatpush.bf16.msra.mxu0 0
      %575 = vmatpush.bf16.msra.mxu0 0
      %576 = vmatpush.bf16.msra.mxu0 0
      %577 = vmatpush.bf16.msra.mxu0 0
      %578 = vmatpush.bf16.msra.mxu0 %v555
      %579 = vmatmul.bf16.gmra.mxu0 %v549
      %v580 = vpop.f32.mrf.mxu0
      %v581 = vadd.f32 0.0, %v580
      %v582 = vpop.f32.mrf.mxu0
      %v583 = vadd.f32 0.0, %v582
      %584 = vdwg.mxu0
      %v585 = vadd.f32 %v479, %v567
      %v586 = vadd.f32 %v493, %v581
      %v587 = vadd.f32 %v481, %v569
      %v588 = vadd.f32 %v495, %v583
      %v589 = vld [vmem:[%s327] sm:$0xff]
      %v590 = vld [vmem:[%s327 + $0x8] sm:$0xf]
      %v591 = vunpack.c.l.bf16 %v589
      %v592 = vunpack.c.h.bf16 %v589
      %v593 = vunpack.c.l.bf16 %v590
      %594 = vrot.lane.b32.xlu0 %v356, 127
      %v595 = vpop.permute.xlu0 %594
      %596 = vrot.lane.b32.xlu0 %v357, 127
      %v597 = vpop.permute.xlu0 %596
      %vm598 = vcmask 1039360
      %v599 = vsel %vm598, %v595, %v597
      %v603 = vmul.f32 %v591, %v595
      %v604 = vmul.f32 %v592, %v599
      %v605 = vmul.f32 %v593, %v597
      %v606 = vpack.c.bf16 %v603, %v603
      %v607 = vpack.c.bf16 %v604, %v604
      %v608 = vpack.c.bf16 %v605, %v605
      %s609 = scalar_lea.vmem %s1, 24
      %v610 = vld [vmem:[%s609] sm:$0xf]
      %v611 = vld [vmem:[%s609 + $0x4] sm:$0xf]
      %v614 = vunpack.c.l.b16 %v610
      %v615 = vunpack.c.l.b16 %v611
      %v616 = vpack.c.b16 %v615, %v614
      %620 = vrot.lane.b32.xlu0 %v606, 1
      %v621 = vpop.permute.xlu0 %620
      %622 = vrot.lane.b32.xlu0 %v607, 1
      %v623 = vpop.permute.xlu0 %622
      %624 = vrot.lane.b32.xlu0 %v608, 1
      %v625 = vpop.permute.xlu0 %624
      %vm626 = vcmask 7168
      %v627 = vsel %vm626, %v621, %v623
      %v628 = vsel %vm626, %v623, %v625
      %v630 = vsel %vm404, %v616, 0
      %v633 = vsel %vm408, %v627, 0
      %v636 = vsel %vm408, %v628, 0
      %638 = vmatpush.bf16.msra.mxu0 0
      %639 = vmatpush.bf16.msra.mxu0 0
      %640 = vmatpush.bf16.msra.mxu0 0
      %641 = vmatpush.bf16.msra.mxu0 0
      %642 = vmatpush.bf16.msra.mxu0 0
      %643 = vmatpush.bf16.msra.mxu0 0
      %644 = vmatpush.bf16.msra.mxu0 0
      %645 = vmatpush.bf16.msra.mxu0 %v633
      %646 = vmatmul.bf16.gmra.mxu0 %v630
      %v647 = vpop.f32.mrf.mxu0
      %v648 = vadd.f32 0.0, %v647
      %v649 = vpop.f32.mrf.mxu0
      %v650 = vadd.f32 0.0, %v649
      %651 = vdwg.mxu0
      %652 = vmatpush.bf16.msra.mxu0 0
      %653 = vmatpush.bf16.msra.mxu0 0
      %654 = vmatpush.bf16.msra.mxu0 0
      %655 = vmatpush.bf16.msra.mxu0 0
      %656 = vmatpush.bf16.msra.mxu0 0
      %657 = vmatpush.bf16.msra.mxu0 0
      %658 = vmatpush.bf16.msra.mxu0 0
      %659 = vmatpush.bf16.msra.mxu0 %v636
      %660 = vmatmul.bf16.gmra.mxu0 %v630
      %v661 = vpop.f32.mrf.mxu0
      %v662 = vadd.f32 0.0, %v661
      %v663 = vpop.f32.mrf.mxu0
      %v664 = vadd.f32 0.0, %v663
      %665 = vdwg.mxu0
      %v666 = vadd.f32 %v585, %v648
      %v667 = vadd.f32 %v586, %v662
      %v668 = vadd.f32 %v587, %v650
      %v669 = vadd.f32 %v588, %v664
      %v670 = vld [vmem:[%s327 + $0x4] sm:$0xff]
      %s671 = scalar_lea.vmem %s1, 32
      %v672 = vld [vmem:[%s671] sm:$0xf]
      %v673 = vld [vmem:[%s671 + $0x4] sm:$0xf]
      %v676 = vunpack.c.l.b16 %v672
      %v677 = vunpack.c.l.b16 %v673
      %v678 = vpack.c.b16 %v677, %v676
      %v680 = vunpack.c.l.b16 %v670
      %v681 = vunpack.c.h.b16 %v670
      %v682 = vpack.c.b16 %v680, %v680
      %v683 = vpack.c.b16 %v681, %v681
      %v685 = vsel %vm404, %v678, 0
      %v688 = vsel %vm408, %v682, 0
      %v691 = vsel %vm408, %v683, 0
      %693 = vmatpush.bf16.msra.mxu0 0
      %694 = vmatpush.bf16.msra.mxu0 0
      %695 = vmatpush.bf16.msra.mxu0 0
      %696 = vmatpush.bf16.msra.mxu0 0
      %697 = vmatpush.bf16.msra.mxu0 0
      %698 = vmatpush.bf16.msra.mxu0 0
      %699 = vmatpush.bf16.msra.mxu0 0
      %700 = vmatpush.bf16.msra.mxu0 %v688
      %701 = vmatmul.bf16.gmra.mxu0 %v685
      %v702 = vpop.f32.mrf.mxu0
      %v703 = vadd.f32 0.0, %v702
      %v704 = vpop.f32.mrf.mxu0
      %v705 = vadd.f32 0.0, %v704
      %706 = vdwg.mxu0
      %707 = vmatpush.bf16.msra.mxu0 0
      %708 = vmatpush.bf16.msra.mxu0 0
      %709 = vmatpush.bf16.msra.mxu0 0
      %710 = vmatpush.bf16.msra.mxu0 0
      %711 = vmatpush.bf16.msra.mxu0 0
      %712 = vmatpush.bf16.msra.mxu0 0
      %713 = vmatpush.bf16.msra.mxu0 0
      %714 = vmatpush.bf16.msra.mxu0 %v691
      %715 = vmatmul.bf16.gmra.mxu0 %v685
      %v716 = vpop.f32.mrf.mxu0
      %v717 = vadd.f32 0.0, %v716
      %v718 = vpop.f32.mrf.mxu0
      %v719 = vadd.f32 0.0, %v718
      %720 = vdwg.mxu0
      %v721 = vadd.f32 %v666, %v703
      %v722 = vadd.f32 %v667, %v717
      %v723 = vadd.f32 %v668, %v705
      %v724 = vadd.f32 %v669, %v719
      %v725 = vld [vmem:[%s327 + $0x4] sm:$0xff]
      %v726 = vld [vmem:[%s327 + $0xc] sm:$0xf]
      %v727 = vunpack.c.l.bf16 %v725
      %v728 = vunpack.c.h.bf16 %v725
      %v729 = vunpack.c.l.bf16 %v726
      %730 = vrot.lane.b32.xlu0 %v509, 1
      %v731 = vpop.permute.xlu0 %730
      %732 = vrot.lane.b32.xlu0 %v510, 1
      %v733 = vpop.permute.xlu0 %732
      %vm734 = vcmask 7168
      %v735 = vsel %vm734, %v731, %v733
      %v739 = vmul.f32 %v727, %v731
      %v740 = vmul.f32 %v728, %v735
      %v741 = vmul.f32 %v729, %v733
      %v742 = vpack.c.bf16 %v739, %v739
      %v743 = vpack.c.bf16 %v740, %v740
      %v744 = vpack.c.bf16 %v741, %v741
      %s745 = scalar_lea.vmem %s1, 40
      %v746 = vld [vmem:[%s745] sm:$0xf]
      %v747 = vld [vmem:[%s745 + $0x4] sm:$0xf]
      %v750 = vunpack.c.l.b16 %v746
      %v751 = vunpack.c.l.b16 %v747
      %v752 = vpack.c.b16 %v751, %v750
      %756 = vrot.lane.b32.xlu0 %v742, 127
      %v757 = vpop.permute.xlu0 %756
      %758 = vrot.lane.b32.xlu0 %v743, 127
      %v759 = vpop.permute.xlu0 %758
      %760 = vrot.lane.b32.xlu0 %v744, 127
      %v761 = vpop.permute.xlu0 %760
      %vm762 = vcmask 1039360
      %v763 = vsel %vm762, %v757, %v759
      %v764 = vsel %vm762, %v759, %v761
      %v766 = vsel %vm404, %v752, 0
      %v769 = vsel %vm408, %v763, 0
      %v772 = vsel %vm408, %v764, 0
      %774 = vmatpush.bf16.msra.mxu0 0
      %775 = vmatpush.bf16.msra.mxu0 0
      %776 = vmatpush.bf16.msra.mxu0 0
      %777 = vmatpush.bf16.msra.mxu0 0
      %778 = vmatpush.bf16.msra.mxu0 0
      %779 = vmatpush.bf16.msra.mxu0 0
      %780 = vmatpush.bf16.msra.mxu0 0
      %781 = vmatpush.bf16.msra.mxu0 %v769
      %782 = vmatmul.bf16.gmra.mxu0 %v766
      %v783 = vpop.f32.mrf.mxu0
      %v784 = vadd.f32 0.0, %v783
      %v785 = vpop.f32.mrf.mxu0
      %v786 = vadd.f32 0.0, %v785
      %787 = vdwg.mxu0
      %788 = vmatpush.bf16.msra.mxu0 0
      %789 = vmatpush.bf16.msra.mxu0 0
      %790 = vmatpush.bf16.msra.mxu0 0
      %791 = vmatpush.bf16.msra.mxu0 0
      %792 = vmatpush.bf16.msra.mxu0 0
      %793 = vmatpush.bf16.msra.mxu0 0
      %794 = vmatpush.bf16.msra.mxu0 0
      %795 = vmatpush.bf16.msra.mxu0 %v772
      %796 = vmatmul.bf16.gmra.mxu0 %v766
      %v797 = vpop.f32.mrf.mxu0
      %v798 = vadd.f32 0.0, %v797
      %v799 = vpop.f32.mrf.mxu0
      %v800 = vadd.f32 0.0, %v799
      %801 = vdwg.mxu0
      %v802 = vadd.f32 %v721, %v784
      %v803 = vadd.f32 %v722, %v798
      %v804 = vadd.f32 %v723, %v786
      %v805 = vadd.f32 %v724, %v800
      %806 = vrot.lane.b32.xlu0 %v356, 15
      %v807 = vpop.permute.xlu0 %806
      %808 = vrot.lane.b32.xlu0 %v357, 15
      %v809 = vpop.permute.xlu0 %808
      %vm810 = vcmask 121856
      %v811 = vsel %vm810, %v807, %v809
      %v815 = vmul.f32 %v727, %v807
      %v816 = vmul.f32 %v728, %v811
      %v817 = vmul.f32 %v729, %v809
      %v818 = vpack.c.bf16 %v815, %v815
      %v819 = vpack.c.bf16 %v816, %v816
      %v820 = vpack.c.bf16 %v817, %v817
      %s821 = scalar_lea.vmem %s1, 48
      %v822 = vld [vmem:[%s821] sm:$0xf]
      %v823 = vld [vmem:[%s821 + $0x4] sm:$0xf]
      %v826 = vunpack.c.l.b16 %v822
      %v827 = vunpack.c.l.b16 %v823
      %v828 = vpack.c.b16 %v827, %v826
      %832 = vrot.lane.b32.xlu0 %v818, 113
      %v833 = vpop.permute.xlu0 %832
      %834 = vrot.lane.b32.xlu0 %v819, 113
      %v835 = vpop.permute.xlu0 %834
      %836 = vrot.lane.b32.xlu0 %v820, 113
      %v837 = vpop.permute.xlu0 %836
      %vm838 = vcmask 924672
      %v839 = vsel %vm838, %v833, %v835
      %v840 = vsel %vm838, %v835, %v837
      %v842 = vsel %vm404, %v828, 0
      %v845 = vsel %vm408, %v839, 0
      %v848 = vsel %vm408, %v840, 0
      %850 = vmatpush.bf16.msra.mxu0 0
      %851 = vmatpush.bf16.msra.mxu0 0
      %852 = vmatpush.bf16.msra.mxu0 0
      %853 = vmatpush.bf16.msra.mxu0 0
      %854 = vmatpush.bf16.msra.mxu0 0
      %855 = vmatpush.bf16.msra.mxu0 0
      %856 = vmatpush.bf16.msra.mxu0 0
      %857 = vmatpush.bf16.msra.mxu0 %v845
      %858 = vmatmul.bf16.gmra.mxu0 %v842
      %v859 = vpop.f32.mrf.mxu0
      %v860 = vadd.f32 0.0, %v859
      %v861 = vpop.f32.mrf.mxu0
      %v862 = vadd.f32 0.0, %v861
      %863 = vdwg.mxu0
      %864 = vmatpush.bf16.msra.mxu0 0
      %865 = vmatpush.bf16.msra.mxu0 0
      %866 = vmatpush.bf16.msra.mxu0 0
      %867 = vmatpush.bf16.msra.mxu0 0
      %868 = vmatpush.bf16.msra.mxu0 0
      %869 = vmatpush.bf16.msra.mxu0 0
      %870 = vmatpush.bf16.msra.mxu0 0
      %871 = vmatpush.bf16.msra.mxu0 %v848
      %872 = vmatmul.bf16.gmra.mxu0 %v842
      %v873 = vpop.f32.mrf.mxu0
      %v874 = vadd.f32 0.0, %v873
      %v875 = vpop.f32.mrf.mxu0
      %v876 = vadd.f32 0.0, %v875
      %877 = vdwg.mxu0
      %v878 = vadd.f32 %v802, %v860
      %v879 = vadd.f32 %v803, %v874
      %v880 = vadd.f32 %v804, %v862
      %v881 = vadd.f32 %v805, %v876
      %s882 = scalar_lea.vmem %s1, 56
      %v883 = vld [vmem:[%s882] sm:$0xf]
      %v884 = vld [vmem:[%s882 + $0x4] sm:$0xf]
      %v887 = vunpack.c.l.b16 %v883
      %v888 = vunpack.c.l.b16 %v884
      %v889 = vpack.c.b16 %v888, %v887
      %v892 = vunpack.c.l.b16 %v725
      %v893 = vunpack.c.h.b16 %v725
      %v894 = vunpack.c.l.b16 %v726
      %v895 = vpack.c.b16 %v892, %v892
      %v896 = vpack.c.b16 %v893, %v893
      %v897 = vpack.c.b16 %v894, %v894
      %898 = vrot.lane.b32.xlu0 %v895, 112
      %v899 = vpop.permute.xlu0 %898
      %900 = vrot.lane.b32.xlu0 %v896, 112
      %v901 = vpop.permute.xlu0 %900
      %902 = vrot.lane.b32.xlu0 %v897, 112
      %v903 = vpop.permute.xlu0 %902
      %vm904 = vcmask 916480
      %v905 = vsel %vm904, %v899, %v901
      %v906 = vsel %vm904, %v901, %v903
      %v908 = vsel %vm404, %v889, 0
      %v911 = vsel %vm408, %v905, 0
      %v914 = vsel %vm408, %v906, 0
      %916 = vmatpush.bf16.msra.mxu0 0
      %917 = vmatpush.bf16.msra.mxu0 0
      %918 = vmatpush.bf16.msra.mxu0 0
      %919 = vmatpush.bf16.msra.mxu0 0
      %920 = vmatpush.bf16.msra.mxu0 0
      %921 = vmatpush.bf16.msra.mxu0 0
      %922 = vmatpush.bf16.msra.mxu0 0
      %923 = vmatpush.bf16.msra.mxu0 %v911
      %924 = vmatmul.bf16.gmra.mxu0 %v908
      %v925 = vpop.f32.mrf.mxu0
      %v926 = vadd.f32 0.0, %v925
      %v927 = vpop.f32.mrf.mxu0
      %v928 = vadd.f32 0.0, %v927
      %929 = vdwg.mxu0
      %930 = vmatpush.bf16.msra.mxu0 0
      %931 = vmatpush.bf16.msra.mxu0 0
      %932 = vmatpush.bf16.msra.mxu0 0
      %933 = vmatpush.bf16.msra.mxu0 0
      %934 = vmatpush.bf16.msra.mxu0 0
      %935 = vmatpush.bf16.msra.mxu0 0
      %936 = vmatpush.bf16.msra.mxu0 0
      %937 = vmatpush.bf16.msra.mxu0 %v914
      %938 = vmatmul.bf16.gmra.mxu0 %v908
      %v939 = vpop.f32.mrf.mxu0
      %v940 = vadd.f32 0.0, %v939
      %v941 = vpop.f32.mrf.mxu0
      %v942 = vadd.f32 0.0, %v941
      %943 = vdwg.mxu0
      %v944 = vadd.f32 %v878, %v926
      %v945 = vadd.f32 %v879, %v940
      %v946 = vadd.f32 %v880, %v928
      %v947 = vadd.f32 %v881, %v942
      %948 = vrot.lane.b32.xlu0 %v509, 17
      %v949 = vpop.permute.xlu0 %948
      %950 = vrot.lane.b32.xlu0 %v510, 17
      %v951 = vpop.permute.xlu0 %950
      %vm952 = vcmask 138240
      %v953 = vsel %vm952, %v949, %v951
      %v957 = vmul.f32 %v727, %v949
      %v958 = vmul.f32 %v728, %v953
      %v959 = vmul.f32 %v729, %v951
      %v960 = vpack.c.bf16 %v957, %v957
      %v961 = vpack.c.bf16 %v958, %v958
      %v962 = vpack.c.bf16 %v959, %v959
      %s963 = scalar_lea.vmem %s1, 64
      %v964 = vld [vmem:[%s963] sm:$0xf]
      %v965 = vld [vmem:[%s963 + $0x4] sm:$0xf]
      %v968 = vunpack.c.l.b16 %v964
      %v969 = vunpack.c.l.b16 %v965
      %v970 = vpack.c.b16 %v969, %v968
      %974 = vrot.lane.b32.xlu0 %v960, 111
      %v975 = vpop.permute.xlu0 %974
      %976 = vrot.lane.b32.xlu0 %v961, 111
      %v977 = vpop.permute.xlu0 %976
      %978 = vrot.lane.b32.xlu0 %v962, 111
      %v979 = vpop.permute.xlu0 %978
      %vm980 = vcmask 908288
      %v981 = vsel %vm980, %v975, %v977
      %v982 = vsel %vm980, %v977, %v979
      %v984 = vsel %vm404, %v970, 0
      %v987 = vsel %vm408, %v981, 0
      %v990 = vsel %vm408, %v982, 0
      %992 = vmatpush.bf16.msra.mxu0 0
      %993 = vmatpush.bf16.msra.mxu0 0
      %994 = vmatpush.bf16.msra.mxu0 0
      %995 = vmatpush.bf16.msra.mxu0 0
      %996 = vmatpush.bf16.msra.mxu0 0
      %997 = vmatpush.bf16.msra.mxu0 0
      %998 = vmatpush.bf16.msra.mxu0 0
      %999 = vmatpush.bf16.msra.mxu0 %v987
      %1000 = vmatmul.bf16.gmra.mxu0 %v984
      %v1001 = vpop.f32.mrf.mxu0
      %v1002 = vadd.f32 0.0, %v1001
      %v1003 = vpop.f32.mrf.mxu0
      %v1004 = vadd.f32 0.0, %v1003
      %1005 = vdwg.mxu0
      %1006 = vmatpush.bf16.msra.mxu0 0
      %1007 = vmatpush.bf16.msra.mxu0 0
      %1008 = vmatpush.bf16.msra.mxu0 0
      %1009 = vmatpush.bf16.msra.mxu0 0
      %1010 = vmatpush.bf16.msra.mxu0 0
      %1011 = vmatpush.bf16.msra.mxu0 0
      %1012 = vmatpush.bf16.msra.mxu0 0
      %1013 = vmatpush.bf16.msra.mxu0 %v990
      %1014 = vmatmul.bf16.gmra.mxu0 %v984
      %v1015 = vpop.f32.mrf.mxu0
      %v1016 = vadd.f32 0.0, %v1015
      %v1017 = vpop.f32.mrf.mxu0
      %v1018 = vadd.f32 0.0, %v1017
      %1019 = vdwg.mxu0
      %v1020 = vadd.f32 %v944, %v1002
      %v1021 = vadd.f32 %v945, %v1016
      %v1022 = vadd.f32 %v946, %v1004
      %v1023 = vadd.f32 %v947, %v1018
      %v1024 = vld [vmem:[%s4] sm:$0xff]
      %v1025 = vld [vmem:[%s4 + $0x8] sm:$0xff]
      %v1026 = vld [vmem:[%s5] sm:$0xff]
      %v1027 = vld [vmem:[%s5 + $0x8] sm:$0xff]
      %v1028 = vld [vmem:[%s6] sm:$0xff]
      %v1029 = vld [vmem:[%s6 + $0x8] sm:$0xff]
      %v1030 = vmul.f32 %v1020, %v1020
      %v1031 = vmul.f32 %v1021, %v1021
      %v1032 = vmul.f32 %v1022, %v1022
      %v1033 = vmul.f32 %v1023, %v1023
      %1034 = vmatpush.msra.mxu0 1.0
      %1035 = vmatpush.msra.mxu0 1.0
      %1036 = vmatpush.msra.mxu0 1.0
      %1037 = vmatpush.msra.mxu0 1.0
      %1038 = vmatpush.msra.mxu0 1.0
      %1039 = vmatpush.msra.mxu0 1.0
      %1040 = vmatpush.msra.mxu0 1.0
      %1041 = vmatpush.msra.mxu0 1.0
      %1042 = vmatpush.msra.mxu0 1.0
      %1043 = vmatpush.msra.mxu0 1.0
      %1044 = vmatpush.msra.mxu0 1.0
      %1045 = vmatpush.msra.mxu0 1.0
      %1046 = vmatpush.msra.mxu0 1.0
      %1047 = vmatpush.msra.mxu0 1.0
      %1048 = vmatpush.msra.mxu0 1.0
      %1049 = vmatpush.msra.mxu0 1.0
      %1050 = vmatmul.f32.gmra.mxu0 %v1020
      %v1051 = vpop.f32.mrf.mxu0
      %v1052 = vadd.f32 0.0, %v1051
      %1053 = vmatmul.f32.gmra.mxu0 %v1022
      %v1054 = vpop.f32.mrf.mxu0
      %v1055 = vadd.f32 0.0, %v1054
      %1056 = vmatmul.f32.gmra.mxu0 %v1030
      %v1057 = vpop.f32.mrf.mxu0
      %v1058 = vadd.f32 0.0, %v1057
      %1059 = vmatmul.f32.gmra.mxu0 %v1032
      %v1060 = vpop.f32.mrf.mxu0
      %v1061 = vadd.f32 0.0, %v1060
      %1062 = vdwg.mxu0
      %1063 = vmatpush.msra.mxu0 1.0
      %1064 = vmatpush.msra.mxu0 1.0
      %1065 = vmatpush.msra.mxu0 1.0
      %1066 = vmatpush.msra.mxu0 1.0
      %1067 = vmatpush.msra.mxu0 1.0
      %1068 = vmatpush.msra.mxu0 1.0
      %1069 = vmatpush.msra.mxu0 1.0
      %1070 = vmatpush.msra.mxu0 1.0
      %1071 = vmatpush.msra.mxu0 1.0
      %1072 = vmatpush.msra.mxu0 1.0
      %1073 = vmatpush.msra.mxu0 1.0
      %1074 = vmatpush.msra.mxu0 1.0
      %1075 = vmatpush.msra.mxu0 1.0
      %1076 = vmatpush.msra.mxu0 1.0
      %1077 = vmatpush.msra.mxu0 1.0
      %1078 = vmatpush.msra.mxu0 1.0
      %1079 = vmatmul.f32.gmra.mxu0 %v1021
      %v1080 = vpop.f32.mrf.mxu0
      %v1081 = vadd.f32 %v1052, %v1080
      %1082 = vmatmul.f32.gmra.mxu0 %v1023
      %v1083 = vpop.f32.mrf.mxu0
      %v1084 = vadd.f32 %v1055, %v1083
      %1085 = vmatmul.f32.gmra.mxu0 %v1031
      %v1086 = vpop.f32.mrf.mxu0
      %v1087 = vadd.f32 %v1058, %v1086
      %1088 = vmatmul.f32.gmra.mxu0 %v1033
      %v1089 = vpop.f32.mrf.mxu0
      %v1090 = vadd.f32 %v1061, %v1089
      %1091 = vdwg.mxu0
      %v1092 = vmul.f32 %v1024, 256.0
      %v1093 = vmul.f32 %v1025, 256.0
      %v1094 = vadd.f32 %v1081, %v1092
      %v1095 = vadd.f32 %v1084, %v1093
      %v1096 = vmul.f32 %v1024, 2.0
      %v1097 = vmul.f32 %v1025, 2.0
      %v1098 = vmul.f32 %v1096, %v1081
      %v1099 = vmul.f32 %v1097, %v1084
      %v1100 = vadd.f32 %v1087, %v1098
      %v1101 = vadd.f32 %v1090, %v1099
      %v1102 = vmul.f32 %v1092, %v1024
      %v1103 = vmul.f32 %v1093, %v1025
      %v1104 = vadd.f32 %v1100, %v1102
      %v1105 = vadd.f32 %v1101, %v1103
      %1108 = vrot.lane.b32.xlu0 %v1104, 1
      %v1109 = vpop.permute.xlu0 %1108
      %1110 = vrot.lane.b32.xlu0 %v1105, 1
      %v1111 = vpop.permute.xlu0 %1110
      %v1114 = vsel %vm734, %v1094, %v1109
      %v1115 = vsel %vm734, %v1095, %v1111
      %vm1116 = vcmask 130048
      %v1118 = vsel %vm1116, %v335, 0
      %v1121 = vsel %vm1116, %v336, 0
      %1123 = vmatpush.msra.mxu0 0.0
      %1124 = vmatpush.msra.mxu0 0.0
      %1125 = vmatpush.msra.mxu0 0.0
      %1126 = vmatpush.msra.mxu0 0.0
      %1127 = vmatpush.msra.mxu0 0.0
      %1128 = vmatpush.msra.mxu0 0.0
      %1129 = vmatpush.msra.mxu0 0.0
      %1130 = vmatpush.msra.mxu0 0.0
      %1131 = vmatpush.msra.mxu0 0.0
      %1132 = vmatpush.msra.mxu0 0.0
      %1133 = vmatpush.msra.mxu0 0.0
      %1134 = vmatpush.msra.mxu0 0.0
      %1135 = vmatpush.msra.mxu0 0.0
      %1136 = vmatpush.msra.mxu0 0.0
      %1137 = vmatpush.msra.mxu0 %v1115
      %1138 = vmatpush.msra.mxu0 %v1114
      %1139 = vmatmul.f32.gmra.mxu0 %v1118
      %v1140 = vpop.f32.mrf.mxu0
      %v1141 = vadd.f32 0.0, %v1140
      %1142 = vmatmul.f32.gmra.mxu0 %v1121
      %v1143 = vpop.f32.mrf.mxu0
      %v1144 = vadd.f32 0.0, %v1143
      %1145 = vdwg.mxu0
      %v1146 = vmul.f32 %v1141, %v1141
      %v1147 = vmul.f32 %v1144, %v1144
      %1150 = vrot.lane.b32.xlu0 %v1146, 1
      %v1151 = vpop.permute.xlu0 %1150
      %1152 = vrot.lane.b32.xlu0 %v1147, 1
      %v1153 = vpop.permute.xlu0 %1152
      %v1156 = vsub.f32 %v1141, %v1151
      %v1157 = vsub.f32 %v1144, %v1153
      %v1158 = vmax.f32 %v1156, 0.0
      %v1159 = vmax.f32 %v1157, 0.0
      %v1160 = vadd.f32 %v1158, 1e-05
      %v1161 = vadd.f32 %v1159, 1e-05
      %v1162 = vrsqrt.pop %v1160
      %v1163 = vmul.f32 %v1162, %v1160
      %v1164 = vmul.f32 %v1163, %v1162
      %v1165 = vmul.f32 0.5, %v1164
      %v1166 = vsub.f32 1.5, %v1165
      %v1167 = vmul.f32 %v1162, %v1166
      %vm1168 = vweird.f32 %v1160
      %vm1169 = vweird.f32 %v1162
      %vm1170 = vmor %vm1168, %vm1169
      %v1171 = vsel %vm1170, %v1162, %v1167
      %v1172 = vrsqrt.pop %v1161
      %v1173 = vmul.f32 %v1172, %v1161
      %v1174 = vmul.f32 %v1173, %v1172
      %v1175 = vmul.f32 0.5, %v1174
      %v1176 = vsub.f32 1.5, %v1175
      %v1177 = vmul.f32 %v1172, %v1176
      %vm1178 = vweird.f32 %v1161
      %vm1179 = vweird.f32 %v1172
      %vm1180 = vmor %vm1178, %vm1179
      %v1181 = vsel %vm1180, %v1172, %v1177
      %1184 = vrot.lane.b32.xlu0 %v1026, 1
      %v1185 = vpop.permute.xlu0 %1184
      %1186 = vrot.lane.b32.xlu0 %v1027, 1
      %v1187 = vpop.permute.xlu0 %1186
      %v1190 = vmul.f32 %v1171, %v1185
      %v1191 = vmul.f32 %v1181, %v1187
      %v1192 = vsub.f32 %v1024, %v1141
      %v1193 = vsub.f32 %v1025, %v1144
      %1196 = vrot.lane.b32.xlu0 %v1190, 127
      %v1197 = vpop.permute.xlu0 %1196
      %1198 = vrot.lane.b32.xlu0 %v1191, 127
      %v1199 = vpop.permute.xlu0 %1198
      %v1202 = vmul.f32 %v1192, %v1197
      %v1203 = vmul.f32 %v1193, %v1199
      %v1204 = vadd.f32 %v1202, %v1028
      %v1205 = vadd.f32 %v1203, %v1029
      %1206 = vset.pattern.permute.xlu0 1
      %1207 = vperm.xlu0 %1206, %v1190
      %v1208 = vpop.permute.xlu0 %1207
      %1210 = vset.pattern.permute.xlu0 1
      %1211 = vperm.xlu0 %1210, %v1191
      %v1212 = vpop.permute.xlu0 %1211
      %v1214 = vmul.f32 %v1020, %v1208
      %v1215 = vmul.f32 %v1021, %v1208
      %v1216 = vmul.f32 %v1022, %v1212
      %v1217 = vmul.f32 %v1023, %v1212
      %1219 = vset.pattern.permute.xlu0 0
      %1220 = vperm.xlu0 %1219, %v1204
      %v1221 = vpop.permute.xlu0 %1220
      %1224 = vset.pattern.permute.xlu0 0
      %1225 = vperm.xlu0 %1224, %v1205
      %v1226 = vpop.permute.xlu0 %1225
      %v1228 = vadd.f32 %v1214, %v1221
      %v1229 = vadd.f32 %v1215, %v1221
      %v1230 = vadd.f32 %v1216, %v1226
      %v1231 = vadd.f32 %v1217, %v1226
      %v1232 = vmax.f32 %v1228, 0.0
      %v1233 = vmax.f32 %v1229, 0.0
      %v1234 = vmax.f32 %v1230, 0.0
      %v1235 = vmax.f32 %v1231, 0.0
      %v1236 = vpack.c.bf16 %v1233, %v1232
      %v1237 = vpack.c.bf16 %v1235, %v1234
      %1238 = vst [vmem:[#allocation2 + $0x4] sm:$0xff] %v1236
      %1239 = vst [vmem:[#allocation2 + $0x14] sm:$0xff] %v1237
      %v1240 = vld [vmem:[#allocation2] sm:$0xff]
      %v1241 = vld [vmem:[#allocation2 + $0x8] sm:$0xf]
      %v1242 = vld [vmem:[#allocation2 + $0x10] sm:$0xff]
      %v1243 = vld [vmem:[#allocation2 + $0x18] sm:$0xf]
      %1244 = vst [vmem:[#allocation1] ss:$4 sm:$0xff] %v334
      %v1245 = vld.sshfl [vmem:[#allocation1] sm:$0xff pattern:$0x73625140]
      %v1246 = vld.sshfl [vmem:[#allocation1 + $0x8] sm:$0xff pattern:$0x73625140]
      %v1247 = vpack.i.b16 %v1245, %v1245
      %v1249 = vperm.slane %v1247, 0
      %v1250 = vpack.i.b16 %v1246, %v1246
      %v1252 = vperm.slane %v1250, 0
      %v1253 = vunpack.c.l.bf16 %v1240
      %v1254 = vunpack.c.h.bf16 %v1240
      %v1255 = vunpack.c.l.bf16 %v1241
      %v1256 = vunpack.c.l.bf16 %v1242
      %v1257 = vunpack.c.h.bf16 %v1242
      %v1258 = vunpack.c.l.bf16 %v1243
      %v1259 = vunpack.c.l.bf16 %v1249
      %v1260 = vunpack.c.l.bf16 %v1252
      %1263 = vrot.lane.b32.xlu0 %v1259, 111
      %v1264 = vpop.permute.xlu0 %1263
      %1265 = vrot.lane.b32.xlu0 %v1260, 111
      %v1266 = vpop.permute.xlu0 %1265
      %v1267 = vsel %vm364, %v1264, %v1266
      %v1271 = vmul.f32 %v1253, %v1264
      %v1272 = vmul.f32 %v1254, %v1267
      %v1273 = vmul.f32 %v1255, %v1266
      %v1274 = vmul.f32 %v1256, %v1264
      %v1275 = vmul.f32 %v1257, %v1267
      %v1276 = vmul.f32 %v1258, %v1266
      %v1277 = vpack.c.bf16 %v1274, %v1271
      %v1278 = vpack.c.bf16 %v1275, %v1272
      %v1279 = vpack.c.bf16 %v1276, %v1273
      %v1280 = vld [vmem:[%s2] sm:$0xf]
      %v1281 = vld [vmem:[%s2 + $0x4] sm:$0xf]
      %v1282 = vld [vmem:[#allocation2] sm:$0xff]
      %v1283 = vld [vmem:[#allocation2 + $0x8] sm:$0xf]
      %v1284 = vld [vmem:[#allocation2 + $0x10] sm:$0xff]
      %v1285 = vld [vmem:[#allocation2 + $0x18] sm:$0xf]
      %s1286 = scalar_lea.vmem %s2, 8
      %v1287 = vld [vmem:[%s1286] sm:$0xf]
      %v1288 = vld [vmem:[%s1286 + $0x4] sm:$0xf]
      %v1291 = vunpack.c.l.b16 %v1287
      %v1292 = vunpack.c.l.b16 %v1288
      %v1293 = vpack.c.b16 %v1292, %v1291
      %v1298 = vunpack.c.l.b16 %v1282
      %v1299 = vunpack.c.h.b16 %v1282
      %v1300 = vunpack.c.l.b16 %v1283
      %v1301 = vunpack.c.l.b16 %v1284
      %v1302 = vunpack.c.h.b16 %v1284
      %v1303 = vunpack.c.l.b16 %v1285
      %v1304 = vpack.c.b16 %v1301, %v1298
      %v1305 = vpack.c.b16 %v1302, %v1299
      %v1306 = vpack.c.b16 %v1303, %v1300
      %1307 = vrot.lane.b32.xlu0 %v1304, 16
      %v1308 = vpop.permute.xlu0 %1307
      %1309 = vrot.lane.b32.xlu0 %v1305, 16
      %v1310 = vpop.permute.xlu0 %1309
      %1311 = vrot.lane.b32.xlu0 %v1306, 16
      %v1312 = vpop.permute.xlu0 %1311
      %v1313 = vsel %vm401, %v1308, %v1310
      %v1314 = vsel %vm401, %v1310, %v1312
      %v1318 = vsel %vm1116, %v1293, 0
      %1320 = vmatpush.bf16.msra.mxu0 0
      %1321 = vmatpush.bf16.msra.mxu0 0
      %1322 = vmatpush.bf16.msra.mxu0 0
      %1323 = vmatpush.bf16.msra.mxu0 0
      %1324 = vmatpush.bf16.msra.mxu0 0
      %1325 = vmatpush.bf16.msra.mxu0 0
      %1326 = vmatpush.bf16.msra.mxu0 0
      %1327 = vmatpush.bf16.msra.mxu0 %v1313
      %1328 = vmatmul.bf16.gmra.mxu0 %v1318
      %v1329 = vpop.f32.mrf.mxu0
      %v1330 = vadd.f32 0.0, %v1329
      %v1331 = vpop.f32.mrf.mxu0
      %v1332 = vadd.f32 0.0, %v1331
      %1333 = vdwg.mxu0
      %1334 = vmatpush.bf16.msra.mxu0 0
      %1335 = vmatpush.bf16.msra.mxu0 0
      %1336 = vmatpush.bf16.msra.mxu0 0
      %1337 = vmatpush.bf16.msra.mxu0 0
      %1338 = vmatpush.bf16.msra.mxu0 0
      %1339 = vmatpush.bf16.msra.mxu0 0
      %1340 = vmatpush.bf16.msra.mxu0 0
      %1341 = vmatpush.bf16.msra.mxu0 %v1314
      %1342 = vmatmul.bf16.gmra.mxu0 %v1318
      %v1343 = vpop.f32.mrf.mxu0
      %v1344 = vadd.f32 0.0, %v1343
      %v1345 = vpop.f32.mrf.mxu0
      %v1346 = vadd.f32 0.0, %v1345
      %1347 = vdwg.mxu0
      %v1350 = vunpack.c.l.b16 %v1280
      %v1351 = vunpack.c.l.b16 %v1281
      %v1352 = vpack.c.b16 %v1351, %v1350
      %1356 = vrot.lane.b32.xlu0 %v1277, 17
      %v1357 = vpop.permute.xlu0 %1356
      %1358 = vrot.lane.b32.xlu0 %v1278, 17
      %v1359 = vpop.permute.xlu0 %1358
      %1360 = vrot.lane.b32.xlu0 %v1279, 17
      %v1361 = vpop.permute.xlu0 %1360
      %v1362 = vsel %vm457, %v1357, %v1359
      %v1363 = vsel %vm457, %v1359, %v1361
      %v1367 = vsel %vm1116, %v1352, 0
      %1369 = vmatpush.bf16.msra.mxu0 0
      %1370 = vmatpush.bf16.msra.mxu0 0
      %1371 = vmatpush.bf16.msra.mxu0 0
      %1372 = vmatpush.bf16.msra.mxu0 0
      %1373 = vmatpush.bf16.msra.mxu0 0
      %1374 = vmatpush.bf16.msra.mxu0 0
      %1375 = vmatpush.bf16.msra.mxu0 0
      %1376 = vmatpush.bf16.msra.mxu0 %v1362
      %1377 = vmatmul.bf16.gmra.mxu0 %v1367
      %v1378 = vpop.f32.mrf.mxu0
      %v1379 = vadd.f32 %v1330, %v1378
      %v1380 = vpop.f32.mrf.mxu0
      %v1381 = vadd.f32 %v1332, %v1380
      %1382 = vdwg.mxu0
      %1383 = vmatpush.bf16.msra.mxu0 0
      %1384 = vmatpush.bf16.msra.mxu0 0
      %1385 = vmatpush.bf16.msra.mxu0 0
      %1386 = vmatpush.bf16.msra.mxu0 0
      %1387 = vmatpush.bf16.msra.mxu0 0
      %1388 = vmatpush.bf16.msra.mxu0 0
      %1389 = vmatpush.bf16.msra.mxu0 0
      %1390 = vmatpush.bf16.msra.mxu0 %v1363
      %1391 = vmatmul.bf16.gmra.mxu0 %v1367
      %v1392 = vpop.f32.mrf.mxu0
      %v1393 = vadd.f32 %v1344, %v1392
      %v1394 = vpop.f32.mrf.mxu0
      %v1395 = vadd.f32 %v1346, %v1394
      %1396 = vdwg.mxu0
      %1397 = vst [vmem:[#allocation1] ss:$4 sm:$0xff] %v334
      %v1398 = vld.sshfl [vmem:[#allocation1] sm:$0xff pattern:$0x73625140]
      %v1399 = vld.sshfl [vmem:[#allocation1 + $0x8] sm:$0xff pattern:$0x73625140]
      %v1400 = vpack.i.b16 %v1398, %v1398
      %v1402 = vperm.slane %v1400, 1
      %v1403 = vpack.i.b16 %v1399, %v1399
      %v1405 = vperm.slane %v1403, 1
      %v1406 = vunpack.c.l.bf16 %v1282
      %v1407 = vunpack.c.h.bf16 %v1282
      %v1408 = vunpack.c.l.bf16 %v1283
      %v1409 = vunpack.c.l.bf16 %v1284
      %v1410 = vunpack.c.h.bf16 %v1284
      %v1411 = vunpack.c.l.bf16 %v1285
      %v1412 = vunpack.c.l.bf16 %v1402
      %v1413 = vunpack.c.l.bf16 %v1405
      %1416 = vrot.lane.b32.xlu0 %v1412, 113
      %v1417 = vpop.permute.xlu0 %1416
      %1418 = vrot.lane.b32.xlu0 %v1413, 113
      %v1419 = vpop.permute.xlu0 %1418
      %v1420 = vsel %vm517, %v1417, %v1419
      %v1424 = vmul.f32 %v1406, %v1417
      %v1425 = vmul.f32 %v1407, %v1420
      %v1426 = vmul.f32 %v1408, %v1419
      %v1427 = vmul.f32 %v1409, %v1417
      %v1428 = vmul.f32 %v1410, %v1420
      %v1429 = vmul.f32 %v1411, %v1419
      %v1430 = vpack.c.bf16 %v1427, %v1424
      %v1431 = vpack.c.bf16 %v1428, %v1425
      %v1432 = vpack.c.bf16 %v1429, %v1426
      %s1433 = scalar_lea.vmem %s2, 16
      %v1434 = vld [vmem:[%s1433] sm:$0xf]
      %v1435 = vld [vmem:[%s1433 + $0x4] sm:$0xf]
      %v1438 = vunpack.c.l.b16 %v1434
      %v1439 = vunpack.c.l.b16 %v1435
      %v1440 = vpack.c.b16 %v1439, %v1438
      %1444 = vrot.lane.b32.xlu0 %v1430, 15
      %v1445 = vpop.permute.xlu0 %1444
      %1446 = vrot.lane.b32.xlu0 %v1431, 15
      %v1447 = vpop.permute.xlu0 %1446
      %1448 = vrot.lane.b32.xlu0 %v1432, 15
      %v1449 = vpop.permute.xlu0 %1448
      %v1450 = vsel %vm545, %v1445, %v1447
      %v1451 = vsel %vm545, %v1447, %v1449
      %v1455 = vsel %vm1116, %v1440, 0
      %1457 = vmatpush.bf16.msra.mxu0 0
      %1458 = vmatpush.bf16.msra.mxu0 0
      %1459 = vmatpush.bf16.msra.mxu0 0
      %1460 = vmatpush.bf16.msra.mxu0 0
      %1461 = vmatpush.bf16.msra.mxu0 0
      %1462 = vmatpush.bf16.msra.mxu0 0
      %1463 = vmatpush.bf16.msra.mxu0 0
      %1464 = vmatpush.bf16.msra.mxu0 %v1450
      %1465 = vmatmul.bf16.gmra.mxu0 %v1455
      %v1466 = vpop.f32.mrf.mxu0
      %v1467 = vadd.f32 0.0, %v1466
      %v1468 = vpop.f32.mrf.mxu0
      %v1469 = vadd.f32 0.0, %v1468
      %1470 = vdwg.mxu0
      %1471 = vmatpush.bf16.msra.mxu0 0
      %1472 = vmatpush.bf16.msra.mxu0 0
      %1473 = vmatpush.bf16.msra.mxu0 0
      %1474 = vmatpush.bf16.msra.mxu0 0
      %1475 = vmatpush.bf16.msra.mxu0 0
      %1476 = vmatpush.bf16.msra.mxu0 0
      %1477 = vmatpush.bf16.msra.mxu0 0
      %1478 = vmatpush.bf16.msra.mxu0 %v1451
      %1479 = vmatmul.bf16.gmra.mxu0 %v1455
      %v1480 = vpop.f32.mrf.mxu0
      %v1481 = vadd.f32 0.0, %v1480
      %v1482 = vpop.f32.mrf.mxu0
      %v1483 = vadd.f32 0.0, %v1482
      %1484 = vdwg.mxu0
      %v1485 = vadd.f32 %v1379, %v1467
      %v1486 = vadd.f32 %v1393, %v1481
      %v1487 = vadd.f32 %v1381, %v1469
      %v1488 = vadd.f32 %v1395, %v1483
      %v1489 = vld [vmem:[#allocation2] sm:$0xff]
      %v1490 = vld [vmem:[#allocation2 + $0x8] sm:$0xf]
      %v1491 = vld [vmem:[#allocation2 + $0x10] sm:$0xff]
      %v1492 = vld [vmem:[#allocation2 + $0x18] sm:$0xf]
      %v1493 = vunpack.c.l.bf16 %v1489
      %v1494 = vunpack.c.h.bf16 %v1489
      %v1495 = vunpack.c.l.bf16 %v1490
      %v1496 = vunpack.c.l.bf16 %v1491
      %v1497 = vunpack.c.h.bf16 %v1491
      %v1498 = vunpack.c.l.bf16 %v1492
      %1499 = vrot.lane.b32.xlu0 %v1259, 127
      %v1500 = vpop.permute.xlu0 %1499
      %1501 = vrot.lane.b32.xlu0 %v1260, 127
      %v1502 = vpop.permute.xlu0 %1501
      %v1503 = vsel %vm598, %v1500, %v1502
      %v1507 = vmul.f32 %v1493, %v1500
      %v1508 = vmul.f32 %v1494, %v1503
      %v1509 = vmul.f32 %v1495, %v1502
      %v1510 = vmul.f32 %v1496, %v1500
      %v1511 = vmul.f32 %v1497, %v1503
      %v1512 = vmul.f32 %v1498, %v1502
      %v1513 = vpack.c.bf16 %v1510, %v1507
      %v1514 = vpack.c.bf16 %v1511, %v1508
      %v1515 = vpack.c.bf16 %v1512, %v1509
      %s1516 = scalar_lea.vmem %s2, 24
      %v1517 = vld [vmem:[%s1516] sm:$0xf]
      %v1518 = vld [vmem:[%s1516 + $0x4] sm:$0xf]
      %v1521 = vunpack.c.l.b16 %v1517
      %v1522 = vunpack.c.l.b16 %v1518
      %v1523 = vpack.c.b16 %v1522, %v1521
      %1527 = vrot.lane.b32.xlu0 %v1513, 1
      %v1528 = vpop.permute.xlu0 %1527
      %1529 = vrot.lane.b32.xlu0 %v1514, 1
      %v1530 = vpop.permute.xlu0 %1529
      %1531 = vrot.lane.b32.xlu0 %v1515, 1
      %v1532 = vpop.permute.xlu0 %1531
      %v1533 = vsel %vm626, %v1528, %v1530
      %v1534 = vsel %vm626, %v1530, %v1532
      %v1538 = vsel %vm1116, %v1523, 0
      %1540 = vmatpush.bf16.msra.mxu0 0
      %1541 = vmatpush.bf16.msra.mxu0 0
      %1542 = vmatpush.bf16.msra.mxu0 0
      %1543 = vmatpush.bf16.msra.mxu0 0
      %1544 = vmatpush.bf16.msra.mxu0 0
      %1545 = vmatpush.bf16.msra.mxu0 0
      %1546 = vmatpush.bf16.msra.mxu0 0
      %1547 = vmatpush.bf16.msra.mxu0 %v1533
      %1548 = vmatmul.bf16.gmra.mxu0 %v1538
      %v1549 = vpop.f32.mrf.mxu0
      %v1550 = vadd.f32 0.0, %v1549
      %v1551 = vpop.f32.mrf.mxu0
      %v1552 = vadd.f32 0.0, %v1551
      %1553 = vdwg.mxu0
      %1554 = vmatpush.bf16.msra.mxu0 0
      %1555 = vmatpush.bf16.msra.mxu0 0
      %1556 = vmatpush.bf16.msra.mxu0 0
      %1557 = vmatpush.bf16.msra.mxu0 0
      %1558 = vmatpush.bf16.msra.mxu0 0
      %1559 = vmatpush.bf16.msra.mxu0 0
      %1560 = vmatpush.bf16.msra.mxu0 0
      %1561 = vmatpush.bf16.msra.mxu0 %v1534
      %1562 = vmatmul.bf16.gmra.mxu0 %v1538
      %v1563 = vpop.f32.mrf.mxu0
      %v1564 = vadd.f32 0.0, %v1563
      %v1565 = vpop.f32.mrf.mxu0
      %v1566 = vadd.f32 0.0, %v1565
      %1567 = vdwg.mxu0
      %v1568 = vadd.f32 %v1485, %v1550
      %v1569 = vadd.f32 %v1486, %v1564
      %v1570 = vadd.f32 %v1487, %v1552
      %v1571 = vadd.f32 %v1488, %v1566
      %v1572 = vld [vmem:[#allocation2 + $0x4] sm:$0xff]
      %v1573 = vld [vmem:[#allocation2 + $0x14] sm:$0xff]
      %s1574 = scalar_lea.vmem %s2, 32
      %v1575 = vld [vmem:[%s1574] sm:$0xf]
      %v1576 = vld [vmem:[%s1574 + $0x4] sm:$0xf]
      %v1579 = vunpack.c.l.b16 %v1575
      %v1580 = vunpack.c.l.b16 %v1576
      %v1581 = vpack.c.b16 %v1580, %v1579
      %v1584 = vunpack.c.l.b16 %v1572
      %v1585 = vunpack.c.h.b16 %v1572
      %v1586 = vunpack.c.l.b16 %v1573
      %v1587 = vunpack.c.h.b16 %v1573
      %v1588 = vpack.c.b16 %v1586, %v1584
      %v1589 = vpack.c.b16 %v1587, %v1585
      %v1593 = vsel %vm1116, %v1581, 0
      %1595 = vmatpush.bf16.msra.mxu0 0
      %1596 = vmatpush.bf16.msra.mxu0 0
      %1597 = vmatpush.bf16.msra.mxu0 0
      %1598 = vmatpush.bf16.msra.mxu0 0
      %1599 = vmatpush.bf16.msra.mxu0 0
      %1600 = vmatpush.bf16.msra.mxu0 0
      %1601 = vmatpush.bf16.msra.mxu0 0
      %1602 = vmatpush.bf16.msra.mxu0 %v1588
      %1603 = vmatmul.bf16.gmra.mxu0 %v1593
      %v1604 = vpop.f32.mrf.mxu0
      %v1605 = vadd.f32 0.0, %v1604
      %v1606 = vpop.f32.mrf.mxu0
      %v1607 = vadd.f32 0.0, %v1606
      %1608 = vdwg.mxu0
      %1609 = vmatpush.bf16.msra.mxu0 0
      %1610 = vmatpush.bf16.msra.mxu0 0
      %1611 = vmatpush.bf16.msra.mxu0 0
      %1612 = vmatpush.bf16.msra.mxu0 0
      %1613 = vmatpush.bf16.msra.mxu0 0
      %1614 = vmatpush.bf16.msra.mxu0 0
      %1615 = vmatpush.bf16.msra.mxu0 0
      %1616 = vmatpush.bf16.msra.mxu0 %v1589
      %1617 = vmatmul.bf16.gmra.mxu0 %v1593
      %v1618 = vpop.f32.mrf.mxu0
      %v1619 = vadd.f32 0.0, %v1618
      %v1620 = vpop.f32.mrf.mxu0
      %v1621 = vadd.f32 0.0, %v1620
      %1622 = vdwg.mxu0
      %v1623 = vadd.f32 %v1568, %v1605
      %v1624 = vadd.f32 %v1569, %v1619
      %v1625 = vadd.f32 %v1570, %v1607
      %v1626 = vadd.f32 %v1571, %v1621
      %v1627 = vld [vmem:[#allocation2 + $0x4] sm:$0xff]
      %v1628 = vld [vmem:[#allocation2 + $0xc] sm:$0xf]
      %v1629 = vld [vmem:[#allocation2 + $0x14] sm:$0xff]
      %v1630 = vld [vmem:[#allocation2 + $0x1c] sm:$0xf]
      %v1631 = vunpack.c.l.bf16 %v1627
      %v1632 = vunpack.c.h.bf16 %v1627
      %v1633 = vunpack.c.l.bf16 %v1628
      %v1634 = vunpack.c.l.bf16 %v1629
      %v1635 = vunpack.c.h.bf16 %v1629
      %v1636 = vunpack.c.l.bf16 %v1630
      %1637 = vrot.lane.b32.xlu0 %v1412, 1
      %v1638 = vpop.permute.xlu0 %1637
      %1639 = vrot.lane.b32.xlu0 %v1413, 1
      %v1640 = vpop.permute.xlu0 %1639
      %v1641 = vsel %vm734, %v1638, %v1640
      %v1645 = vmul.f32 %v1631, %v1638
      %v1646 = vmul.f32 %v1632, %v1641
      %v1647 = vmul.f32 %v1633, %v1640
      %v1648 = vmul.f32 %v1634, %v1638
      %v1649 = vmul.f32 %v1635, %v1641
      %v1650 = vmul.f32 %v1636, %v1640
      %v1651 = vpack.c.bf16 %v1648, %v1645
      %v1652 = vpack.c.bf16 %v1649, %v1646
      %v1653 = vpack.c.bf16 %v1650, %v1647
      %s1654 = scalar_lea.vmem %s2, 40
      %v1655 = vld [vmem:[%s1654] sm:$0xf]
      %v1656 = vld [vmem:[%s1654 + $0x4] sm:$0xf]
      %v1659 = vunpack.c.l.b16 %v1655
      %v1660 = vunpack.c.l.b16 %v1656
      %v1661 = vpack.c.b16 %v1660, %v1659
      %1665 = vrot.lane.b32.xlu0 %v1651, 127
      %v1666 = vpop.permute.xlu0 %1665
      %1667 = vrot.lane.b32.xlu0 %v1652, 127
      %v1668 = vpop.permute.xlu0 %1667
      %1669 = vrot.lane.b32.xlu0 %v1653, 127
      %v1670 = vpop.permute.xlu0 %1669
      %v1671 = vsel %vm762, %v1666, %v1668
      %v1672 = vsel %vm762, %v1668, %v1670
      %v1676 = vsel %vm1116, %v1661, 0
      %1678 = vmatpush.bf16.msra.mxu0 0
      %1679 = vmatpush.bf16.msra.mxu0 0
      %1680 = vmatpush.bf16.msra.mxu0 0
      %1681 = vmatpush.bf16.msra.mxu0 0
      %1682 = vmatpush.bf16.msra.mxu0 0
      %1683 = vmatpush.bf16.msra.mxu0 0
      %1684 = vmatpush.bf16.msra.mxu0 0
      %1685 = vmatpush.bf16.msra.mxu0 %v1671
      %1686 = vmatmul.bf16.gmra.mxu0 %v1676
      %v1687 = vpop.f32.mrf.mxu0
      %v1688 = vadd.f32 0.0, %v1687
      %v1689 = vpop.f32.mrf.mxu0
      %v1690 = vadd.f32 0.0, %v1689
      %1691 = vdwg.mxu0
      %1692 = vmatpush.bf16.msra.mxu0 0
      %1693 = vmatpush.bf16.msra.mxu0 0
      %1694 = vmatpush.bf16.msra.mxu0 0
      %1695 = vmatpush.bf16.msra.mxu0 0
      %1696 = vmatpush.bf16.msra.mxu0 0
      %1697 = vmatpush.bf16.msra.mxu0 0
      %1698 = vmatpush.bf16.msra.mxu0 0
      %1699 = vmatpush.bf16.msra.mxu0 %v1672
      %1700 = vmatmul.bf16.gmra.mxu0 %v1676
      %v1701 = vpop.f32.mrf.mxu0
      %v1702 = vadd.f32 0.0, %v1701
      %v1703 = vpop.f32.mrf.mxu0
      %v1704 = vadd.f32 0.0, %v1703
      %1705 = vdwg.mxu0
      %v1706 = vadd.f32 %v1623, %v1688
      %v1707 = vadd.f32 %v1624, %v1702
      %v1708 = vadd.f32 %v1625, %v1690
      %v1709 = vadd.f32 %v1626, %v1704
      %1710 = vrot.lane.b32.xlu0 %v1259, 15
      %v1711 = vpop.permute.xlu0 %1710
      %1712 = vrot.lane.b32.xlu0 %v1260, 15
      %v1713 = vpop.permute.xlu0 %1712
      %v1714 = vsel %vm810, %v1711, %v1713
      %v1718 = vmul.f32 %v1631, %v1711
      %v1719 = vmul.f32 %v1632, %v1714
      %v1720 = vmul.f32 %v1633, %v1713
      %v1721 = vmul.f32 %v1634, %v1711
      %v1722 = vmul.f32 %v1635, %v1714
      %v1723 = vmul.f32 %v1636, %v1713
      %v1724 = vpack.c.bf16 %v1721, %v1718
      %v1725 = vpack.c.bf16 %v1722, %v1719
      %v1726 = vpack.c.bf16 %v1723, %v1720
      %s1727 = scalar_lea.vmem %s2, 48
      %v1728 = vld [vmem:[%s1727] sm:$0xf]
      %v1729 = vld [vmem:[%s1727 + $0x4] sm:$0xf]
      %v1732 = vunpack.c.l.b16 %v1728
      %v1733 = vunpack.c.l.b16 %v1729
      %v1734 = vpack.c.b16 %v1733, %v1732
      %1738 = vrot.lane.b32.xlu0 %v1724, 113
      %v1739 = vpop.permute.xlu0 %1738
      %1740 = vrot.lane.b32.xlu0 %v1725, 113
      %v1741 = vpop.permute.xlu0 %1740
      %1742 = vrot.lane.b32.xlu0 %v1726, 113
      %v1743 = vpop.permute.xlu0 %1742
      %v1744 = vsel %vm838, %v1739, %v1741
      %v1745 = vsel %vm838, %v1741, %v1743
      %v1749 = vsel %vm1116, %v1734, 0
      %1751 = vmatpush.bf16.msra.mxu0 0
      %1752 = vmatpush.bf16.msra.mxu0 0
      %1753 = vmatpush.bf16.msra.mxu0 0
      %1754 = vmatpush.bf16.msra.mxu0 0
      %1755 = vmatpush.bf16.msra.mxu0 0
      %1756 = vmatpush.bf16.msra.mxu0 0
      %1757 = vmatpush.bf16.msra.mxu0 0
      %1758 = vmatpush.bf16.msra.mxu0 %v1744
      %1759 = vmatmul.bf16.gmra.mxu0 %v1749
      %v1760 = vpop.f32.mrf.mxu0
      %v1761 = vadd.f32 0.0, %v1760
      %v1762 = vpop.f32.mrf.mxu0
      %v1763 = vadd.f32 0.0, %v1762
      %1764 = vdwg.mxu0
      %1765 = vmatpush.bf16.msra.mxu0 0
      %1766 = vmatpush.bf16.msra.mxu0 0
      %1767 = vmatpush.bf16.msra.mxu0 0
      %1768 = vmatpush.bf16.msra.mxu0 0
      %1769 = vmatpush.bf16.msra.mxu0 0
      %1770 = vmatpush.bf16.msra.mxu0 0
      %1771 = vmatpush.bf16.msra.mxu0 0
      %1772 = vmatpush.bf16.msra.mxu0 %v1745
      %1773 = vmatmul.bf16.gmra.mxu0 %v1749
      %v1774 = vpop.f32.mrf.mxu0
      %v1775 = vadd.f32 0.0, %v1774
      %v1776 = vpop.f32.mrf.mxu0
      %v1777 = vadd.f32 0.0, %v1776
      %1778 = vdwg.mxu0
      %v1779 = vadd.f32 %v1706, %v1761
      %v1780 = vadd.f32 %v1707, %v1775
      %v1781 = vadd.f32 %v1708, %v1763
      %v1782 = vadd.f32 %v1709, %v1777
      %s1783 = scalar_lea.vmem %s2, 56
      %v1784 = vld [vmem:[%s1783] sm:$0xf]
      %v1785 = vld [vmem:[%s1783 + $0x4] sm:$0xf]
      %v1788 = vunpack.c.l.b16 %v1784
      %v1789 = vunpack.c.l.b16 %v1785
      %v1790 = vpack.c.b16 %v1789, %v1788
      %v1795 = vunpack.c.l.b16 %v1627
      %v1796 = vunpack.c.h.b16 %v1627
      %v1797 = vunpack.c.l.b16 %v1628
      %v1798 = vunpack.c.l.b16 %v1629
      %v1799 = vunpack.c.h.b16 %v1629
      %v1800 = vunpack.c.l.b16 %v1630
      %v1801 = vpack.c.b16 %v1798, %v1795
      %v1802 = vpack.c.b16 %v1799, %v1796
      %v1803 = vpack.c.b16 %v1800, %v1797
      %1804 = vrot.lane.b32.xlu0 %v1801, 112
      %v1805 = vpop.permute.xlu0 %1804
      %1806 = vrot.lane.b32.xlu0 %v1802, 112
      %v1807 = vpop.permute.xlu0 %1806
      %1808 = vrot.lane.b32.xlu0 %v1803, 112
      %v1809 = vpop.permute.xlu0 %1808
      %v1810 = vsel %vm904, %v1805, %v1807
      %v1811 = vsel %vm904, %v1807, %v1809
      %v1815 = vsel %vm1116, %v1790, 0
      %1817 = vmatpush.bf16.msra.mxu0 0
      %1818 = vmatpush.bf16.msra.mxu0 0
      %1819 = vmatpush.bf16.msra.mxu0 0
      %1820 = vmatpush.bf16.msra.mxu0 0
      %1821 = vmatpush.bf16.msra.mxu0 0
      %1822 = vmatpush.bf16.msra.mxu0 0
      %1823 = vmatpush.bf16.msra.mxu0 0
      %1824 = vmatpush.bf16.msra.mxu0 %v1810
      %1825 = vmatmul.bf16.gmra.mxu0 %v1815
      %v1826 = vpop.f32.mrf.mxu0
      %v1827 = vadd.f32 0.0, %v1826
      %v1828 = vpop.f32.mrf.mxu0
      %v1829 = vadd.f32 0.0, %v1828
      %1830 = vdwg.mxu0
      %1831 = vmatpush.bf16.msra.mxu0 0
      %1832 = vmatpush.bf16.msra.mxu0 0
      %1833 = vmatpush.bf16.msra.mxu0 0
      %1834 = vmatpush.bf16.msra.mxu0 0
      %1835 = vmatpush.bf16.msra.mxu0 0
      %1836 = vmatpush.bf16.msra.mxu0 0
      %1837 = vmatpush.bf16.msra.mxu0 0
      %1838 = vmatpush.bf16.msra.mxu0 %v1811
      %1839 = vmatmul.bf16.gmra.mxu0 %v1815
      %v1840 = vpop.f32.mrf.mxu0
      %v1841 = vadd.f32 0.0, %v1840
      %v1842 = vpop.f32.mrf.mxu0
      %v1843 = vadd.f32 0.0, %v1842
      %1844 = vdwg.mxu0
      %v1845 = vadd.f32 %v1779, %v1827
      %v1846 = vadd.f32 %v1780, %v1841
      %v1847 = vadd.f32 %v1781, %v1829
      %v1848 = vadd.f32 %v1782, %v1843
      %1849 = vrot.lane.b32.xlu0 %v1412, 17
      %v1850 = vpop.permute.xlu0 %1849
      %1851 = vrot.lane.b32.xlu0 %v1413, 17
      %v1852 = vpop.permute.xlu0 %1851
      %v1853 = vsel %vm952, %v1850, %v1852
      %v1857 = vmul.f32 %v1631, %v1850
      %v1858 = vmul.f32 %v1632, %v1853
      %v1859 = vmul.f32 %v1633, %v1852
      %v1860 = vmul.f32 %v1634, %v1850
      %v1861 = vmul.f32 %v1635, %v1853
      %v1862 = vmul.f32 %v1636, %v1852
      %v1863 = vpack.c.bf16 %v1860, %v1857
      %v1864 = vpack.c.bf16 %v1861, %v1858
      %v1865 = vpack.c.bf16 %v1862, %v1859
      %s1866 = scalar_lea.vmem %s2, 64
      %v1867 = vld [vmem:[%s1866] sm:$0xf]
      %v1868 = vld [vmem:[%s1866 + $0x4] sm:$0xf]
      %v1871 = vunpack.c.l.b16 %v1867
      %v1872 = vunpack.c.l.b16 %v1868
      %v1873 = vpack.c.b16 %v1872, %v1871
      %1877 = vrot.lane.b32.xlu0 %v1863, 111
      %v1878 = vpop.permute.xlu0 %1877
      %1879 = vrot.lane.b32.xlu0 %v1864, 111
      %v1880 = vpop.permute.xlu0 %1879
      %1881 = vrot.lane.b32.xlu0 %v1865, 111
      %v1882 = vpop.permute.xlu0 %1881
      %v1883 = vsel %vm980, %v1878, %v1880
      %v1884 = vsel %vm980, %v1880, %v1882
      %v1888 = vsel %vm1116, %v1873, 0
      %1890 = vmatpush.bf16.msra.mxu0 0
      %1891 = vmatpush.bf16.msra.mxu0 0
      %1892 = vmatpush.bf16.msra.mxu0 0
      %1893 = vmatpush.bf16.msra.mxu0 0
      %1894 = vmatpush.bf16.msra.mxu0 0
      %1895 = vmatpush.bf16.msra.mxu0 0
      %1896 = vmatpush.bf16.msra.mxu0 0
      %1897 = vmatpush.bf16.msra.mxu0 %v1883
      %1898 = vmatmul.bf16.gmra.mxu0 %v1888
      %v1899 = vpop.f32.mrf.mxu0
      %v1900 = vadd.f32 0.0, %v1899
      %v1901 = vpop.f32.mrf.mxu0
      %v1902 = vadd.f32 0.0, %v1901
      %1903 = vdwg.mxu0
      %1904 = vmatpush.bf16.msra.mxu0 0
      %1905 = vmatpush.bf16.msra.mxu0 0
      %1906 = vmatpush.bf16.msra.mxu0 0
      %1907 = vmatpush.bf16.msra.mxu0 0
      %1908 = vmatpush.bf16.msra.mxu0 0
      %1909 = vmatpush.bf16.msra.mxu0 0
      %1910 = vmatpush.bf16.msra.mxu0 0
      %1911 = vmatpush.bf16.msra.mxu0 %v1884
      %1912 = vmatmul.bf16.gmra.mxu0 %v1888
      %v1913 = vpop.f32.mrf.mxu0
      %v1914 = vadd.f32 0.0, %v1913
      %v1915 = vpop.f32.mrf.mxu0
      %v1916 = vadd.f32 0.0, %v1915
      %1917 = vdwg.mxu0
      %v1918 = vadd.f32 %v1845, %v1900
      %v1919 = vadd.f32 %v1846, %v1914
      %v1920 = vadd.f32 %v1847, %v1902
      %v1921 = vadd.f32 %v1848, %v1916
      %v1922 = vld [vmem:[%s4] sm:$0xff]
      %v1923 = vld [vmem:[%s4 + $0x8] sm:$0xff]
      %v1924 = vld [vmem:[%s5] sm:$0xff]
      %v1925 = vld [vmem:[%s5 + $0x8] sm:$0xff]
      %v1926 = vld [vmem:[%s6] sm:$0xff]
      %v1927 = vld [vmem:[%s6 + $0x8] sm:$0xff]
      %v1928 = vmul.f32 %v1918, %v1918
      %v1929 = vmul.f32 %v1919, %v1919
      %v1930 = vmul.f32 %v1920, %v1920
      %v1931 = vmul.f32 %v1921, %v1921
      %1932 = vmatpush.msra.mxu0 1.0
      %1933 = vmatpush.msra.mxu0 1.0
      %1934 = vmatpush.msra.mxu0 1.0
      %1935 = vmatpush.msra.mxu0 1.0
      %1936 = vmatpush.msra.mxu0 1.0
      %1937 = vmatpush.msra.mxu0 1.0
      %1938 = vmatpush.msra.mxu0 1.0
      %1939 = vmatpush.msra.mxu0 1.0
      %1940 = vmatpush.msra.mxu0 1.0
      %1941 = vmatpush.msra.mxu0 1.0
      %1942 = vmatpush.msra.mxu0 1.0
      %1943 = vmatpush.msra.mxu0 1.0
      %1944 = vmatpush.msra.mxu0 1.0
      %1945 = vmatpush.msra.mxu0 1.0
      %1946 = vmatpush.msra.mxu0 1.0
      %1947 = vmatpush.msra.mxu0 1.0
      %1948 = vmatmul.f32.gmra.mxu0 %v1918
      %v1949 = vpop.f32.mrf.mxu0
      %v1950 = vadd.f32 0.0, %v1949
      %1951 = vmatmul.f32.gmra.mxu0 %v1920
      %v1952 = vpop.f32.mrf.mxu0
      %v1953 = vadd.f32 0.0, %v1952
      %1954 = vmatmul.f32.gmra.mxu0 %v1928
      %v1955 = vpop.f32.mrf.mxu0
      %v1956 = vadd.f32 0.0, %v1955
      %1957 = vmatmul.f32.gmra.mxu0 %v1930
      %v1958 = vpop.f32.mrf.mxu0
      %v1959 = vadd.f32 0.0, %v1958
      %1960 = vdwg.mxu0
      %1961 = vmatpush.msra.mxu0 1.0
      %1962 = vmatpush.msra.mxu0 1.0
      %1963 = vmatpush.msra.mxu0 1.0
      %1964 = vmatpush.msra.mxu0 1.0
      %1965 = vmatpush.msra.mxu0 1.0
      %1966 = vmatpush.msra.mxu0 1.0
      %1967 = vmatpush.msra.mxu0 1.0
      %1968 = vmatpush.msra.mxu0 1.0
      %1969 = vmatpush.msra.mxu0 1.0
      %1970 = vmatpush.msra.mxu0 1.0
      %1971 = vmatpush.msra.mxu0 1.0
      %1972 = vmatpush.msra.mxu0 1.0
      %1973 = vmatpush.msra.mxu0 1.0
      %1974 = vmatpush.msra.mxu0 1.0
      %1975 = vmatpush.msra.mxu0 1.0
      %1976 = vmatpush.msra.mxu0 1.0
      %1977 = vmatmul.f32.gmra.mxu0 %v1919
      %v1978 = vpop.f32.mrf.mxu0
      %v1979 = vadd.f32 %v1950, %v1978
      %1980 = vmatmul.f32.gmra.mxu0 %v1921
      %v1981 = vpop.f32.mrf.mxu0
      %v1982 = vadd.f32 %v1953, %v1981
      %1983 = vmatmul.f32.gmra.mxu0 %v1929
      %v1984 = vpop.f32.mrf.mxu0
      %v1985 = vadd.f32 %v1956, %v1984
      %1986 = vmatmul.f32.gmra.mxu0 %v1931
      %v1987 = vpop.f32.mrf.mxu0
      %v1988 = vadd.f32 %v1959, %v1987
      %1989 = vdwg.mxu0
      %v1990 = vmul.f32 %v1922, 256.0
      %v1991 = vmul.f32 %v1923, 256.0
      %1994 = vrot.lane.b32.xlu0 %v1990, 127
      %v1995 = vpop.permute.xlu0 %1994
      %1996 = vrot.lane.b32.xlu0 %v1991, 127
      %v1997 = vpop.permute.xlu0 %1996
      %v2000 = vadd.f32 %v1979, %v1995
      %v2001 = vadd.f32 %v1982, %v1997
      %v2002 = vmul.f32 %v1922, 2.0
      %v2003 = vmul.f32 %v1923, 2.0
      %2006 = vrot.lane.b32.xlu0 %v1979, 1
      %v2007 = vpop.permute.xlu0 %2006
      %2008 = vrot.lane.b32.xlu0 %v1982, 1
      %v2009 = vpop.permute.xlu0 %2008
      %v2012 = vmul.f32 %v2002, %v2007
      %v2013 = vmul.f32 %v2003, %v2009
      %2016 = vrot.lane.b32.xlu0 %v2012, 127
      %v2017 = vpop.permute.xlu0 %2016
      %2018 = vrot.lane.b32.xlu0 %v2013, 127
      %v2019 = vpop.permute.xlu0 %2018
      %v2022 = vadd.f32 %v1985, %v2017
      %v2023 = vadd.f32 %v1988, %v2019
      %v2024 = vmul.f32 %v1990, %v1922
      %v2025 = vmul.f32 %v1991, %v1923
      %2028 = vrot.lane.b32.xlu0 %v2024, 127
      %v2029 = vpop.permute.xlu0 %2028
      %2030 = vrot.lane.b32.xlu0 %v2025, 127
      %v2031 = vpop.permute.xlu0 %2030
      %v2034 = vadd.f32 %v2022, %v2029
      %v2035 = vadd.f32 %v2023, %v2031
      %2038 = vrot.lane.b32.xlu0 %v2034, 1
      %v2039 = vpop.permute.xlu0 %2038
      %2040 = vrot.lane.b32.xlu0 %v2035, 1
      %v2041 = vpop.permute.xlu0 %2040
      %v2044 = vsel %vm734, %v2000, %v2039
      %v2045 = vsel %vm734, %v2001, %v2041
      %2046 = vmatpush.msra.mxu0 0.0
      %2047 = vmatpush.msra.mxu0 0.0
      %2048 = vmatpush.msra.mxu0 0.0
      %2049 = vmatpush.msra.mxu0 0.0
      %2050 = vmatpush.msra.mxu0 0.0
      %2051 = vmatpush.msra.mxu0 0.0
      %2052 = vmatpush.msra.mxu0 0.0
      %2053 = vmatpush.msra.mxu0 0.0
      %2054 = vmatpush.msra.mxu0 0.0
      %2055 = vmatpush.msra.mxu0 0.0
      %2056 = vmatpush.msra.mxu0 0.0
      %2057 = vmatpush.msra.mxu0 0.0
      %2058 = vmatpush.msra.mxu0 0.0
      %2059 = vmatpush.msra.mxu0 0.0
      %2060 = vmatpush.msra.mxu0 %v2045
      %2061 = vmatpush.msra.mxu0 %v2044
      %2062 = vmatmul.f32.gmra.mxu0 %v1118
      %v2063 = vpop.f32.mrf.mxu0
      %v2064 = vadd.f32 0.0, %v2063
      %2065 = vmatmul.f32.gmra.mxu0 %v1121
      %v2066 = vpop.f32.mrf.mxu0
      %v2067 = vadd.f32 0.0, %v2066
      %2068 = vdwg.mxu0
      %v2069 = vmul.f32 %v2064, %v2064
      %v2070 = vmul.f32 %v2067, %v2067
      %2073 = vrot.lane.b32.xlu0 %v2069, 1
      %v2074 = vpop.permute.xlu0 %2073
      %2075 = vrot.lane.b32.xlu0 %v2070, 1
      %v2076 = vpop.permute.xlu0 %2075
      %v2079 = vsub.f32 %v2064, %v2074
      %v2080 = vsub.f32 %v2067, %v2076
      %v2081 = vmax.f32 %v2079, 0.0
      %v2082 = vmax.f32 %v2080, 0.0
      %v2083 = vadd.f32 %v2081, 1e-05
      %v2084 = vadd.f32 %v2082, 1e-05
      %v2085 = vrsqrt.pop %v2083
      %v2086 = vmul.f32 %v2085, %v2083
      %v2087 = vmul.f32 %v2086, %v2085
      %v2088 = vmul.f32 0.5, %v2087
      %v2089 = vsub.f32 1.5, %v2088
      %v2090 = vmul.f32 %v2085, %v2089
      %vm2091 = vweird.f32 %v2083
      %vm2092 = vweird.f32 %v2085
      %vm2093 = vmor %vm2091, %vm2092
      %v2094 = vsel %vm2093, %v2085, %v2090
      %v2095 = vrsqrt.pop %v2084
      %v2096 = vmul.f32 %v2095, %v2084
      %v2097 = vmul.f32 %v2096, %v2095
      %v2098 = vmul.f32 0.5, %v2097
      %v2099 = vsub.f32 1.5, %v2098
      %v2100 = vmul.f32 %v2095, %v2099
      %vm2101 = vweird.f32 %v2084
      %vm2102 = vweird.f32 %v2095
      %vm2103 = vmor %vm2101, %vm2102
      %v2104 = vsel %vm2103, %v2095, %v2100
      %v2105 = vmul.f32 %v2094, %v1924
      %v2106 = vmul.f32 %v2104, %v1925
      %2109 = vrot.lane.b32.xlu0 %v2064, 1
      %v2110 = vpop.permute.xlu0 %2109
      %2111 = vrot.lane.b32.xlu0 %v2067, 1
      %v2112 = vpop.permute.xlu0 %2111
      %v2115 = vsub.f32 %v1922, %v2110
      %v2116 = vsub.f32 %v1923, %v2112
      %v2117 = vmul.f32 %v2115, %v2105
      %v2118 = vmul.f32 %v2116, %v2106
      %v2119 = vadd.f32 %v2117, %v1926
      %v2120 = vadd.f32 %v2118, %v1927
      %2122 = vset.pattern.permute.xlu0 1
      %2123 = vperm.xlu0 %2122, %v2105
      %v2124 = vpop.permute.xlu0 %2123
      %2127 = vset.pattern.permute.xlu0 1
      %2128 = vperm.xlu0 %2127, %v2106
      %v2129 = vpop.permute.xlu0 %2128
      %v2131 = vmul.f32 %v1918, %v2124
      %v2132 = vmul.f32 %v1919, %v2124
      %v2133 = vmul.f32 %v1920, %v2129
      %v2134 = vmul.f32 %v1921, %v2129
      %2136 = vset.pattern.permute.xlu0 1
      %2137 = vperm.xlu0 %2136, %v2119
      %v2138 = vpop.permute.xlu0 %2137
      %2141 = vset.pattern.permute.xlu0 1
      %2142 = vperm.xlu0 %2141, %v2120
      %v2143 = vpop.permute.xlu0 %2142
      %v2145 = vadd.f32 %v2131, %v2138
      %v2146 = vadd.f32 %v2132, %v2138
      %v2147 = vadd.f32 %v2133, %v2143
      %v2148 = vadd.f32 %v2134, %v2143
      %v2149 = vmax.f32 %v2145, 0.0
      %v2150 = vmax.f32 %v2146, 0.0
      %v2151 = vmax.f32 %v2147, 0.0
      %v2152 = vmax.f32 %v2148, 0.0
      %v2153 = vpack.c.bf16 %v2150, %v2149
      %v2154 = vpack.c.bf16 %v2152, %v2151
      %2155 = vst [vmem:[#allocation2 + $0x4] sm:$0xff] %v2153
      %2156 = vst [vmem:[#allocation2 + $0x14] sm:$0xff] %v2154
      %v2157 = vld [vmem:[#allocation2] sm:$0xff]
      %v2158 = vld [vmem:[#allocation2 + $0x8] sm:$0xf]
      %v2159 = vld [vmem:[#allocation2 + $0x10] sm:$0xff]
      %v2160 = vld [vmem:[#allocation2 + $0x18] sm:$0xf]
      %v2161 = vunpack.c.l.bf16 %v2157
      %v2162 = vunpack.c.h.bf16 %v2157
      %v2163 = vunpack.c.l.bf16 %v2158
      %v2164 = vunpack.c.l.bf16 %v2159
      %v2165 = vunpack.c.h.bf16 %v2159
      %v2166 = vunpack.c.l.bf16 %v2160
      %v2167 = vmul.f32 %v2161, %v1264
      %v2168 = vmul.f32 %v2162, %v1267
      %v2169 = vmul.f32 %v2163, %v1266
      %v2170 = vmul.f32 %v2164, %v1264
      %v2171 = vmul.f32 %v2165, %v1267
      %v2172 = vmul.f32 %v2166, %v1266
      %v2173 = vpack.c.bf16 %v2170, %v2167
      %v2174 = vpack.c.bf16 %v2171, %v2168
      %v2175 = vpack.c.bf16 %v2172, %v2169
      %v2176 = vld [vmem:[%s3] sm:$0xf]
      %v2177 = vld [vmem:[%s3 + $0x4] sm:$0xf]
      %s2178 = scalar_lea.vmem %s3, 8
      %v2179 = vld [vmem:[%s2178] sm:$0xf]
      %v2180 = vld [vmem:[%s2178 + $0x4] sm:$0xf]
      %v2183 = vunpack.c.l.b16 %v2179
      %v2184 = vunpack.c.l.b16 %v2180
      %v2185 = vpack.c.b16 %v2184, %v2183
      %v2190 = vunpack.c.l.b16 %v2157
      %v2191 = vunpack.c.h.b16 %v2157
      %v2192 = vunpack.c.l.b16 %v2158
      %v2193 = vunpack.c.l.b16 %v2159
      %v2194 = vunpack.c.h.b16 %v2159
      %v2195 = vunpack.c.l.b16 %v2160
      %v2196 = vpack.c.b16 %v2193, %v2190
      %v2197 = vpack.c.b16 %v2194, %v2191
      %v2198 = vpack.c.b16 %v2195, %v2192
      %2199 = vrot.lane.b32.xlu0 %v2196, 16
      %v2200 = vpop.permute.xlu0 %2199
      %2201 = vrot.lane.b32.xlu0 %v2197, 16
      %v2202 = vpop.permute.xlu0 %2201
      %2203 = vrot.lane.b32.xlu0 %v2198, 16
      %v2204 = vpop.permute.xlu0 %2203
      %v2205 = vsel %vm401, %v2200, %v2202
      %v2206 = vsel %vm401, %v2202, %v2204
      %v2210 = vsel %vm1116, %v2185, 0
      %2212 = vmatpush.bf16.msra.mxu0 0
      %2213 = vmatpush.bf16.msra.mxu0 0
      %2214 = vmatpush.bf16.msra.mxu0 0
      %2215 = vmatpush.bf16.msra.mxu0 0
      %2216 = vmatpush.bf16.msra.mxu0 0
      %2217 = vmatpush.bf16.msra.mxu0 0
      %2218 = vmatpush.bf16.msra.mxu0 0
      %2219 = vmatpush.bf16.msra.mxu0 %v2205
      %2220 = vmatmul.bf16.gmra.mxu0 %v2210
      %v2221 = vpop.f32.mrf.mxu0
      %v2222 = vadd.f32 0.0, %v2221
      %v2223 = vpop.f32.mrf.mxu0
      %v2224 = vadd.f32 0.0, %v2223
      %2225 = vdwg.mxu0
      %2226 = vmatpush.bf16.msra.mxu0 0
      %2227 = vmatpush.bf16.msra.mxu0 0
      %2228 = vmatpush.bf16.msra.mxu0 0
      %2229 = vmatpush.bf16.msra.mxu0 0
      %2230 = vmatpush.bf16.msra.mxu0 0
      %2231 = vmatpush.bf16.msra.mxu0 0
      %2232 = vmatpush.bf16.msra.mxu0 0
      %2233 = vmatpush.bf16.msra.mxu0 %v2206
      %2234 = vmatmul.bf16.gmra.mxu0 %v2210
      %v2235 = vpop.f32.mrf.mxu0
      %v2236 = vadd.f32 0.0, %v2235
      %v2237 = vpop.f32.mrf.mxu0
      %v2238 = vadd.f32 0.0, %v2237
      %2239 = vdwg.mxu0
      %v2242 = vunpack.c.l.b16 %v2176
      %v2243 = vunpack.c.l.b16 %v2177
      %v2244 = vpack.c.b16 %v2243, %v2242
      %2248 = vrot.lane.b32.xlu0 %v2173, 17
      %v2249 = vpop.permute.xlu0 %2248
      %2250 = vrot.lane.b32.xlu0 %v2174, 17
      %v2251 = vpop.permute.xlu0 %2250
      %2252 = vrot.lane.b32.xlu0 %v2175, 17
      %v2253 = vpop.permute.xlu0 %2252
      %v2254 = vsel %vm457, %v2249, %v2251
      %v2255 = vsel %vm457, %v2251, %v2253
      %v2259 = vsel %vm1116, %v2244, 0
      %2261 = vmatpush.bf16.msra.mxu0 0
      %2262 = vmatpush.bf16.msra.mxu0 0
      %2263 = vmatpush.bf16.msra.mxu0 0
      %2264 = vmatpush.bf16.msra.mxu0 0
      %2265 = vmatpush.bf16.msra.mxu0 0
      %2266 = vmatpush.bf16.msra.mxu0 0
      %2267 = vmatpush.bf16.msra.mxu0 0
      %2268 = vmatpush.bf16.msra.mxu0 %v2254
      %2269 = vmatmul.bf16.gmra.mxu0 %v2259
      %v2270 = vpop.f32.mrf.mxu0
      %v2271 = vadd.f32 %v2222, %v2270
      %v2272 = vpop.f32.mrf.mxu0
      %v2273 = vadd.f32 %v2224, %v2272
      %2274 = vdwg.mxu0
      %2275 = vmatpush.bf16.msra.mxu0 0
      %2276 = vmatpush.bf16.msra.mxu0 0
      %2277 = vmatpush.bf16.msra.mxu0 0
      %2278 = vmatpush.bf16.msra.mxu0 0
      %2279 = vmatpush.bf16.msra.mxu0 0
      %2280 = vmatpush.bf16.msra.mxu0 0
      %2281 = vmatpush.bf16.msra.mxu0 0
      %2282 = vmatpush.bf16.msra.mxu0 %v2255
      %2283 = vmatmul.bf16.gmra.mxu0 %v2259
      %v2284 = vpop.f32.mrf.mxu0
      %v2285 = vadd.f32 %v2236, %v2284
      %v2286 = vpop.f32.mrf.mxu0
      %v2287 = vadd.f32 %v2238, %v2286
      %2288 = vdwg.mxu0
      %v2289 = vmul.f32 %v2161, %v1417
      %v2290 = vmul.f32 %v2162, %v1420
      %v2291 = vmul.f32 %v2163, %v1419
      %v2292 = vmul.f32 %v2164, %v1417
      %v2293 = vmul.f32 %v2165, %v1420
      %v2294 = vmul.f32 %v2166, %v1419
      %v2295 = vpack.c.bf16 %v2292, %v2289
      %v2296 = vpack.c.bf16 %v2293, %v2290
      %v2297 = vpack.c.bf16 %v2294, %v2291
      %s2298 = scalar_lea.vmem %s3, 16
      %v2299 = vld [vmem:[%s2298] sm:$0xf]
      %v2300 = vld [vmem:[%s2298 + $0x4] sm:$0xf]
      %v2303 = vunpack.c.l.b16 %v2299
      %v2304 = vunpack.c.l.b16 %v2300
      %v2305 = vpack.c.b16 %v2304, %v2303
      %2309 = vrot.lane.b32.xlu0 %v2295, 15
      %v2310 = vpop.permute.xlu0 %2309
      %2311 = vrot.lane.b32.xlu0 %v2296, 15
      %v2312 = vpop.permute.xlu0 %2311
      %2313 = vrot.lane.b32.xlu0 %v2297, 15
      %v2314 = vpop.permute.xlu0 %2313
      %v2315 = vsel %vm545, %v2310, %v2312
      %v2316 = vsel %vm545, %v2312, %v2314
      %v2320 = vsel %vm1116, %v2305, 0
      %2322 = vmatpush.bf16.msra.mxu0 0
      %2323 = vmatpush.bf16.msra.mxu0 0
      %2324 = vmatpush.bf16.msra.mxu0 0
      %2325 = vmatpush.bf16.msra.mxu0 0
      %2326 = vmatpush.bf16.msra.mxu0 0
      %2327 = vmatpush.bf16.msra.mxu0 0
      %2328 = vmatpush.bf16.msra.mxu0 0
      %2329 = vmatpush.bf16.msra.mxu0 %v2315
      %2330 = vmatmul.bf16.gmra.mxu0 %v2320
      %v2331 = vpop.f32.mrf.mxu0
      %v2332 = vadd.f32 0.0, %v2331
      %v2333 = vpop.f32.mrf.mxu0
      %v2334 = vadd.f32 0.0, %v2333
      %2335 = vdwg.mxu0
      %2336 = vmatpush.bf16.msra.mxu0 0
      %2337 = vmatpush.bf16.msra.mxu0 0
      %2338 = vmatpush.bf16.msra.mxu0 0
      %2339 = vmatpush.bf16.msra.mxu0 0
      %2340 = vmatpush.bf16.msra.mxu0 0
      %2341 = vmatpush.bf16.msra.mxu0 0
      %2342 = vmatpush.bf16.msra.mxu0 0
      %2343 = vmatpush.bf16.msra.mxu0 %v2316
      %2344 = vmatmul.bf16.gmra.mxu0 %v2320
      %v2345 = vpop.f32.mrf.mxu0
      %v2346 = vadd.f32 0.0, %v2345
      %v2347 = vpop.f32.mrf.mxu0
      %v2348 = vadd.f32 0.0, %v2347
      %2349 = vdwg.mxu0
      %v2350 = vadd.f32 %v2271, %v2332
      %v2351 = vadd.f32 %v2285, %v2346
      %v2352 = vadd.f32 %v2273, %v2334
      %v2353 = vadd.f32 %v2287, %v2348
      %v2354 = vmul.f32 %v2161, %v1500
      %v2355 = vmul.f32 %v2162, %v1503
      %v2356 = vmul.f32 %v2163, %v1502
      %v2357 = vmul.f32 %v2164, %v1500
      %v2358 = vmul.f32 %v2165, %v1503
      %v2359 = vmul.f32 %v2166, %v1502
      %v2360 = vpack.c.bf16 %v2357, %v2354
      %v2361 = vpack.c.bf16 %v2358, %v2355
      %v2362 = vpack.c.bf16 %v2359, %v2356
      %s2363 = scalar_lea.vmem %s3, 24
      %v2364 = vld [vmem:[%s2363] sm:$0xf]
      %v2365 = vld [vmem:[%s2363 + $0x4] sm:$0xf]
      %v2368 = vunpack.c.l.b16 %v2364
      %v2369 = vunpack.c.l.b16 %v2365
      %v2370 = vpack.c.b16 %v2369, %v2368
      %2374 = vrot.lane.b32.xlu0 %v2360, 1
      %v2375 = vpop.permute.xlu0 %2374
      %2376 = vrot.lane.b32.xlu0 %v2361, 1
      %v2377 = vpop.permute.xlu0 %2376
      %2378 = vrot.lane.b32.xlu0 %v2362, 1
      %v2379 = vpop.permute.xlu0 %2378
      %v2380 = vsel %vm626, %v2375, %v2377
      %v2381 = vsel %vm626, %v2377, %v2379
      %v2385 = vsel %vm1116, %v2370, 0
      %2387 = vmatpush.bf16.msra.mxu0 0
      %2388 = vmatpush.bf16.msra.mxu0 0
      %2389 = vmatpush.bf16.msra.mxu0 0
      %2390 = vmatpush.bf16.msra.mxu0 0
      %2391 = vmatpush.bf16.msra.mxu0 0
      %2392 = vmatpush.bf16.msra.mxu0 0
      %2393 = vmatpush.bf16.msra.mxu0 0
      %2394 = vmatpush.bf16.msra.mxu0 %v2380
      %2395 = vmatmul.bf16.gmra.mxu0 %v2385
      %v2396 = vpop.f32.mrf.mxu0
      %v2397 = vadd.f32 0.0, %v2396
      %v2398 = vpop.f32.mrf.mxu0
      %v2399 = vadd.f32 0.0, %v2398
      %2400 = vdwg.mxu0
      %2401 = vmatpush.bf16.msra.mxu0 0
      %2402 = vmatpush.bf16.msra.mxu0 0
      %2403 = vmatpush.bf16.msra.mxu0 0
      %2404 = vmatpush.bf16.msra.mxu0 0
      %2405 = vmatpush.bf16.msra.mxu0 0
      %2406 = vmatpush.bf16.msra.mxu0 0
      %2407 = vmatpush.bf16.msra.mxu0 0
      %2408 = vmatpush.bf16.msra.mxu0 %v2381
      %2409 = vmatmul.bf16.gmra.mxu0 %v2385
      %v2410 = vpop.f32.mrf.mxu0
      %v2411 = vadd.f32 0.0, %v2410
      %v2412 = vpop.f32.mrf.mxu0
      %v2413 = vadd.f32 0.0, %v2412
      %2414 = vdwg.mxu0
      %v2415 = vadd.f32 %v2350, %v2397
      %v2416 = vadd.f32 %v2351, %v2411
      %v2417 = vadd.f32 %v2352, %v2399
      %v2418 = vadd.f32 %v2353, %v2413
      %v2419 = vld [vmem:[#allocation2 + $0x4] sm:$0xff]
      %v2420 = vld [vmem:[#allocation2 + $0x14] sm:$0xff]
      %s2421 = scalar_lea.vmem %s3, 32
      %v2422 = vld [vmem:[%s2421] sm:$0xf]
      %v2423 = vld [vmem:[%s2421 + $0x4] sm:$0xf]
      %v2426 = vunpack.c.l.b16 %v2422
      %v2427 = vunpack.c.l.b16 %v2423
      %v2428 = vpack.c.b16 %v2427, %v2426
      %v2431 = vunpack.c.l.b16 %v2419
      %v2432 = vunpack.c.h.b16 %v2419
      %v2433 = vunpack.c.l.b16 %v2420
      %v2434 = vunpack.c.h.b16 %v2420
      %v2435 = vpack.c.b16 %v2433, %v2431
      %v2436 = vpack.c.b16 %v2434, %v2432
      %v2440 = vsel %vm1116, %v2428, 0
      %2442 = vmatpush.bf16.msra.mxu0 0
      %2443 = vmatpush.bf16.msra.mxu0 0
      %2444 = vmatpush.bf16.msra.mxu0 0
      %2445 = vmatpush.bf16.msra.mxu0 0
      %2446 = vmatpush.bf16.msra.mxu0 0
      %2447 = vmatpush.bf16.msra.mxu0 0
      %2448 = vmatpush.bf16.msra.mxu0 0
      %2449 = vmatpush.bf16.msra.mxu0 %v2435
      %2450 = vmatmul.bf16.gmra.mxu0 %v2440
      %v2451 = vpop.f32.mrf.mxu0
      %v2452 = vadd.f32 0.0, %v2451
      %v2453 = vpop.f32.mrf.mxu0
      %v2454 = vadd.f32 0.0, %v2453
      %2455 = vdwg.mxu0
      %2456 = vmatpush.bf16.msra.mxu0 0
      %2457 = vmatpush.bf16.msra.mxu0 0
      %2458 = vmatpush.bf16.msra.mxu0 0
      %2459 = vmatpush.bf16.msra.mxu0 0
      %2460 = vmatpush.bf16.msra.mxu0 0
      %2461 = vmatpush.bf16.msra.mxu0 0
      %2462 = vmatpush.bf16.msra.mxu0 0
      %2463 = vmatpush.bf16.msra.mxu0 %v2436
      %2464 = vmatmul.bf16.gmra.mxu0 %v2440
      %v2465 = vpop.f32.mrf.mxu0
      %v2466 = vadd.f32 0.0, %v2465
      %v2467 = vpop.f32.mrf.mxu0
      %v2468 = vadd.f32 0.0, %v2467
      %2469 = vdwg.mxu0
      %v2470 = vadd.f32 %v2415, %v2452
      %v2471 = vadd.f32 %v2416, %v2466
      %v2472 = vadd.f32 %v2417, %v2454
      %v2473 = vadd.f32 %v2418, %v2468
      %v2474 = vld [vmem:[#allocation2 + $0x4] sm:$0xff]
      %v2475 = vld [vmem:[#allocation2 + $0xc] sm:$0xf]
      %v2476 = vld [vmem:[#allocation2 + $0x14] sm:$0xff]
      %v2477 = vld [vmem:[#allocation2 + $0x1c] sm:$0xf]
      %v2478 = vunpack.c.l.bf16 %v2474
      %v2479 = vunpack.c.h.bf16 %v2474
      %v2480 = vunpack.c.l.bf16 %v2475
      %v2481 = vunpack.c.l.bf16 %v2476
      %v2482 = vunpack.c.h.bf16 %v2476
      %v2483 = vunpack.c.l.bf16 %v2477
      %v2484 = vmul.f32 %v2478, %v1638
      %v2485 = vmul.f32 %v2479, %v1641
      %v2486 = vmul.f32 %v2480, %v1640
      %v2487 = vmul.f32 %v2481, %v1638
      %v2488 = vmul.f32 %v2482, %v1641
      %v2489 = vmul.f32 %v2483, %v1640
      %v2490 = vpack.c.bf16 %v2487, %v2484
      %v2491 = vpack.c.bf16 %v2488, %v2485
      %v2492 = vpack.c.bf16 %v2489, %v2486
      %s2493 = scalar_lea.vmem %s3, 40
      %v2494 = vld [vmem:[%s2493] sm:$0xf]
      %v2495 = vld [vmem:[%s2493 + $0x4] sm:$0xf]
      %v2498 = vunpack.c.l.b16 %v2494
      %v2499 = vunpack.c.l.b16 %v2495
      %v2500 = vpack.c.b16 %v2499, %v2498
      %2504 = vrot.lane.b32.xlu0 %v2490, 127
      %v2505 = vpop.permute.xlu0 %2504
      %2506 = vrot.lane.b32.xlu0 %v2491, 127
      %v2507 = vpop.permute.xlu0 %2506
      %2508 = vrot.lane.b32.xlu0 %v2492, 127
      %v2509 = vpop.permute.xlu0 %2508
      %v2510 = vsel %vm762, %v2505, %v2507
      %v2511 = vsel %vm762, %v2507, %v2509
      %v2515 = vsel %vm1116, %v2500, 0
      %2517 = vmatpush.bf16.msra.mxu0 0
      %2518 = vmatpush.bf16.msra.mxu0 0
      %2519 = vmatpush.bf16.msra.mxu0 0
      %2520 = vmatpush.bf16.msra.mxu0 0
      %2521 = vmatpush.bf16.msra.mxu0 0
      %2522 = vmatpush.bf16.msra.mxu0 0
      %2523 = vmatpush.bf16.msra.mxu0 0
      %2524 = vmatpush.bf16.msra.mxu0 %v2510
      %2525 = vmatmul.bf16.gmra.mxu0 %v2515
      %v2526 = vpop.f32.mrf.mxu0
      %v2527 = vadd.f32 0.0, %v2526
      %v2528 = vpop.f32.mrf.mxu0
      %v2529 = vadd.f32 0.0, %v2528
      %2530 = vdwg.mxu0
      %2531 = vmatpush.bf16.msra.mxu0 0
      %2532 = vmatpush.bf16.msra.mxu0 0
      %2533 = vmatpush.bf16.msra.mxu0 0
      %2534 = vmatpush.bf16.msra.mxu0 0
      %2535 = vmatpush.bf16.msra.mxu0 0
      %2536 = vmatpush.bf16.msra.mxu0 0
      %2537 = vmatpush.bf16.msra.mxu0 0
      %2538 = vmatpush.bf16.msra.mxu0 %v2511
      %2539 = vmatmul.bf16.gmra.mxu0 %v2515
      %v2540 = vpop.f32.mrf.mxu0
      %v2541 = vadd.f32 0.0, %v2540
      %v2542 = vpop.f32.mrf.mxu0
      %v2543 = vadd.f32 0.0, %v2542
      %2544 = vdwg.mxu0
      %v2545 = vadd.f32 %v2470, %v2527
      %v2546 = vadd.f32 %v2471, %v2541
      %v2547 = vadd.f32 %v2472, %v2529
      %v2548 = vadd.f32 %v2473, %v2543
      %v2549 = vmul.f32 %v2478, %v1711
      %v2550 = vmul.f32 %v2479, %v1714
      %v2551 = vmul.f32 %v2480, %v1713
      %v2552 = vmul.f32 %v2481, %v1711
      %v2553 = vmul.f32 %v2482, %v1714
      %v2554 = vmul.f32 %v2483, %v1713
      %v2555 = vpack.c.bf16 %v2552, %v2549
      %v2556 = vpack.c.bf16 %v2553, %v2550
      %v2557 = vpack.c.bf16 %v2554, %v2551
      %s2558 = scalar_lea.vmem %s3, 48
      %v2559 = vld [vmem:[%s2558] sm:$0xf]
      %v2560 = vld [vmem:[%s2558 + $0x4] sm:$0xf]
      %v2563 = vunpack.c.l.b16 %v2559
      %v2564 = vunpack.c.l.b16 %v2560
      %v2565 = vpack.c.b16 %v2564, %v2563
      %2569 = vrot.lane.b32.xlu0 %v2555, 113
      %v2570 = vpop.permute.xlu0 %2569
      %2571 = vrot.lane.b32.xlu0 %v2556, 113
      %v2572 = vpop.permute.xlu0 %2571
      %2573 = vrot.lane.b32.xlu0 %v2557, 113
      %v2574 = vpop.permute.xlu0 %2573
      %v2575 = vsel %vm838, %v2570, %v2572
      %v2576 = vsel %vm838, %v2572, %v2574
      %v2580 = vsel %vm1116, %v2565, 0
      %2582 = vmatpush.bf16.msra.mxu0 0
      %2583 = vmatpush.bf16.msra.mxu0 0
      %2584 = vmatpush.bf16.msra.mxu0 0
      %2585 = vmatpush.bf16.msra.mxu0 0
      %2586 = vmatpush.bf16.msra.mxu0 0
      %2587 = vmatpush.bf16.msra.mxu0 0
      %2588 = vmatpush.bf16.msra.mxu0 0
      %2589 = vmatpush.bf16.msra.mxu0 %v2575
      %2590 = vmatmul.bf16.gmra.mxu0 %v2580
      %v2591 = vpop.f32.mrf.mxu0
      %v2592 = vadd.f32 0.0, %v2591
      %v2593 = vpop.f32.mrf.mxu0
      %v2594 = vadd.f32 0.0, %v2593
      %2595 = vdwg.mxu0
      %2596 = vmatpush.bf16.msra.mxu0 0
      %2597 = vmatpush.bf16.msra.mxu0 0
      %2598 = vmatpush.bf16.msra.mxu0 0
      %2599 = vmatpush.bf16.msra.mxu0 0
      %2600 = vmatpush.bf16.msra.mxu0 0
      %2601 = vmatpush.bf16.msra.mxu0 0
      %2602 = vmatpush.bf16.msra.mxu0 0
      %2603 = vmatpush.bf16.msra.mxu0 %v2576
      %2604 = vmatmul.bf16.gmra.mxu0 %v2580
      %v2605 = vpop.f32.mrf.mxu0
      %v2606 = vadd.f32 0.0, %v2605
      %v2607 = vpop.f32.mrf.mxu0
      %v2608 = vadd.f32 0.0, %v2607
      %2609 = vdwg.mxu0
      %v2610 = vadd.f32 %v2545, %v2592
      %v2611 = vadd.f32 %v2546, %v2606
      %v2612 = vadd.f32 %v2547, %v2594
      %v2613 = vadd.f32 %v2548, %v2608
      %s2614 = scalar_lea.vmem %s3, 56
      %v2615 = vld [vmem:[%s2614] sm:$0xf]
      %v2616 = vld [vmem:[%s2614 + $0x4] sm:$0xf]
      %v2619 = vunpack.c.l.b16 %v2615
      %v2620 = vunpack.c.l.b16 %v2616
      %v2621 = vpack.c.b16 %v2620, %v2619
      %v2626 = vunpack.c.l.b16 %v2474
      %v2627 = vunpack.c.h.b16 %v2474
      %v2628 = vunpack.c.l.b16 %v2475
      %v2629 = vunpack.c.l.b16 %v2476
      %v2630 = vunpack.c.h.b16 %v2476
      %v2631 = vunpack.c.l.b16 %v2477
      %v2632 = vpack.c.b16 %v2629, %v2626
      %v2633 = vpack.c.b16 %v2630, %v2627
      %v2634 = vpack.c.b16 %v2631, %v2628
      %2635 = vrot.lane.b32.xlu0 %v2632, 112
      %v2636 = vpop.permute.xlu0 %2635
      %2637 = vrot.lane.b32.xlu0 %v2633, 112
      %v2638 = vpop.permute.xlu0 %2637
      %2639 = vrot.lane.b32.xlu0 %v2634, 112
      %v2640 = vpop.permute.xlu0 %2639
      %v2641 = vsel %vm904, %v2636, %v2638
      %v2642 = vsel %vm904, %v2638, %v2640
      %v2646 = vsel %vm1116, %v2621, 0
      %2648 = vmatpush.bf16.msra.mxu0 0
      %2649 = vmatpush.bf16.msra.mxu0 0
      %2650 = vmatpush.bf16.msra.mxu0 0
      %2651 = vmatpush.bf16.msra.mxu0 0
      %2652 = vmatpush.bf16.msra.mxu0 0
      %2653 = vmatpush.bf16.msra.mxu0 0
      %2654 = vmatpush.bf16.msra.mxu0 0
      %2655 = vmatpush.bf16.msra.mxu0 %v2641
      %2656 = vmatmul.bf16.gmra.mxu0 %v2646
      %v2657 = vpop.f32.mrf.mxu0
      %v2658 = vadd.f32 0.0, %v2657
      %v2659 = vpop.f32.mrf.mxu0
      %v2660 = vadd.f32 0.0, %v2659
      %2661 = vdwg.mxu0
      %2662 = vmatpush.bf16.msra.mxu0 0
      %2663 = vmatpush.bf16.msra.mxu0 0
      %2664 = vmatpush.bf16.msra.mxu0 0
      %2665 = vmatpush.bf16.msra.mxu0 0
      %2666 = vmatpush.bf16.msra.mxu0 0
      %2667 = vmatpush.bf16.msra.mxu0 0
      %2668 = vmatpush.bf16.msra.mxu0 0
      %2669 = vmatpush.bf16.msra.mxu0 %v2642
      %2670 = vmatmul.bf16.gmra.mxu0 %v2646
      %v2671 = vpop.f32.mrf.mxu0
      %v2672 = vadd.f32 0.0, %v2671
      %v2673 = vpop.f32.mrf.mxu0
      %v2674 = vadd.f32 0.0, %v2673
      %2675 = vdwg.mxu0
      %v2676 = vadd.f32 %v2610, %v2658
      %v2677 = vadd.f32 %v2611, %v2672
      %v2678 = vadd.f32 %v2612, %v2660
      %v2679 = vadd.f32 %v2613, %v2674
      %v2680 = vmul.f32 %v2478, %v1850
      %v2681 = vmul.f32 %v2479, %v1853
      %v2682 = vmul.f32 %v2480, %v1852
      %v2683 = vmul.f32 %v2481, %v1850
      %v2684 = vmul.f32 %v2482, %v1853
      %v2685 = vmul.f32 %v2483, %v1852
      %v2686 = vpack.c.bf16 %v2683, %v2680
      %v2687 = vpack.c.bf16 %v2684, %v2681
      %v2688 = vpack.c.bf16 %v2685, %v2682
      %s2689 = scalar_lea.vmem %s3, 64
      %v2690 = vld [vmem:[%s2689] sm:$0xf]
      %v2691 = vld [vmem:[%s2689 + $0x4] sm:$0xf]
      %v2694 = vunpack.c.l.b16 %v2690
      %v2695 = vunpack.c.l.b16 %v2691
      %v2696 = vpack.c.b16 %v2695, %v2694
      %2700 = vrot.lane.b32.xlu0 %v2686, 111
      %v2701 = vpop.permute.xlu0 %2700
      %2702 = vrot.lane.b32.xlu0 %v2687, 111
      %v2703 = vpop.permute.xlu0 %2702
      %2704 = vrot.lane.b32.xlu0 %v2688, 111
      %v2705 = vpop.permute.xlu0 %2704
      %v2706 = vsel %vm980, %v2701, %v2703
      %v2707 = vsel %vm980, %v2703, %v2705
      %v2711 = vsel %vm1116, %v2696, 0
      %2713 = vmatpush.bf16.msra.mxu0 0
      %2714 = vmatpush.bf16.msra.mxu0 0
      %2715 = vmatpush.bf16.msra.mxu0 0
      %2716 = vmatpush.bf16.msra.mxu0 0
      %2717 = vmatpush.bf16.msra.mxu0 0
      %2718 = vmatpush.bf16.msra.mxu0 0
      %2719 = vmatpush.bf16.msra.mxu0 0
      %2720 = vmatpush.bf16.msra.mxu0 %v2706
      %2721 = vmatmul.bf16.gmra.mxu0 %v2711
      %v2722 = vpop.f32.mrf.mxu0
      %v2723 = vadd.f32 0.0, %v2722
      %v2724 = vpop.f32.mrf.mxu0
      %v2725 = vadd.f32 0.0, %v2724
      %2726 = vdwg.mxu0
      %2727 = vmatpush.bf16.msra.mxu0 0
      %2728 = vmatpush.bf16.msra.mxu0 0
      %2729 = vmatpush.bf16.msra.mxu0 0
      %2730 = vmatpush.bf16.msra.mxu0 0
      %2731 = vmatpush.bf16.msra.mxu0 0
      %2732 = vmatpush.bf16.msra.mxu0 0
      %2733 = vmatpush.bf16.msra.mxu0 0
      %2734 = vmatpush.bf16.msra.mxu0 %v2707
      %2735 = vmatmul.bf16.gmra.mxu0 %v2711
      %v2736 = vpop.f32.mrf.mxu0
      %v2737 = vadd.f32 0.0, %v2736
      %v2738 = vpop.f32.mrf.mxu0
      %v2739 = vadd.f32 0.0, %v2738
      %2740 = vdwg.mxu0
      %v2741 = vadd.f32 %v2676, %v2723
      %v2742 = vadd.f32 %v2677, %v2737
      %v2743 = vadd.f32 %v2678, %v2725
      %v2744 = vadd.f32 %v2679, %v2739
      %v2745 = vld [vmem:[%s4] sm:$0xff]
      %v2746 = vld [vmem:[%s4 + $0x8] sm:$0xff]
      %v2747 = vld [vmem:[%s5] sm:$0xff]
      %v2748 = vld [vmem:[%s5 + $0x8] sm:$0xff]
      %v2749 = vld [vmem:[%s6] sm:$0xff]
      %v2750 = vld [vmem:[%s6 + $0x8] sm:$0xff]
      %v2751 = vmul.f32 %v2741, %v2741
      %v2752 = vmul.f32 %v2742, %v2742
      %v2753 = vmul.f32 %v2743, %v2743
      %v2754 = vmul.f32 %v2744, %v2744
      %2755 = vmatpush.msra.mxu0 1.0
      %2756 = vmatpush.msra.mxu0 1.0
      %2757 = vmatpush.msra.mxu0 1.0
      %2758 = vmatpush.msra.mxu0 1.0
      %2759 = vmatpush.msra.mxu0 1.0
      %2760 = vmatpush.msra.mxu0 1.0
      %2761 = vmatpush.msra.mxu0 1.0
      %2762 = vmatpush.msra.mxu0 1.0
      %2763 = vmatpush.msra.mxu0 1.0
      %2764 = vmatpush.msra.mxu0 1.0
      %2765 = vmatpush.msra.mxu0 1.0
      %2766 = vmatpush.msra.mxu0 1.0
      %2767 = vmatpush.msra.mxu0 1.0
      %2768 = vmatpush.msra.mxu0 1.0
      %2769 = vmatpush.msra.mxu0 1.0
      %2770 = vmatpush.msra.mxu0 1.0
      %2771 = vmatmul.f32.gmra.mxu0 %v2741
      %v2772 = vpop.f32.mrf.mxu0
      %v2773 = vadd.f32 0.0, %v2772
      %2774 = vmatmul.f32.gmra.mxu0 %v2743
      %v2775 = vpop.f32.mrf.mxu0
      %v2776 = vadd.f32 0.0, %v2775
      %2777 = vmatmul.f32.gmra.mxu0 %v2751
      %v2778 = vpop.f32.mrf.mxu0
      %v2779 = vadd.f32 0.0, %v2778
      %2780 = vmatmul.f32.gmra.mxu0 %v2753
      %v2781 = vpop.f32.mrf.mxu0
      %v2782 = vadd.f32 0.0, %v2781
      %2783 = vdwg.mxu0
      %2784 = vmatpush.msra.mxu0 1.0
      %2785 = vmatpush.msra.mxu0 1.0
      %2786 = vmatpush.msra.mxu0 1.0
      %2787 = vmatpush.msra.mxu0 1.0
      %2788 = vmatpush.msra.mxu0 1.0
      %2789 = vmatpush.msra.mxu0 1.0
      %2790 = vmatpush.msra.mxu0 1.0
      %2791 = vmatpush.msra.mxu0 1.0
      %2792 = vmatpush.msra.mxu0 1.0
      %2793 = vmatpush.msra.mxu0 1.0
      %2794 = vmatpush.msra.mxu0 1.0
      %2795 = vmatpush.msra.mxu0 1.0
      %2796 = vmatpush.msra.mxu0 1.0
      %2797 = vmatpush.msra.mxu0 1.0
      %2798 = vmatpush.msra.mxu0 1.0
      %2799 = vmatpush.msra.mxu0 1.0
      %2800 = vmatmul.f32.gmra.mxu0 %v2742
      %v2801 = vpop.f32.mrf.mxu0
      %v2802 = vadd.f32 %v2773, %v2801
      %2803 = vmatmul.f32.gmra.mxu0 %v2744
      %v2804 = vpop.f32.mrf.mxu0
      %v2805 = vadd.f32 %v2776, %v2804
      %2806 = vmatmul.f32.gmra.mxu0 %v2752
      %v2807 = vpop.f32.mrf.mxu0
      %v2808 = vadd.f32 %v2779, %v2807
      %2809 = vmatmul.f32.gmra.mxu0 %v2754
      %v2810 = vpop.f32.mrf.mxu0
      %v2811 = vadd.f32 %v2782, %v2810
      %2812 = vdwg.mxu0
      %v2813 = vmul.f32 %v2745, 256.0
      %v2814 = vmul.f32 %v2746, 256.0
      %2817 = vrot.lane.b32.xlu0 %v2813, 126
      %v2818 = vpop.permute.xlu0 %2817
      %2819 = vrot.lane.b32.xlu0 %v2814, 126
      %v2820 = vpop.permute.xlu0 %2819
      %v2823 = vadd.f32 %v2802, %v2818
      %v2824 = vadd.f32 %v2805, %v2820
      %v2825 = vmul.f32 %v2745, 2.0
      %v2826 = vmul.f32 %v2746, 2.0
      %2829 = vrot.lane.b32.xlu0 %v2802, 2
      %v2830 = vpop.permute.xlu0 %2829
      %2831 = vrot.lane.b32.xlu0 %v2805, 2
      %v2832 = vpop.permute.xlu0 %2831
      %v2835 = vmul.f32 %v2825, %v2830
      %v2836 = vmul.f32 %v2826, %v2832
      %2839 = vrot.lane.b32.xlu0 %v2835, 126
      %v2840 = vpop.permute.xlu0 %2839
      %2841 = vrot.lane.b32.xlu0 %v2836, 126
      %v2842 = vpop.permute.xlu0 %2841
      %v2845 = vadd.f32 %v2808, %v2840
      %v2846 = vadd.f32 %v2811, %v2842
      %v2847 = vmul.f32 %v2813, %v2745
      %v2848 = vmul.f32 %v2814, %v2746
      %2851 = vrot.lane.b32.xlu0 %v2847, 126
      %v2852 = vpop.permute.xlu0 %2851
      %2853 = vrot.lane.b32.xlu0 %v2848, 126
      %v2854 = vpop.permute.xlu0 %2853
      %v2857 = vadd.f32 %v2845, %v2852
      %v2858 = vadd.f32 %v2846, %v2854
      %2861 = vrot.lane.b32.xlu0 %v2857, 1
      %v2862 = vpop.permute.xlu0 %2861
      %2863 = vrot.lane.b32.xlu0 %v2858, 1
      %v2864 = vpop.permute.xlu0 %2863
      %v2867 = vsel %vm734, %v2823, %v2862
      %v2868 = vsel %vm734, %v2824, %v2864
      %2869 = vmatpush.msra.mxu0 0.0
      %2870 = vmatpush.msra.mxu0 0.0
      %2871 = vmatpush.msra.mxu0 0.0
      %2872 = vmatpush.msra.mxu0 0.0
      %2873 = vmatpush.msra.mxu0 0.0
      %2874 = vmatpush.msra.mxu0 0.0
      %2875 = vmatpush.msra.mxu0 0.0
      %2876 = vmatpush.msra.mxu0 0.0
      %2877 = vmatpush.msra.mxu0 0.0
      %2878 = vmatpush.msra.mxu0 0.0
      %2879 = vmatpush.msra.mxu0 0.0
      %2880 = vmatpush.msra.mxu0 0.0
      %2881 = vmatpush.msra.mxu0 0.0
      %2882 = vmatpush.msra.mxu0 0.0
      %2883 = vmatpush.msra.mxu0 %v2868
      %2884 = vmatpush.msra.mxu0 %v2867
      %2885 = vmatmul.f32.gmra.mxu0 %v1118
      %v2886 = vpop.f32.mrf.mxu0
      %v2887 = vadd.f32 0.0, %v2886
      %2888 = vmatmul.f32.gmra.mxu0 %v1121
      %v2889 = vpop.f32.mrf.mxu0
      %v2890 = vadd.f32 0.0, %v2889
      %2891 = vdwg.mxu0
      %v2892 = vmul.f32 %v2887, %v2887
      %v2893 = vmul.f32 %v2890, %v2890
      %2896 = vrot.lane.b32.xlu0 %v2892, 1
      %v2897 = vpop.permute.xlu0 %2896
      %2898 = vrot.lane.b32.xlu0 %v2893, 1
      %v2899 = vpop.permute.xlu0 %2898
      %v2902 = vsub.f32 %v2887, %v2897
      %v2903 = vsub.f32 %v2890, %v2899
      %v2904 = vmax.f32 %v2902, 0.0
      %v2905 = vmax.f32 %v2903, 0.0
      %v2906 = vadd.f32 %v2904, 1e-05
      %v2907 = vadd.f32 %v2905, 1e-05
      %v2908 = vrsqrt.pop %v2906
      %v2909 = vmul.f32 %v2908, %v2906
      %v2910 = vmul.f32 %v2909, %v2908
      %v2911 = vmul.f32 0.5, %v2910
      %v2912 = vsub.f32 1.5, %v2911
      %v2913 = vmul.f32 %v2908, %v2912
      %vm2914 = vweird.f32 %v2906
      %vm2915 = vweird.f32 %v2908
      %vm2916 = vmor %vm2914, %vm2915
      %v2917 = vsel %vm2916, %v2908, %v2913
      %v2918 = vrsqrt.pop %v2907
      %v2919 = vmul.f32 %v2918, %v2907
      %v2920 = vmul.f32 %v2919, %v2918
      %v2921 = vmul.f32 0.5, %v2920
      %v2922 = vsub.f32 1.5, %v2921
      %v2923 = vmul.f32 %v2918, %v2922
      %vm2924 = vweird.f32 %v2907
      %vm2925 = vweird.f32 %v2918
      %vm2926 = vmor %vm2924, %vm2925
      %v2927 = vsel %vm2926, %v2918, %v2923
      %2930 = vrot.lane.b32.xlu0 %v2747, 127
      %v2931 = vpop.permute.xlu0 %2930
      %2932 = vrot.lane.b32.xlu0 %v2748, 127
      %v2933 = vpop.permute.xlu0 %2932
      %v2936 = vmul.f32 %v2917, %v2931
      %v2937 = vmul.f32 %v2927, %v2933
      %2940 = vrot.lane.b32.xlu0 %v2887, 2
      %v2941 = vpop.permute.xlu0 %2940
      %2942 = vrot.lane.b32.xlu0 %v2890, 2
      %v2943 = vpop.permute.xlu0 %2942
      %v2946 = vsub.f32 %v2745, %v2941
      %v2947 = vsub.f32 %v2746, %v2943
      %2950 = vrot.lane.b32.xlu0 %v2936, 1
      %v2951 = vpop.permute.xlu0 %2950
      %2952 = vrot.lane.b32.xlu0 %v2937, 1
      %v2953 = vpop.permute.xlu0 %2952
      %v2956 = vmul.f32 %v2946, %v2951
      %v2957 = vmul.f32 %v2947, %v2953
      %v2958 = vadd.f32 %v2956, %v2749
      %v2959 = vadd.f32 %v2957, %v2750
      %2960 = vset.pattern.permute.xlu0 1
      %2961 = vperm.xlu0 %2960, %v2936
      %v2962 = vpop.permute.xlu0 %2961
      %2964 = vset.pattern.permute.xlu0 1
      %2965 = vperm.xlu0 %2964, %v2937
      %v2966 = vpop.permute.xlu0 %2965
      %v2968 = vmul.f32 %v2741, %v2962
      %v2969 = vmul.f32 %v2742, %v2962
      %v2970 = vmul.f32 %v2743, %v2966
      %v2971 = vmul.f32 %v2744, %v2966
      %2973 = vset.pattern.permute.xlu0 2
      %2974 = vperm.xlu0 %2973, %v2958
      %v2975 = vpop.permute.xlu0 %2974
      %2978 = vset.pattern.permute.xlu0 2
      %2979 = vperm.xlu0 %2978, %v2959
      %v2980 = vpop.permute.xlu0 %2979
      %v2982 = vadd.f32 %v2968, %v2975
      %v2983 = vadd.f32 %v2969, %v2975
      %v2984 = vadd.f32 %v2970, %v2980
      %v2985 = vadd.f32 %v2971, %v2980
      %v2986 = vmax.f32 %v2982, 0.0
      %v2987 = vmax.f32 %v2983, 0.0
      %v2988 = vmax.f32 %v2984, 0.0
      %v2989 = vmax.f32 %v2985, 0.0
      %2990 = vst [vmem:[%s332] sm:$0xff] %v2986
      %2991 = vst [vmem:[%s332 + $0x8] sm:$0xff] %v2987
      %2992 = vst [vmem:[%s332 + $0x10] sm:$0xff] %v2988
      %2993 = vst [vmem:[%s332 + $0x18] sm:$0xff] %v2989
      %p2994 = scmp.lt.s32.totalorder %s20, 1
      %s2995 = scalar_select %p2994, %s20, 1
      %s2996 = smul.addr %s2995, 4
      %s2997 = smul.addr %s2996, 8
      %s2998 = scalar_lea.vmem %s9, %s2997
      // Predicated region
      $region57: #{conv3_forward.1} parent=55 // pred_check
        %p2999 = pneg %p232
      $region58: #{conv3_forward.1} parent=55 // pred_check_branch
        %3001 = sbr.rel (%p2999) target = $region60
      $region59: #{conv3_forward.1} parent=55 // pred_region
        _
      $region60: #{conv3_forward.1} parent=55 // pred_fallthru
        _
    $region56: #{conv3_forward.1} parent=5 // pred_fallthru
      _
    %p3002 = scmp.le.s32.totalorder 2, %s15
    // Predicated region
    $region61: #{conv3_forward.1} parent=5 // pred_check
      %p3003 = pneg %p3002
    $region62: #{conv3_forward.1} parent=5 // pred_check_branch
      %3005 = sbr.rel (%p3003) target = $region64
    $region63: #{conv3_forward.1} parent=5 // pred_region
      %s3006 = ssub.s32 %s15, 2
      // Predicated region
      $region65: #{conv3_forward.1} parent=63 // pred_check
        %p3007 = pneg %p238
      $region66: #{conv3_forward.1} parent=63 // pred_check_branch
        %3009 = sbr.rel (%p3007) target = $region68
      $region67: #{conv3_forward.1} parent=63 // pred_region
        %p3010 = scmp.lt.s32.totalorder %s21, 1
        %s3011 = scalar_select %p3010, %s21, 1
        %s3012 = smul.addr %s3011, 4
        %s3013 = smul.addr %s3012, 8
        %s3014 = scalar_lea.vmem %s9, %s3013
      $region68: #{conv3_forward.1} parent=63 // pred_fallthru
        _
    $region64: #{conv3_forward.1} parent=5 // pred_fallthru
      _
  $region6: #{conv3_forward.1} parent=0 // loop_footer
    %s19 = sadd.s32 1, %s15
  $region7: #{conv3_forward.1} parent=0 // loop_footer_branch
    %14 = sbr.rel target = $region3
  $region8: #{conv3_forward.1} parent=0 // loop_exit
    _

</llo_original>
